<compile_context>
chip_gen: v7x
topology: tpu7x:2x2x1
jax: 0.10.0
libtpu: 0.0.40
codegen_flags: <defaults>
</compile_context>

<pallas_src>
import functools

import jax
import jax.numpy as jnp
from jax import lax
from jax.experimental import pallas as pl
from jax.experimental.pallas import tpu as pltpu

LANE = 128


def _round_up(v, m):
    return ((v + m - 1) // m) * m


def _pad2(a, rows, cols):
    return jnp.pad(a, ((0, rows - a.shape[0]), (0, cols - a.shape[1])))


def fold_bn(gamma, beta, mean, var, eps=1e-5):
    scale = gamma / jnp.sqrt(var + eps)
    return scale.reshape(1, -1), (beta - mean * scale).reshape(1, -1)


# ------------------------------ Pallas kernel -------------------------------

def _resblock_kernel(x_ref, w1_ref, b1_ref, w2_ref, b2_ref, w3_ref, b3_ref,
                     w4_ref, b4_ref, o_ref, y1pad_ref, *, H, W, pad_l):
    cmid = w1_ref.shape[1]

    x = x_ref[...]                                     # (H*W, Cin) bf16

    # conv1 (1x1) + bn1 + relu   (BN scale folded into w1 -> bias-only epilogue)
    y1 = jnp.dot(x, w1_ref[...], preferred_element_type=jnp.float32)
    y1 = jnp.maximum(y1 + b1_ref[...], 0.0)            # (H*W, cmid) f32

    # Stage y1 with a zero halo in VMEM (spatial pad=1 for the 3x3 conv).
    # Interior starts at sublane-aligned column pad_l -> unmasked store.
    y1pad_ref[...] = jnp.zeros_like(y1pad_ref)
    y1pad_ref[1:H + 1, pad_l:pad_l + W, :] = y1.reshape(H, W, cmid)

    # conv2 (3x3, pad=1) as 9 accumulated MXU dots over shifted VMEM windows.
    # Computed at stride 1; the wrapper subsamples the output for blockstride>1.
    acc2 = jnp.zeros((H * W, cmid), jnp.float32)
    for dy in range(3):
        for dx in range(3):
            c0 = pad_l - 1 + dx
            win = y1pad_ref[dy:dy + H, c0:c0 + W, :]
            acc2 = acc2 + jnp.dot(
                win.reshape(H * W, cmid).astype(jnp.bfloat16),
                w2_ref[3 * dy + dx],
                preferred_element_type=jnp.float32)
    y2 = jnp.maximum(acc2 + b2_ref[...], 0.0).astype(jnp.bfloat16)

    # conv3 (1x1) + bn3, shortcut (projection or identity), add, relu -- fused.
    out = jnp.dot(y2, w3_ref[...], preferred_element_type=jnp.float32) + b3_ref[...]
    res = jnp.dot(x, w4_ref[...], preferred_element_type=jnp.float32) + b4_ref[...]
    o_ref[...] = jnp.maximum(out + res, 0.0).astype(o_ref.dtype)


# ------------------------------ wrapper (JAX) --------------------------------

def prepare_operands(params, in_planes, inter_planes, planes, blockstride):
    """Fold BN into weights, pad channels to 128 lanes, cast matmul operands to bf16."""
    cmid = _round_up(inter_planes, LANE)
    cout = _round_up(planes, LANE)
    s1, b1 = fold_bn(*params["bn1"])
    s2, b2 = fold_bn(*params["bn2"])
    s3, b3 = fold_bn(*params["bn3"])

    ops = {}
    ops["w1"] = _pad2(params["w1"] * s1, in_planes, cmid).astype(jnp.bfloat16)
    ops["b1"] = _pad2(b1, 1, cmid).astype(jnp.float32)

    w2s = params["w2"] * s2.reshape(1, 1, 1, -1)       # (3,3,inter,inter), HWIO
    taps = [_pad2(w2s[dy, dx], cmid, cmid) for dy in range(3) for dx in range(3)]
    ops["w2"] = jnp.stack(taps).astype(jnp.bfloat16)   # (9, cmid, cmid)
    ops["b2"] = _pad2(b2, 1, cmid).astype(jnp.float32)

    ops["w3"] = _pad2(params["w3"] * s3, cmid, cout).astype(jnp.bfloat16)
    ops["b3"] = _pad2(b3, 1, cout).astype(jnp.float32)

    if blockstride > 1 or in_planes != planes:
        s4, b4 = fold_bn(*params["bn4"])
        ops["w4"] = _pad2(params["w4"] * s4, in_planes, cout).astype(jnp.bfloat16)
        ops["b4"] = _pad2(b4, 1, cout).astype(jnp.float32)
    else:
        # identity shortcut expressed as a (padded) identity projection
        ops["w4"] = _pad2(jnp.eye(in_planes, dtype=jnp.float32),
                          in_planes, cout).astype(jnp.bfloat16)
        ops["b4"] = jnp.zeros((1, cout), jnp.float32)
    return ops


def resblock_forward(x_nchw, ops, in_planes, inter_planes, planes, blockstride):
    """Mirrors ResBlock.forward (inference-mode BN). Input/output: NCHW f32."""
    N, C, H, W = x_nchw.shape
    assert C == in_planes
    cmid = ops["w1"].shape[1]
    cout = ops["w3"].shape[1]
    pad_l = 8                                           # sublane-aligned left halo
    # Note: W % 8 == 0 keeps the in-kernel (H,W,C)<->(H*W,C) reshapes layout-free.

    x = jnp.transpose(x_nchw, (0, 2, 3, 1))             # NHWC
    x = x.reshape(N, H * W, C).astype(jnp.bfloat16)     # rows = pixels, lanes = C

    flops = 2 * N * H * W * (C * cmid + 9 * cmid * cmid + cmid * cout + C * cout)
    bytes_accessed = (x.size * 2
                      + sum(int(ops[k].size) * ops[k].dtype.itemsize for k in ops)
                      + N * H * W * cout * 4)

    kernel = functools.partial(_resblock_kernel, H=H, W=W, pad_l=pad_l)
    out_full = pl.pallas_call(
        kernel,
        out_shape=jax.ShapeDtypeStruct((N, H * W, cout), jnp.float32),
        grid=(N,),
        in_specs=[
            pl.BlockSpec((None, H * W, C), lambda b: (b, 0, 0)),     # x
            pl.BlockSpec((C, cmid), lambda b: (0, 0)),               # w1
            pl.BlockSpec((1, cmid), lambda b: (0, 0)),               # b1
            pl.BlockSpec((9, cmid, cmid), lambda b: (0, 0, 0)),      # w2 taps
            pl.BlockSpec((1, cmid), lambda b: (0, 0)),               # b2
            pl.BlockSpec((cmid, cout), lambda b: (0, 0)),            # w3
            pl.BlockSpec((1, cout), lambda b: (0, 0)),               # b3
            pl.BlockSpec((C, cout), lambda b: (0, 0)),               # w4 / identity
            pl.BlockSpec((1, cout), lambda b: (0, 0)),               # b4
        ],
        out_specs=pl.BlockSpec((None, H * W, cout), lambda b: (b, 0, 0)),
        scratch_shapes=[pltpu.VMEM((H + 2, W + 2 * pad_l, cmid), jnp.float32)],
        compiler_params=pltpu.CompilerParams(
            dimension_semantics=("parallel",)),
        cost_estimate=pl.CostEstimate(flops=flops, transcendentals=0,
                                      bytes_accessed=bytes_accessed),
    )(x, ops["w1"], ops["b1"], ops["w2"], ops["b2"],
      ops["w3"], ops["b3"], ops["w4"], ops["b4"])

    out = out_full.reshape(N, H, W, cout)
    s = blockstride
    out = out[:, ::s, ::s, :planes]                     # stride + drop channel pad
    return jnp.transpose(out, (0, 3, 1, 2))             # back to NCHW


# --------------------------- parameter construction --------------------------

def init_resblock_params(key, in_planes, inter_planes, planes, blockstride):
    ks = iter(jax.random.split(key, 32))

    def conv_w(shape):
        return (0.1 * jax.random.normal(next(ks), shape)).astype(jnp.float32)

    def bn(c):
        gamma = 0.5 + jax.random.uniform(next(ks), (c,))
        beta = 0.1 * jax.random.normal(next(ks), (c,))
        mean = 0.1 * jax.random.normal(next(ks), (c,))
        var = 0.5 + jax.random.uniform(next(ks), (c,))
        return (gamma, beta, mean, var)

    p = {"w1": conv_w((in_planes, inter_planes)), "bn1": bn(inter_planes),
         "w2": conv_w((3, 3, inter_planes, inter_planes)), "bn2": bn(inter_planes),
         "w3": conv_w((inter_planes, planes)), "bn3": bn(planes)}
    if blockstride > 1 or in_planes != planes:
        p["w4"] = conv_w((in_planes, planes))
        p["bn4"] = bn(planes)
    return p


# ----------------------------- pure-JAX references ---------------------------

_DN = ("NHWC", "HWIO", "NHWC")


def _conv(inp, w_hwio, stride, pad):
    return lax.conv_general_dilated(inp, w_hwio, (stride, stride),
                                    [(pad, pad), (pad, pad)],
                                    dimension_numbers=_DN)


def resblock_reference(x_nchw, params, in_planes, inter_planes, planes, blockstride):
    """Full float32 reference (PyTorch semantics, inference-mode BN)."""
    x = jnp.transpose(x_nchw, (0, 2, 3, 1)).astype(jnp.float32)
    s1, b1 = fold_bn(*params["bn1"])
    s2, b2 = fold_bn(*params["bn2"])
    s3, b3 = fold_bn(*params["bn3"])
    w1 = params["w1"].reshape(1, 1, in_planes, inter_planes)
    w3 = params["w3"].reshape(1, 1, inter_planes, planes)
    out = jnp.maximum(_conv(x, w1, 1, 0) * s1 + b1, 0.0)
    out = jnp.maximum(_conv(out, params["w2"], blockstride, 1) * s2 + b2, 0.0)
    out = _conv(out, w3, 1, 0) * s3 + b3
    if blockstride > 1 or in_planes != planes:
        s4, b4 = fold_bn(*params["bn4"])
        w4 = params["w4"].reshape(1, 1, in_planes, planes)
        res = _conv(x, w4, blockstride, 0) * s4 + b4
    else:
        res = x
    out = jnp.maximum(out + res, 0.0)
    return jnp.transpose(out, (0, 3, 1, 2))


def resblock_reference_bf16(x_nchw, params, in_planes, inter_planes, planes,
                            blockstride):
    """Reference that mirrors the kernel's bf16 operand rounding (f32 accumulation)."""
    q = lambda a: a.astype(jnp.bfloat16).astype(jnp.float32)
    s1, b1 = fold_bn(*params["bn1"])
    s2, b2 = fold_bn(*params["bn2"])
    s3, b3 = fold_bn(*params["bn3"])
    x = q(jnp.transpose(x_nchw, (0, 2, 3, 1)).astype(jnp.float32))
    w1 = q(params["w1"] * s1).reshape(1, 1, in_planes, inter_planes)
    y1 = q(jnp.maximum(_conv(x, w1, 1, 0) + b1, 0.0))
    w2 = q(params["w2"] * s2.reshape(1, 1, 1, -1))
    y2 = q(jnp.maximum(_conv(y1, w2, 1, 1) + b2, 0.0))
    w3 = q(params["w3"] * s3).reshape(1, 1, inter_planes, planes)
    out = _conv(y2, w3, 1, 0) + b3
    if blockstride > 1 or in_planes != planes:
        s4, b4 = fold_bn(*params["bn4"])
        w4 = q(params["w4"] * s4).reshape(1, 1, in_planes, planes)
        res = _conv(x, w4, 1, 0) + b4
    else:
        res = x
    out = jnp.maximum(out + res, 0.0)
    out = out[:, ::blockstride, ::blockstride, :]
    return jnp.transpose(out, (0, 3, 1, 2))


# ---------------------------------- main -------------------------------------

if __name__ == "__main__":
    in_planes, inter_planes, planes, blockstride = 4, 8, 16, 2
    N, H, W = 2, 16, 16

    key = jax.random.PRNGKey(0)
    k_x, k_p = jax.random.split(key)
    x = jax.random.normal(k_x, (N, in_planes, H, W), dtype=jnp.float32)
    params = init_resblock_params(k_p, in_planes, inter_planes, planes, blockstride)
    ops = prepare_operands(params, in_planes, inter_planes, planes, blockstride)

    fwd = jax.jit(functools.partial(resblock_forward,
                                    in_planes=in_planes,
                                    inter_planes=inter_planes,
                                    planes=planes,
                                    blockstride=blockstride))
    out = fwd(x, ops)
    out = jax.block_until_ready(out)

    assert out.shape == (N, planes, H // blockstride, W // blockstride), out.shape

    # Tight check: same bf16 operand rounding as the kernel (f32 accumulation).
    ref_q = resblock_reference_bf16(x, params, in_planes, inter_planes, planes,
                                    blockstride)
    assert jnp.allclose(out, ref_q, atol=5e-3, rtol=5e-3), \
        float(jnp.max(jnp.abs(out - ref_q)))

    # Sanity check vs full-f32 module semantics (tolerance covers bf16 operands).
    ref_f = resblock_reference(x, params, in_planes, inter_planes, planes,
                               blockstride)
    assert jnp.allclose(out, ref_f, atol=5e-2, rtol=5e-2), \
        float(jnp.max(jnp.abs(out - ref_f)))

    print("KERNEL_OK")
</pallas_src>

<mosaic_0001>
module attributes {stable_mosaic.version = 11 : i64} {
  func.func @_resblock_kernel(%arg0: i32, %arg1: memref<1x256x4xbf16, #tpu.memory_space<vmem>>, %arg2: memref<4x128xbf16, #tpu.memory_space<vmem>>, %arg3: memref<1x128xf32, #tpu.memory_space<vmem>>, %arg4: memref<9x128x128xbf16, #tpu.memory_space<vmem>>, %arg5: memref<1x128xf32, #tpu.memory_space<vmem>>, %arg6: memref<128x128xbf16, #tpu.memory_space<vmem>>, %arg7: memref<1x128xf32, #tpu.memory_space<vmem>>, %arg8: memref<4x128xbf16, #tpu.memory_space<vmem>>, %arg9: memref<1x128xf32, #tpu.memory_space<vmem>>, %arg10: memref<1x256x128xf32, #tpu.memory_space<vmem>>, %arg11: memref<18x32x128xf32, #tpu.memory_space<vmem>>) attributes {dimension_semantics = [#tpu.dimension_semantics<parallel>], iteration_bounds = array<i64: 2>, scalar_prefetch = 0 : i64, scratch_operands = 1 : i64, tpu.core_type = #tpu.core_type<tc>, window_params = [{transform_indices = @transform_0, window_bounds = array<i64: 1, 256, 4>}, {pipeline_mode = #tpu.pipeline_mode<synchronous>, transform_indices = @transform_1, window_bounds = array<i64: 4, 128>}, {pipeline_mode = #tpu.pipeline_mode<synchronous>, transform_indices = @transform_2, window_bounds = array<i64: 1, 128>}, {pipeline_mode = #tpu.pipeline_mode<synchronous>, transform_indices = @transform_3, window_bounds = array<i64: 9, 128, 128>}, {pipeline_mode = #tpu.pipeline_mode<synchronous>, transform_indices = @transform_4, window_bounds = array<i64: 1, 128>}, {pipeline_mode = #tpu.pipeline_mode<synchronous>, transform_indices = @transform_5, window_bounds = array<i64: 128, 128>}, {pipeline_mode = #tpu.pipeline_mode<synchronous>, transform_indices = @transform_6, window_bounds = array<i64: 1, 128>}, {pipeline_mode = #tpu.pipeline_mode<synchronous>, transform_indices = @transform_7, window_bounds = array<i64: 4, 128>}, {pipeline_mode = #tpu.pipeline_mode<synchronous>, transform_indices = @transform_8, window_bounds = array<i64: 1, 128>}, {transform_indices = @transform_9, window_bounds = array<i64: 1, 256, 128>}]} {
    %c0 = arith.constant 0 : index
    %c0_0 = arith.constant 0 : index
    %c0_1 = arith.constant 0 : index
    %0 = vector.load %arg1[%c0, %c0_0, %c0_1] : memref<1x256x4xbf16, #tpu.memory_space<vmem>>, vector<1x256x4xbf16>
    %1 = vector.shape_cast %0 : vector<1x256x4xbf16> to vector<256x4xbf16>
    %c0_2 = arith.constant 0 : index
    %c0_3 = arith.constant 0 : index
    %2 = vector.load %arg2[%c0_2, %c0_3] : memref<4x128xbf16, #tpu.memory_space<vmem>>, vector<4x128xbf16>
    %cst = arith.constant dense<0.000000e+00> : vector<256x128xf32>
    %3 = tpu.matmul %1, %2, %cst {dimension_numbers = #tpu.dot_dimension_numbers<[1], [0], [0], [1], [0, 0, 1, 1], [], []>} : vector<256x4xbf16>, vector<4x128xbf16>, vector<256x128xf32> -> vector<256x128xf32>
    %c0_4 = arith.constant 0 : index
    %c0_5 = arith.constant 0 : index
    %4 = vector.load %arg3[%c0_4, %c0_5] : memref<1x128xf32, #tpu.memory_space<vmem>>, vector<1x128xf32>
    %5 = vector.broadcast %4 : vector<1x128xf32> to vector<256x128xf32>
    %6 = arith.addf %3, %5 : vector<256x128xf32>
    %cst_6 = arith.constant 0.000000e+00 : f32
    %7 = vector.broadcast %cst_6 : f32 to vector<256x128xf32>
    %8 = arith.maximumf %6, %7 : vector<256x128xf32>
    %cst_7 = arith.constant 0.000000e+00 : f32
    %9 = vector.broadcast %cst_7 : f32 to vector<18x32x128xf32>
    %c0_8 = arith.constant 0 : index
    %c0_9 = arith.constant 0 : index
    %c0_10 = arith.constant 0 : index
    %10 = vector.load %arg11[%c0_8, %c0_9, %c0_10] : memref<18x32x128xf32, #tpu.memory_space<vmem>>, vector<18x32x128xf32>
    tpu.vector_store %arg11[%c0_8, %c0_9, %c0_10], %9 {strides = array<i32>} : memref<18x32x128xf32, #tpu.memory_space<vmem>>, vector<18x32x128xf32>,
    %11 = vector.shape_cast %8 : vector<256x128xf32> to vector<16x16x128xf32>
    %c1 = arith.constant 1 : index
    %c8 = arith.constant 8 : index
    %c0_11 = arith.constant 0 : index
    %12 = vector.load %arg11[%c1, %c8, %c0_11] : memref<18x32x128xf32, #tpu.memory_space<vmem>>, vector<16x16x128xf32>
    tpu.vector_store %arg11[%c1, %c8, %c0_11], %11 {strides = array<i32>} : memref<18x32x128xf32, #tpu.memory_space<vmem>>, vector<16x16x128xf32>,
    %cst_12 = arith.constant 0.000000e+00 : f32
    %13 = vector.broadcast %cst_12 : f32 to vector<256x128xf32>
    %c0_13 = arith.constant 0 : index
    %c7 = arith.constant 7 : index
    %c0_14 = arith.constant 0 : index
    %14 = vector.load %arg11[%c0_13, %c7, %c0_14] : memref<18x32x128xf32, #tpu.memory_space<vmem>>, vector<16x16x128xf32>
    %15 = vector.shape_cast %14 : vector<16x16x128xf32> to vector<256x128xf32>
    %16 = arith.truncf %15 : vector<256x128xf32> to vector<256x128xbf16>
    %c0_15 = arith.constant 0 : index
    %c0_16 = arith.constant 0 : index
    %c0_17 = arith.constant 0 : index
    %17 = vector.load %arg4[%c0_15, %c0_16, %c0_17] : memref<9x128x128xbf16, #tpu.memory_space<vmem>>, vector<1x128x128xbf16>
    %18 = vector.shape_cast %17 : vector<1x128x128xbf16> to vector<128x128xbf16>
    %cst_18 = arith.constant dense<0.000000e+00> : vector<256x128xf32>
    %19 = tpu.matmul %16, %18, %cst_18 {dimension_numbers = #tpu.dot_dimension_numbers<[1], [0], [0], [1], [0, 0, 1, 1], [], []>} : vector<256x128xbf16>, vector<128x128xbf16>, vector<256x128xf32> -> vector<256x128xf32>
    %20 = arith.addf %13, %19 : vector<256x128xf32>
    %c0_19 = arith.constant 0 : index
    %c8_20 = arith.constant 8 : index
    %c0_21 = arith.constant 0 : index
    %21 = vector.load %arg11[%c0_19, %c8_20, %c0_21] : memref<18x32x128xf32, #tpu.memory_space<vmem>>, vector<16x16x128xf32>
    %22 = vector.shape_cast %21 : vector<16x16x128xf32> to vector<256x128xf32>
    %23 = arith.truncf %22 : vector<256x128xf32> to vector<256x128xbf16>
    %c1_22 = arith.constant 1 : index
    %c0_23 = arith.constant 0 : index
    %c0_24 = arith.constant 0 : index
    %24 = vector.load %arg4[%c1_22, %c0_23, %c0_24] : memref<9x128x128xbf16, #tpu.memory_space<vmem>>, vector<1x128x128xbf16>
    %25 = vector.shape_cast %24 : vector<1x128x128xbf16> to vector<128x128xbf16>
    %cst_25 = arith.constant dense<0.000000e+00> : vector<256x128xf32>
    %26 = tpu.matmul %23, %25, %cst_25 {dimension_numbers = #tpu.dot_dimension_numbers<[1], [0], [0], [1], [0, 0, 1, 1], [], []>} : vector<256x128xbf16>, vector<128x128xbf16>, vector<256x128xf32> -> vector<256x128xf32>
    %27 = arith.addf %20, %26 : vector<256x128xf32>
    %c0_26 = arith.constant 0 : index
    %c9 = arith.constant 9 : index
    %c0_27 = arith.constant 0 : index
    %28 = vector.load %arg11[%c0_26, %c9, %c0_27] : memref<18x32x128xf32, #tpu.memory_space<vmem>>, vector<16x16x128xf32>
    %29 = vector.shape_cast %28 : vector<16x16x128xf32> to vector<256x128xf32>
    %30 = arith.truncf %29 : vector<256x128xf32> to vector<256x128xbf16>
    %c2 = arith.constant 2 : index
    %c0_28 = arith.constant 0 : index
    %c0_29 = arith.constant 0 : index
    %31 = vector.load %arg4[%c2, %c0_28, %c0_29] : memref<9x128x128xbf16, #tpu.memory_space<vmem>>, vector<1x128x128xbf16>
    %32 = vector.shape_cast %31 : vector<1x128x128xbf16> to vector<128x128xbf16>
    %cst_30 = arith.constant dense<0.000000e+00> : vector<256x128xf32>
    %33 = tpu.matmul %30, %32, %cst_30 {dimension_numbers = #tpu.dot_dimension_numbers<[1], [0], [0], [1], [0, 0, 1, 1], [], []>} : vector<256x128xbf16>, vector<128x128xbf16>, vector<256x128xf32> -> vector<256x128xf32>
    %34 = arith.addf %27, %33 : vector<256x128xf32>
    %c1_31 = arith.constant 1 : index
    %c7_32 = arith.constant 7 : index
    %c0_33 = arith.constant 0 : index
    %35 = vector.load %arg11[%c1_31, %c7_32, %c0_33] : memref<18x32x128xf32, #tpu.memory_space<vmem>>, vector<16x16x128xf32>
    %36 = vector.shape_cast %35 : vector<16x16x128xf32> to vector<256x128xf32>
    %37 = arith.truncf %36 : vector<256x128xf32> to vector<256x128xbf16>
    %c3 = arith.constant 3 : index
    %c0_34 = arith.constant 0 : index
    %c0_35 = arith.constant 0 : index
    %38 = vector.load %arg4[%c3, %c0_34, %c0_35] : memref<9x128x128xbf16, #tpu.memory_space<vmem>>, vector<1x128x128xbf16>
    %39 = vector.shape_cast %38 : vector<1x128x128xbf16> to vector<128x128xbf16>
    %cst_36 = arith.constant dense<0.000000e+00> : vector<256x128xf32>
    %40 = tpu.matmul %37, %39, %cst_36 {dimension_numbers = #tpu.dot_dimension_numbers<[1], [0], [0], [1], [0, 0, 1, 1], [], []>} : vector<256x128xbf16>, vector<128x128xbf16>, vector<256x128xf32> -> vector<256x128xf32>
    %41 = arith.addf %34, %40 : vector<256x128xf32>
    %c1_37 = arith.constant 1 : index
    %c8_38 = arith.constant 8 : index
    %c0_39 = arith.constant 0 : index
    %42 = vector.load %arg11[%c1_37, %c8_38, %c0_39] : memref<18x32x128xf32, #tpu.memory_space<vmem>>, vector<16x16x128xf32>
    %43 = vector.shape_cast %42 : vector<16x16x128xf32> to vector<256x128xf32>
    %44 = arith.truncf %43 : vector<256x128xf32> to vector<256x128xbf16>
    %c4 = arith.constant 4 : index
    %c0_40 = arith.constant 0 : index
    %c0_41 = arith.constant 0 : index
    %45 = vector.load %arg4[%c4, %c0_40, %c0_41] : memref<9x128x128xbf16, #tpu.memory_space<vmem>>, vector<1x128x128xbf16>
    %46 = vector.shape_cast %45 : vector<1x128x128xbf16> to vector<128x128xbf16>
    %cst_42 = arith.constant dense<0.000000e+00> : vector<256x128xf32>
    %47 = tpu.matmul %44, %46, %cst_42 {dimension_numbers = #tpu.dot_dimension_numbers<[1], [0], [0], [1], [0, 0, 1, 1], [], []>} : vector<256x128xbf16>, vector<128x128xbf16>, vector<256x128xf32> -> vector<256x128xf32>
    %48 = arith.addf %41, %47 : vector<256x128xf32>
    %c1_43 = arith.constant 1 : index
    %c9_44 = arith.constant 9 : index
    %c0_45 = arith.constant 0 : index
    %49 = vector.load %arg11[%c1_43, %c9_44, %c0_45] : memref<18x32x128xf32, #tpu.memory_space<vmem>>, vector<16x16x128xf32>
    %50 = vector.shape_cast %49 : vector<16x16x128xf32> to vector<256x128xf32>
    %51 = arith.truncf %50 : vector<256x128xf32> to vector<256x128xbf16>
    %c5 = arith.constant 5 : index
    %c0_46 = arith.constant 0 : index
    %c0_47 = arith.constant 0 : index
    %52 = vector.load %arg4[%c5, %c0_46, %c0_47] : memref<9x128x128xbf16, #tpu.memory_space<vmem>>, vector<1x128x128xbf16>
    %53 = vector.shape_cast %52 : vector<1x128x128xbf16> to vector<128x128xbf16>
    %cst_48 = arith.constant dense<0.000000e+00> : vector<256x128xf32>
    %54 = tpu.matmul %51, %53, %cst_48 {dimension_numbers = #tpu.dot_dimension_numbers<[1], [0], [0], [1], [0, 0, 1, 1], [], []>} : vector<256x128xbf16>, vector<128x128xbf16>, vector<256x128xf32> -> vector<256x128xf32>
    %55 = arith.addf %48, %54 : vector<256x128xf32>
    %c2_49 = arith.constant 2 : index
    %c7_50 = arith.constant 7 : index
    %c0_51 = arith.constant 0 : index
    %56 = vector.load %arg11[%c2_49, %c7_50, %c0_51] : memref<18x32x128xf32, #tpu.memory_space<vmem>>, vector<16x16x128xf32>
    %57 = vector.shape_cast %56 : vector<16x16x128xf32> to vector<256x128xf32>
    %58 = arith.truncf %57 : vector<256x128xf32> to vector<256x128xbf16>
    %c6 = arith.constant 6 : index
    %c0_52 = arith.constant 0 : index
    %c0_53 = arith.constant 0 : index
    %59 = vector.load %arg4[%c6, %c0_52, %c0_53] : memref<9x128x128xbf16, #tpu.memory_space<vmem>>, vector<1x128x128xbf16>
    %60 = vector.shape_cast %59 : vector<1x128x128xbf16> to vector<128x128xbf16>
    %cst_54 = arith.constant dense<0.000000e+00> : vector<256x128xf32>
    %61 = tpu.matmul %58, %60, %cst_54 {dimension_numbers = #tpu.dot_dimension_numbers<[1], [0], [0], [1], [0, 0, 1, 1], [], []>} : vector<256x128xbf16>, vector<128x128xbf16>, vector<256x128xf32> -> vector<256x128xf32>
    %62 = arith.addf %55, %61 : vector<256x128xf32>
    %c2_55 = arith.constant 2 : index
    %c8_56 = arith.constant 8 : index
    %c0_57 = arith.constant 0 : index
    %63 = vector.load %arg11[%c2_55, %c8_56, %c0_57] : memref<18x32x128xf32, #tpu.memory_space<vmem>>, vector<16x16x128xf32>
    %64 = vector.shape_cast %63 : vector<16x16x128xf32> to vector<256x128xf32>
    %65 = arith.truncf %64 : vector<256x128xf32> to vector<256x128xbf16>
    %c7_58 = arith.constant 7 : index
    %c0_59 = arith.constant 0 : index
    %c0_60 = arith.constant 0 : index
    %66 = vector.load %arg4[%c7_58, %c0_59, %c0_60] : memref<9x128x128xbf16, #tpu.memory_space<vmem>>, vector<1x128x128xbf16>
    %67 = vector.shape_cast %66 : vector<1x128x128xbf16> to vector<128x128xbf16>
    %cst_61 = arith.constant dense<0.000000e+00> : vector<256x128xf32>
    %68 = tpu.matmul %65, %67, %cst_61 {dimension_numbers = #tpu.dot_dimension_numbers<[1], [0], [0], [1], [0, 0, 1, 1], [], []>} : vector<256x128xbf16>, vector<128x128xbf16>, vector<256x128xf32> -> vector<256x128xf32>
    %69 = arith.addf %62, %68 : vector<256x128xf32>
    %c2_62 = arith.constant 2 : index
    %c9_63 = arith.constant 9 : index
    %c0_64 = arith.constant 0 : index
    %70 = vector.load %arg11[%c2_62, %c9_63, %c0_64] : memref<18x32x128xf32, #tpu.memory_space<vmem>>, vector<16x16x128xf32>
    %71 = vector.shape_cast %70 : vector<16x16x128xf32> to vector<256x128xf32>
    %72 = arith.truncf %71 : vector<256x128xf32> to vector<256x128xbf16>
    %c8_65 = arith.constant 8 : index
    %c0_66 = arith.constant 0 : index
    %c0_67 = arith.constant 0 : index
    %73 = vector.load %arg4[%c8_65, %c0_66, %c0_67] : memref<9x128x128xbf16, #tpu.memory_space<vmem>>, vector<1x128x128xbf16>
    %74 = vector.shape_cast %73 : vector<1x128x128xbf16> to vector<128x128xbf16>
    %cst_68 = arith.constant dense<0.000000e+00> : vector<256x128xf32>
    %75 = tpu.matmul %72, %74, %cst_68 {dimension_numbers = #tpu.dot_dimension_numbers<[1], [0], [0], [1], [0, 0, 1, 1], [], []>} : vector<256x128xbf16>, vector<128x128xbf16>, vector<256x128xf32> -> vector<256x128xf32>
    %76 = arith.addf %69, %75 : vector<256x128xf32>
    %c0_69 = arith.constant 0 : index
    %c0_70 = arith.constant 0 : index
    %77 = vector.load %arg5[%c0_69, %c0_70] : memref<1x128xf32, #tpu.memory_space<vmem>>, vector<1x128xf32>
    %78 = vector.broadcast %77 : vector<1x128xf32> to vector<256x128xf32>
    %79 = arith.addf %76, %78 : vector<256x128xf32>
    %cst_71 = arith.constant 0.000000e+00 : f32
    %80 = vector.broadcast %cst_71 : f32 to vector<256x128xf32>
    %81 = arith.maximumf %79, %80 : vector<256x128xf32>
    %82 = arith.truncf %81 : vector<256x128xf32> to vector<256x128xbf16>
    %c0_72 = arith.constant 0 : index
    %c0_73 = arith.constant 0 : index
    %83 = vector.load %arg6[%c0_72, %c0_73] : memref<128x128xbf16, #tpu.memory_space<vmem>>, vector<128x128xbf16>
    %cst_74 = arith.constant dense<0.000000e+00> : vector<256x128xf32>
    %84 = tpu.matmul %82, %83, %cst_74 {dimension_numbers = #tpu.dot_dimension_numbers<[1], [0], [0], [1], [0, 0, 1, 1], [], []>} : vector<256x128xbf16>, vector<128x128xbf16>, vector<256x128xf32> -> vector<256x128xf32>
    %c0_75 = arith.constant 0 : index
    %c0_76 = arith.constant 0 : index
    %85 = vector.load %arg7[%c0_75, %c0_76] : memref<1x128xf32, #tpu.memory_space<vmem>>, vector<1x128xf32>
    %86 = vector.broadcast %85 : vector<1x128xf32> to vector<256x128xf32>
    %87 = arith.addf %84, %86 : vector<256x128xf32>
    %c0_77 = arith.constant 0 : index
    %c0_78 = arith.constant 0 : index
    %88 = vector.load %arg8[%c0_77, %c0_78] : memref<4x128xbf16, #tpu.memory_space<vmem>>, vector<4x128xbf16>
    %cst_79 = arith.constant dense<0.000000e+00> : vector<256x128xf32>
    %89 = tpu.matmul %1, %88, %cst_79 {dimension_numbers = #tpu.dot_dimension_numbers<[1], [0], [0], [1], [0, 0, 1, 1], [], []>} : vector<256x4xbf16>, vector<4x128xbf16>, vector<256x128xf32> -> vector<256x128xf32>
    %c0_80 = arith.constant 0 : index
    %c0_81 = arith.constant 0 : index
    %90 = vector.load %arg9[%c0_80, %c0_81] : memref<1x128xf32, #tpu.memory_space<vmem>>, vector<1x128xf32>
    %91 = vector.broadcast %90 : vector<1x128xf32> to vector<256x128xf32>
    %92 = arith.addf %89, %91 : vector<256x128xf32>
    %93 = arith.addf %87, %92 : vector<256x128xf32>
    %cst_82 = arith.constant 0.000000e+00 : f32
    %94 = vector.broadcast %cst_82 : f32 to vector<256x128xf32>
    %95 = arith.maximumf %93, %94 : vector<256x128xf32>
    %c0_83 = arith.constant 0 : index
    %c0_84 = arith.constant 0 : index
    %c0_85 = arith.constant 0 : index
    %96 = vector.load %arg10[%c0_83, %c0_84, %c0_85] : memref<1x256x128xf32, #tpu.memory_space<vmem>>, vector<1x256x128xf32>
    %97 = vector.shape_cast %96 : vector<1x256x128xf32> to vector<256x128xf32>
    %98 = vector.shape_cast %95 : vector<256x128xf32> to vector<1x256x128xf32>
    tpu.vector_store %arg10[%c0_83, %c0_84, %c0_85], %98 {strides = array<i32>} : memref<1x256x128xf32, #tpu.memory_space<vmem>>, vector<1x256x128xf32>,
    return
  }
  func.func @transform_0(%arg0: i32) -> (i32, i32, i32) {
    %c0_i32 = arith.constant 0 : i32
    %c0_i32_0 = arith.constant 0 : i32
    %c0_i32_1 = arith.constant 0 : i32
    return %arg0, %c0_i32, %c0_i32_0 : i32, i32, i32
  }
  func.func @transform_1(%arg0: i32) -> (i32, i32) {
    %c0_i32 = arith.constant 0 : i32
    %c0_i32_0 = arith.constant 0 : i32
    %c0_i32_1 = arith.constant 0 : i32
    return %c0_i32, %c0_i32_0 : i32, i32
  }
  func.func @transform_2(%arg0: i32) -> (i32, i32) {
    %c0_i32 = arith.constant 0 : i32
    %c0_i32_0 = arith.constant 0 : i32
    %c0_i32_1 = arith.constant 0 : i32
    return %c0_i32, %c0_i32_0 : i32, i32
  }
  func.func @transform_3(%arg0: i32) -> (i32, i32, i32) {
    %c0_i32 = arith.constant 0 : i32
    %c0_i32_0 = arith.constant 0 : i32
    %c0_i32_1 = arith.constant 0 : i32
    %c0_i32_2 = arith.constant 0 : i32
    return %c0_i32, %c0_i32_0, %c0_i32_1 : i32, i32, i32
  }
  func.func @transform_4(%arg0: i32) -> (i32, i32) {
    %c0_i32 = arith.constant 0 : i32
    %c0_i32_0 = arith.constant 0 : i32
    %c0_i32_1 = arith.constant 0 : i32
    return %c0_i32, %c0_i32_0 : i32, i32
  }
  func.func @transform_5(%arg0: i32) -> (i32, i32) {
    %c0_i32 = arith.constant 0 : i32
    %c0_i32_0 = arith.constant 0 : i32
    %c0_i32_1 = arith.constant 0 : i32
    return %c0_i32, %c0_i32_0 : i32, i32
  }
  func.func @transform_6(%arg0: i32) -> (i32, i32) {
    %c0_i32 = arith.constant 0 : i32
    %c0_i32_0 = arith.constant 0 : i32
    %c0_i32_1 = arith.constant 0 : i32
    return %c0_i32, %c0_i32_0 : i32, i32
  }
  func.func @transform_7(%arg0: i32) -> (i32, i32) {
    %c0_i32 = arith.constant 0 : i32
    %c0_i32_0 = arith.constant 0 : i32
    %c0_i32_1 = arith.constant 0 : i32
    return %c0_i32, %c0_i32_0 : i32, i32
  }
  func.func @transform_8(%arg0: i32) -> (i32, i32) {
    %c0_i32 = arith.constant 0 : i32
    %c0_i32_0 = arith.constant 0 : i32
    %c0_i32_1 = arith.constant 0 : i32
    return %c0_i32, %c0_i32_0 : i32, i32
  }
  func.func @transform_9(%arg0: i32) -> (i32, i32, i32) {
    %c0_i32 = arith.constant 0 : i32
    %c0_i32_0 = arith.constant 0 : i32
    %c0_i32_1 = arith.constant 0 : i32
    return %arg0, %c0_i32, %c0_i32_0 : i32, i32, i32
  }
}

</mosaic_0001>

<llo_original>
// kernel: resblock_forward.1
$region0: #{resblock_forward.1}
  #allocation0 [shape = 'u32[]', space=smem, size = 0x4, offset = 0x4, fixed_abs, tag = 'smem constant byte address 0x4 - core index']
  #allocation1 [shape = 'u32[144,128]{1,0:T(1,128)}', space=vmem, size = 0x12000, scoped, tag = 'internal scratch']
  #allocation2 [shape = 'f32[18,32,128]{2,1,0:T(8,128)}', space=vmem, size = 0x48000, scoped, tag = 'scratch operand']
  %s0 = inlined_call_operand.vmem [shape: bf16[2,256,4], index: 0, kind: input, shape index: {}]
  %s1 = inlined_call_operand.vmem [shape: bf16[4,128], index: 1, kind: input, shape index: {}]
  %s2 = inlined_call_operand.vmem [shape: f32[1,128], index: 2, kind: input, shape index: {}]
  %s3 = inlined_call_operand.hbm [shape: bf16[9,128,128], index: 3, kind: input, shape index: {}]
  %s4 = inlined_call_operand.vmem [shape: f32[1,128], index: 4, kind: input, shape index: {}]
  %s5 = inlined_call_operand.vmem [shape: bf16[128,128], index: 5, kind: input, shape index: {}]
  %s6 = inlined_call_operand.vmem [shape: f32[1,128], index: 6, kind: input, shape index: {}]
  %s7 = inlined_call_operand.vmem [shape: bf16[4,128], index: 7, kind: input, shape index: {}]
  %s8 = inlined_call_operand.vmem [shape: f32[1,128], index: 8, kind: input, shape index: {}]
  %s9 = inlined_call_operand.vmem [shape: f32[2,256,128], index: 9, kind: output, shape index: {}]
  %s10 = sld [smem:[#allocation0]]
  $region73: #{resblock_forward.1} parent=0
    _
  %s12 = ssub.s32 1, %s10
  %s13 = scalar_select 0, %s12, %s10
  $region1: #{resblock_forward.1} parent=0
    #allocation3 [shape = 'u8[294912]{0}', space=vmem, size = 0x48000, scoped, tag = 'input window, operand 3, single buffered']
    #allocation4 [shape = 's32[2]{0}', space=sflag, size = 0x8, scoped, tag = 'scoped memory for resblock_forward.1']
    %14 = vsyncpa [#allocation4], 0
    loop: start=0, step=1, limit=4
    $region2: #{resblock_forward.1} parent=1 // loop_pre_header
      _
    $region3: #{resblock_forward.1} parent=1 // loop_header
      %s16 = sphi 0, %s20
      %p17 = scmp.ge.s32.totalorder %s16, 4
      %s26 = sphi 0, %s28
      %s29 = sphi 0, %s26
      %s30 = sphi 0, %s29
      %s46 = sphi 0, %s30
      %s50 = sphi 0, %s50
      %s52 = sphi 0, %s50
      %s53 = sphi 0, %s52
      %s67 = sphi 0, %s53
      %s71 = sphi 0, %s71
      %s73 = sphi 0, %s71
      %s74 = sphi 0, %s73
      %s88 = sphi 0, %s74
      %s92 = sphi 0, %s92
      %s94 = sphi 0, %s92
      %s95 = sphi 0, %s94
      %s109 = sphi 0, %s95
      %s113 = sphi 0, %s113
      %s115 = sphi 0, %s113
      %s116 = sphi 0, %s115
      %s130 = sphi 0, %s116
      %s134 = sphi 0, %s134
      %s136 = sphi 0, %s134
      %s137 = sphi 0, %s136
      %s151 = sphi 0, %s137
      %s155 = sphi 0, %s155
      %s157 = sphi 0, %s155
      %s158 = sphi 0, %s157
      %s172 = sphi 0, %s158
      %s176 = sphi 0, %s176
      %s178 = sphi 0, %s176
      %s179 = sphi 0, %s178
      %s193 = sphi 0, %s179
      %s197 = sphi 0, %s197
      %s199 = sphi 0, %s197
      %s200 = sphi 0, %s199
      %s214 = sphi 0, %s200
      %s220 = sphi 0, %s222
      %s223 = sphi 0, %s220
      %s224 = sphi 0, %s223
      %s240 = sphi 0, %s224
    $region4: #{resblock_forward.1} parent=1 // loop_header_branch
      %19 = sbr.rel (%p17) target = $region8
    $region5: #{resblock_forward.1} parent=1 // loop_body
      %s21 = ssub.s32 %s16, 1
      %s22 = ssub.s32 %s16, 2
      %s23 = sadd.s32 %s16, 1
      %s24 = ssub.s32 %s16, %s23
      %p25 = scmp.eq.s32.totalorder %s24, 0
      %s27 = sadd.s32 %s26, 1
      %s28 = scalar_select %p25, %s26, %s27
      %p31 = pneg %p25
      %p32 = scmp.eq.s32.totalorder %s16, 1
      %p33 = por %p31, %p32
      %p34 = scmp.ne.s32.totalorder %s26, %s29
      %p35 = scmp.eq.s32.totalorder %s16, 0
      %p36 = por %p34, %p35
      %p37 = scmp.ne.s32.totalorder %s26, %s29
      %p38 = scmp.eq.s32.totalorder %s21, 1
      %p39 = por %p37, %p38
      %p40 = scmp.ne.s32.totalorder %s29, %s30
      %p41 = scmp.eq.s32.totalorder %s21, 0
      %p42 = por %p40, %p41
      %p43 = scmp.ne.s32.totalorder %s29, %s30
      %p44 = scmp.eq.s32.totalorder %s22, 1
      %p45 = por %p43, %p44
      %p47 = scmp.ne.s32.totalorder %s30, %s46
      %p48 = scmp.eq.s32.totalorder %s22, 0
      %p49 = por %p47, %p48
      %s51 = sadd.s32 %s50, 1
      %p54 = scmp.eq.s32.totalorder %s16, 1
      %p55 = scmp.ne.s32.totalorder %s50, %s52
      %p56 = scmp.eq.s32.totalorder %s16, 0
      %p57 = por %p55, %p56
      %p58 = scmp.ne.s32.totalorder %s50, %s52
      %p59 = scmp.eq.s32.totalorder %s21, 1
      %p60 = por %p58, %p59
      %p61 = scmp.ne.s32.totalorder %s52, %s53
      %p62 = scmp.eq.s32.totalorder %s21, 0
      %p63 = por %p61, %p62
      %p64 = scmp.ne.s32.totalorder %s52, %s53
      %p65 = scmp.eq.s32.totalorder %s22, 1
      %p66 = por %p64, %p65
      %p68 = scmp.ne.s32.totalorder %s53, %s67
      %p69 = scmp.eq.s32.totalorder %s22, 0
      %p70 = por %p68, %p69
      %s72 = sadd.s32 %s71, 1
      %p75 = scmp.eq.s32.totalorder %s16, 1
      %p76 = scmp.ne.s32.totalorder %s71, %s73
      %p77 = scmp.eq.s32.totalorder %s16, 0
      %p78 = por %p76, %p77
      %p79 = scmp.ne.s32.totalorder %s71, %s73
      %p80 = scmp.eq.s32.totalorder %s21, 1
      %p81 = por %p79, %p80
      %p82 = scmp.ne.s32.totalorder %s73, %s74
      %p83 = scmp.eq.s32.totalorder %s21, 0
      %p84 = por %p82, %p83
      %p85 = scmp.ne.s32.totalorder %s73, %s74
      %p86 = scmp.eq.s32.totalorder %s22, 1
      %p87 = por %p85, %p86
      %p89 = scmp.ne.s32.totalorder %s74, %s88
      %p90 = scmp.eq.s32.totalorder %s22, 0
      %p91 = por %p89, %p90
      %s93 = sadd.s32 %s92, 1
      %p96 = scmp.eq.s32.totalorder %s16, 1
      %p97 = scmp.ne.s32.totalorder %s92, %s94
      %p98 = scmp.eq.s32.totalorder %s16, 0
      %p99 = por %p97, %p98
      %p100 = scmp.ne.s32.totalorder %s92, %s94
      %p101 = scmp.eq.s32.totalorder %s21, 1
      %p102 = por %p100, %p101
      %p103 = scmp.ne.s32.totalorder %s94, %s95
      %p104 = scmp.eq.s32.totalorder %s21, 0
      %p105 = por %p103, %p104
      %p106 = scmp.ne.s32.totalorder %s94, %s95
      %p107 = scmp.eq.s32.totalorder %s22, 1
      %p108 = por %p106, %p107
      %p110 = scmp.ne.s32.totalorder %s95, %s109
      %p111 = scmp.eq.s32.totalorder %s22, 0
      %p112 = por %p110, %p111
      %s114 = sadd.s32 %s113, 1
      %p117 = scmp.eq.s32.totalorder %s16, 1
      %p118 = scmp.ne.s32.totalorder %s113, %s115
      %p119 = scmp.eq.s32.totalorder %s16, 0
      %p120 = por %p118, %p119
      %p121 = scmp.ne.s32.totalorder %s113, %s115
      %p122 = scmp.eq.s32.totalorder %s21, 1
      %p123 = por %p121, %p122
      %p124 = scmp.ne.s32.totalorder %s115, %s116
      %p125 = scmp.eq.s32.totalorder %s21, 0
      %p126 = por %p124, %p125
      %p127 = scmp.ne.s32.totalorder %s115, %s116
      %p128 = scmp.eq.s32.totalorder %s22, 1
      %p129 = por %p127, %p128
      %p131 = scmp.ne.s32.totalorder %s116, %s130
      %p132 = scmp.eq.s32.totalorder %s22, 0
      %p133 = por %p131, %p132
      %s135 = sadd.s32 %s134, 1
      %p138 = scmp.eq.s32.totalorder %s16, 1
      %p139 = scmp.ne.s32.totalorder %s134, %s136
      %p140 = scmp.eq.s32.totalorder %s16, 0
      %p141 = por %p139, %p140
      %p142 = scmp.ne.s32.totalorder %s134, %s136
      %p143 = scmp.eq.s32.totalorder %s21, 1
      %p144 = por %p142, %p143
      %p145 = scmp.ne.s32.totalorder %s136, %s137
      %p146 = scmp.eq.s32.totalorder %s21, 0
      %p147 = por %p145, %p146
      %p148 = scmp.ne.s32.totalorder %s136, %s137
      %p149 = scmp.eq.s32.totalorder %s22, 1
      %p150 = por %p148, %p149
      %p152 = scmp.ne.s32.totalorder %s137, %s151
      %p153 = scmp.eq.s32.totalorder %s22, 0
      %p154 = por %p152, %p153
      %s156 = sadd.s32 %s155, 1
      %p159 = scmp.eq.s32.totalorder %s16, 1
      %p160 = scmp.ne.s32.totalorder %s155, %s157
      %p161 = scmp.eq.s32.totalorder %s16, 0
      %p162 = por %p160, %p161
      %p163 = scmp.ne.s32.totalorder %s155, %s157
      %p164 = scmp.eq.s32.totalorder %s21, 1
      %p165 = por %p163, %p164
      %p166 = scmp.ne.s32.totalorder %s157, %s158
      %p167 = scmp.eq.s32.totalorder %s21, 0
      %p168 = por %p166, %p167
      %p169 = scmp.ne.s32.totalorder %s157, %s158
      %p170 = scmp.eq.s32.totalorder %s22, 1
      %p171 = por %p169, %p170
      %p173 = scmp.ne.s32.totalorder %s158, %s172
      %p174 = scmp.eq.s32.totalorder %s22, 0
      %p175 = por %p173, %p174
      %s177 = sadd.s32 %s176, 1
      %p180 = scmp.eq.s32.totalorder %s16, 1
      %p181 = scmp.ne.s32.totalorder %s176, %s178
      %p182 = scmp.eq.s32.totalorder %s16, 0
      %p183 = por %p181, %p182
      %p184 = scmp.ne.s32.totalorder %s176, %s178
      %p185 = scmp.eq.s32.totalorder %s21, 1
      %p186 = por %p184, %p185
      %p187 = scmp.ne.s32.totalorder %s178, %s179
      %p188 = scmp.eq.s32.totalorder %s21, 0
      %p189 = por %p187, %p188
      %p190 = scmp.ne.s32.totalorder %s178, %s179
      %p191 = scmp.eq.s32.totalorder %s22, 1
      %p192 = por %p190, %p191
      %p194 = scmp.ne.s32.totalorder %s179, %s193
      %p195 = scmp.eq.s32.totalorder %s22, 0
      %p196 = por %p194, %p195
      %s198 = sadd.s32 %s197, 1
      %p201 = scmp.eq.s32.totalorder %s16, 1
      %p202 = scmp.ne.s32.totalorder %s197, %s199
      %p203 = scmp.eq.s32.totalorder %s16, 0
      %p204 = por %p202, %p203
      %p205 = scmp.ne.s32.totalorder %s197, %s199
      %p206 = scmp.eq.s32.totalorder %s21, 1
      %p207 = por %p205, %p206
      %p208 = scmp.ne.s32.totalorder %s199, %s200
      %p209 = scmp.eq.s32.totalorder %s21, 0
      %p210 = por %p208, %p209
      %p211 = scmp.ne.s32.totalorder %s199, %s200
      %p212 = scmp.eq.s32.totalorder %s22, 1
      %p213 = por %p211, %p212
      %p215 = scmp.ne.s32.totalorder %s200, %s214
      %p216 = scmp.eq.s32.totalorder %s22, 0
      %p217 = por %p215, %p216
      %s218 = ssub.s32 %s16, %s23
      %p219 = scmp.eq.s32.totalorder %s218, 0
      %s221 = sadd.s32 %s220, 1
      %s222 = scalar_select %p219, %s220, %s221
      %p225 = pneg %p219
      %p226 = scmp.eq.s32.totalorder %s16, 1
      %p227 = por %p225, %p226
      %p228 = scmp.ne.s32.totalorder %s220, %s223
      %p229 = scmp.eq.s32.totalorder %s16, 0
      %p230 = por %p228, %p229
      %p231 = scmp.ne.s32.totalorder %s220, %s223
      %p232 = scmp.eq.s32.totalorder %s21, 1
      %p233 = por %p231, %p232
      %p234 = scmp.ne.s32.totalorder %s223, %s224
      %p235 = scmp.eq.s32.totalorder %s21, 0
      %p236 = por %p234, %p235
      %p237 = scmp.ne.s32.totalorder %s223, %s224
      %p238 = scmp.eq.s32.totalorder %s22, 1
      %p239 = por %p237, %p238
      %p241 = scmp.ne.s32.totalorder %s224, %s240
      %p242 = scmp.eq.s32.totalorder %s22, 0
      %p243 = por %p241, %p242
      %p244 = scmp.le.s32.totalorder 1, %s16
      %p245 = scmp.lt.s32.totalorder %s16, 3
      %p246 = pnand %p244, %p245
      %p247 = pneg %p246
      // Predicated region
      $region9: #{resblock_forward.1} parent=5 // pred_check
        _
      $region10: #{resblock_forward.1} parent=5 // pred_check_branch
        %249 = sbr.rel (%p246) target = $region12
      $region11: #{resblock_forward.1} parent=5 // pred_region
        %s250 = ssub.s32 %s16, 1
        // Predicated region
        $region13: #{resblock_forward.1} parent=11 // pred_check
          %p251 = pneg %p63
        $region14: #{resblock_forward.1} parent=11 // pred_check_branch
          %253 = sbr.rel (%p251) target = $region16
        $region15: #{resblock_forward.1} parent=11 // pred_region
          _
        $region16: #{resblock_forward.1} parent=11 // pred_fallthru
          _
        // Predicated region
        $region17: #{resblock_forward.1} parent=11 // pred_check
          %p254 = pneg %p84
        $region18: #{resblock_forward.1} parent=11 // pred_check_branch
          %256 = sbr.rel (%p254) target = $region20
        $region19: #{resblock_forward.1} parent=11 // pred_region
          _
        $region20: #{resblock_forward.1} parent=11 // pred_fallthru
          _
        // Predicated region
        $region21: #{resblock_forward.1} parent=11 // pred_check
          %p257 = pneg %p105
        $region22: #{resblock_forward.1} parent=11 // pred_check_branch
          %259 = sbr.rel (%p257) target = $region24
        $region23: #{resblock_forward.1} parent=11 // pred_region
          %s261 = ssub.s32 9216, 9216
          %262 = vsyncadd [#allocation4], %s261
          %s263 = sshll.u32 [#allocation3], 4
          %s264 = int_to_ptr.vmem [resolvable:$true] %s263
          %269 = dma.hbm_to_vmem [thread:$0]  %s3, 9216, %s264, [#allocation4], 64, 64, 4
        $region24: #{resblock_forward.1} parent=11 // pred_fallthru
          _
        // Predicated region
        $region25: #{resblock_forward.1} parent=11 // pred_check
          %p270 = pneg %p126
        $region26: #{resblock_forward.1} parent=11 // pred_check_branch
          %272 = sbr.rel (%p270) target = $region28
        $region27: #{resblock_forward.1} parent=11 // pred_region
          _
        $region28: #{resblock_forward.1} parent=11 // pred_fallthru
          _
        // Predicated region
        $region29: #{resblock_forward.1} parent=11 // pred_check
          %p273 = pneg %p147
        $region30: #{resblock_forward.1} parent=11 // pred_check_branch
          %275 = sbr.rel (%p273) target = $region32
        $region31: #{resblock_forward.1} parent=11 // pred_region
          _
        $region32: #{resblock_forward.1} parent=11 // pred_fallthru
          _
        // Predicated region
        $region33: #{resblock_forward.1} parent=11 // pred_check
          %p276 = pneg %p168
        $region34: #{resblock_forward.1} parent=11 // pred_check_branch
          %278 = sbr.rel (%p276) target = $region36
        $region35: #{resblock_forward.1} parent=11 // pred_region
          _
        $region36: #{resblock_forward.1} parent=11 // pred_fallthru
          _
        // Predicated region
        $region37: #{resblock_forward.1} parent=11 // pred_check
          %p279 = pneg %p189
        $region38: #{resblock_forward.1} parent=11 // pred_check_branch
          %281 = sbr.rel (%p279) target = $region40
        $region39: #{resblock_forward.1} parent=11 // pred_region
          _
        $region40: #{resblock_forward.1} parent=11 // pred_fallthru
          _
        // Predicated region
        $region41: #{resblock_forward.1} parent=11 // pred_check
          %p282 = pneg %p210
        $region42: #{resblock_forward.1} parent=11 // pred_check_branch
          %284 = sbr.rel (%p282) target = $region44
        $region43: #{resblock_forward.1} parent=11 // pred_region
          _
        $region44: #{resblock_forward.1} parent=11 // pred_fallthru
          _
      $region12: #{resblock_forward.1} parent=5 // pred_fallthru
        _
      %p285 = scmp.lt.s32.totalorder %s16, 2
      // Predicated region
      $region45: #{resblock_forward.1} parent=5 // pred_check
        %p286 = pneg %p285
      $region46: #{resblock_forward.1} parent=5 // pred_check_branch
        %288 = sbr.rel (%p286) target = $region48
      $region47: #{resblock_forward.1} parent=5 // pred_region
        // Predicated region
        $region49: #{resblock_forward.1} parent=47 // pred_check
          %p289 = pneg %p36
        $region50: #{resblock_forward.1} parent=47 // pred_check_branch
          %291 = sbr.rel (%p289) target = $region52
        $region51: #{resblock_forward.1} parent=47 // pred_region
          %p292 = scmp.lt.s32.totalorder %s16, 1
          %s293 = scalar_select %p292, %s16, 1
          %s294 = smul.addr %s293, 32
          %s295 = smul.addr %s294, 4
          %s296 = scalar_lea.vmem %s0, %s295
        $region52: #{resblock_forward.1} parent=47 // pred_fallthru
          _
      $region48: #{resblock_forward.1} parent=5 // pred_fallthru
        _
      %p297 = scmp.le.s32.totalorder 1, %s16
      %p298 = scmp.lt.s32.totalorder %s16, 3
      %p299 = pnand %p297, %p298
      %p300 = pneg %p299
      // Predicated region
      $region53: #{resblock_forward.1} parent=5 // pred_check
        _
      $region54: #{resblock_forward.1} parent=5 // pred_check_branch
        %302 = sbr.rel (%p299) target = $region56
      $region55: #{resblock_forward.1} parent=5 // pred_region
        %s303 = ssub.s32 %s16, 1
        // Predicated region
        $region57: #{resblock_forward.1} parent=55 // pred_check
          %p304 = pneg %p105
        $region58: #{resblock_forward.1} parent=55 // pred_check_branch
          %306 = sbr.rel (%p304) target = $region60
        $region59: #{resblock_forward.1} parent=55 // pred_region
          %307 = dma.done [#allocation4], 9216
        $region60: #{resblock_forward.1} parent=55 // pred_fallthru
          _
        %p308 = scmp.lt.s32.totalorder %s21, 1
        %s309 = scalar_select %p308, %s21, 1
        %s310 = smul.addr %s309, 32
        %s311 = smul.addr %s310, 4
        %s312 = scalar_lea.vmem %s0, %s311
        %p313 = pneg %p42
        %p314 = pneg %p39
        %p315 = pneg %p63
        %p316 = pneg %p60
        %p317 = pneg %p84
        %p318 = pneg %p81
        %p319 = pneg %p105
        %p320 = pneg %p102
        %p321 = pneg %p126
        %p322 = pneg %p123
        %p323 = pneg %p147
        %p324 = pneg %p144
        %p325 = pneg %p168
        %p326 = pneg %p165
        %p327 = pneg %p189
        %p328 = pneg %p186
        %p329 = pneg %p210
        %p330 = pneg %p207
        %p331 = pneg %p236
        %p332 = pneg %p233
        %p333 = scmp.lt.s32.totalorder %s21, 1
        %s334 = scalar_select %p333, %s21, 1
        %s335 = smul.addr %s334, 32
        %s336 = smul.addr %s335, 8
        %s337 = scalar_lea.vmem %s9, %s336
        %p338 = scmp.lt.s32.totalorder %s21, 1
        %s339 = scalar_select %p338, %s21, 1
        %s340 = smul.addr %s339, 32
        %s341 = smul.addr %s340, 4
        %s342 = scalar_lea.vmem %s0, %s341
        %p343 = scmp.lt.s32.totalorder %s21, 1
        %s344 = scalar_select %p343, %s21, 1
        %s345 = smul.addr %s344, 32
        %s346 = smul.addr %s345, 8
        %s347 = scalar_lea.vmem %s9, %s346
        %v349 = vld [vmem:[%s342] sm:$0xf]
        %v350 = vld [vmem:[%s342 + $0x4] sm:$0xf]
        %v351 = vld [vmem:[%s342 + $0x8] sm:$0xf]
        %v352 = vld [vmem:[%s342 + $0xc] sm:$0xf]
        %v353 = vld [vmem:[%s342 + $0x10] sm:$0xf]
        %v354 = vld [vmem:[%s342 + $0x14] sm:$0xf]
        %v355 = vld [vmem:[%s342 + $0x18] sm:$0xf]
        %v356 = vld [vmem:[%s342 + $0x1c] sm:$0xf]
        %v357 = vld [vmem:[%s342 + $0x20] sm:$0xf]
        %v358 = vld [vmem:[%s342 + $0x24] sm:$0xf]
        %v359 = vld [vmem:[%s342 + $0x28] sm:$0xf]
        %v360 = vld [vmem:[%s342 + $0x2c] sm:$0xf]
        %v361 = vld [vmem:[%s342 + $0x30] sm:$0xf]
        %v362 = vld [vmem:[%s342 + $0x34] sm:$0xf]
        %v363 = vld [vmem:[%s342 + $0x38] sm:$0xf]
        %v364 = vld [vmem:[%s342 + $0x3c] sm:$0xf]
        %v365 = vld [vmem:[%s342 + $0x40] sm:$0xf]
        %v366 = vld [vmem:[%s342 + $0x44] sm:$0xf]
        %v367 = vld [vmem:[%s342 + $0x48] sm:$0xf]
        %v368 = vld [vmem:[%s342 + $0x4c] sm:$0xf]
        %v369 = vld [vmem:[%s342 + $0x50] sm:$0xf]
        %v370 = vld [vmem:[%s342 + $0x54] sm:$0xf]
        %v371 = vld [vmem:[%s342 + $0x58] sm:$0xf]
        %v372 = vld [vmem:[%s342 + $0x5c] sm:$0xf]
        %v373 = vld [vmem:[%s342 + $0x60] sm:$0xf]
        %v374 = vld [vmem:[%s342 + $0x64] sm:$0xf]
        %v375 = vld [vmem:[%s342 + $0x68] sm:$0xf]
        %v376 = vld [vmem:[%s342 + $0x6c] sm:$0xf]
        %v377 = vld [vmem:[%s342 + $0x70] sm:$0xf]
        %v378 = vld [vmem:[%s342 + $0x74] sm:$0xf]
        %v379 = vld [vmem:[%s342 + $0x78] sm:$0xf]
        %v380 = vld [vmem:[%s342 + $0x7c] sm:$0xf]
        %v381 = vld [vmem:[%s1] sm:$0x3]
        %v382 = vld [vmem:[%s2] sm:$0x1]
        %v384 = vlaneseq
        %v385 = vshrl.u32 %v384, 7
        %v386 = vsub.s32 0, %v385
        %v387 = vrot.slane %v382, %v386
        %v421 = vunpack.c.l.b16 %v349
        %v422 = vunpack.c.l.b16 %v350
        %v423 = vunpack.c.l.b16 %v351
        %v424 = vunpack.c.l.b16 %v352
        %v425 = vunpack.c.l.b16 %v353
        %v426 = vunpack.c.l.b16 %v354
        %v427 = vunpack.c.l.b16 %v355
        %v428 = vunpack.c.l.b16 %v356
        %v429 = vunpack.c.l.b16 %v357
        %v430 = vunpack.c.l.b16 %v358
        %v431 = vunpack.c.l.b16 %v359
        %v432 = vunpack.c.l.b16 %v360
        %v433 = vunpack.c.l.b16 %v361
        %v434 = vunpack.c.l.b16 %v362
        %v435 = vunpack.c.l.b16 %v363
        %v436 = vunpack.c.l.b16 %v364
        %v437 = vunpack.c.l.b16 %v365
        %v438 = vunpack.c.l.b16 %v366
        %v439 = vunpack.c.l.b16 %v367
        %v440 = vunpack.c.l.b16 %v368
        %v441 = vunpack.c.l.b16 %v369
        %v442 = vunpack.c.l.b16 %v370
        %v443 = vunpack.c.l.b16 %v371
        %v444 = vunpack.c.l.b16 %v372
        %v445 = vunpack.c.l.b16 %v373
        %v446 = vunpack.c.l.b16 %v374
        %v447 = vunpack.c.l.b16 %v375
        %v448 = vunpack.c.l.b16 %v376
        %v449 = vunpack.c.l.b16 %v377
        %v450 = vunpack.c.l.b16 %v378
        %v451 = vunpack.c.l.b16 %v379
        %v452 = vunpack.c.l.b16 %v380
        %v453 = vpack.c.b16 %v422, %v421
        %v454 = vpack.c.b16 %v424, %v423
        %v455 = vpack.c.b16 %v426, %v425
        %v456 = vpack.c.b16 %v428, %v427
        %v457 = vpack.c.b16 %v430, %v429
        %v458 = vpack.c.b16 %v432, %v431
        %v459 = vpack.c.b16 %v434, %v433
        %v460 = vpack.c.b16 %v436, %v435
        %v461 = vpack.c.b16 %v438, %v437
        %v462 = vpack.c.b16 %v440, %v439
        %v463 = vpack.c.b16 %v442, %v441
        %v464 = vpack.c.b16 %v444, %v443
        %v465 = vpack.c.b16 %v446, %v445
        %v466 = vpack.c.b16 %v448, %v447
        %v467 = vpack.c.b16 %v450, %v449
        %v468 = vpack.c.b16 %v452, %v451
        %vm469 = vcmask 31744
        %v471 = vsel %vm469, %v453, 0
        %v474 = vsel %vm469, %v454, 0
        %v477 = vsel %vm469, %v455, 0
        %v480 = vsel %vm469, %v456, 0
        %v483 = vsel %vm469, %v457, 0
        %v486 = vsel %vm469, %v458, 0
        %v489 = vsel %vm469, %v459, 0
        %v492 = vsel %vm469, %v460, 0
        %v495 = vsel %vm469, %v461, 0
        %v498 = vsel %vm469, %v462, 0
        %v501 = vsel %vm469, %v463, 0
        %v504 = vsel %vm469, %v464, 0
        %v507 = vsel %vm469, %v465, 0
        %v510 = vsel %vm469, %v466, 0
        %v513 = vsel %vm469, %v467, 0
        %v516 = vsel %vm469, %v468, 0
        %vm518 = vcmask 1041408
        %v520 = vsel %vm518, %v381, 0
        %522 = vmatprep.subr.bf16.mxu0 0
        %523 = vmatpush1.bf16.msra.mxu0 %v520
        %524 = vmatprep.subr.bf16.mxu0 0
        %525 = vmatpush1.bf16.msra.mxu0 0
        %526 = vmatprep.subr.bf16.mxu0 0
        %527 = vmatpush1.bf16.msra.mxu0 0
        %528 = vmatprep.subr.bf16.mxu0 0
        %529 = vmatpush1.bf16.msra.mxu0 0
        %530 = vmatprep.subr.bf16.mxu0 0
        %531 = vmatpush1.bf16.msra.mxu0 0
        %532 = vmatprep.subr.bf16.mxu0 0
        %533 = vmatpush1.bf16.msra.mxu0 0
        %534 = vmatprep.subr.bf16.mxu0 0
        %535 = vmatpush1.bf16.msra.mxu0 0
        %536 = vmatprep.subr.bf16.mxu0 0
        %537 = vmatpush1.bf16.msra.mxu0 0
        %538 = vmatprep.subr.bf16.mxu0 0
        %539 = vmatpush1.bf16.msra.mxu0 0
        %540 = vmatprep.subr.bf16.mxu0 0
        %541 = vmatpush1.bf16.msra.mxu0 0
        %542 = vmatprep.subr.bf16.mxu0 0
        %543 = vmatpush1.bf16.msra.mxu0 0
        %544 = vmatprep.subr.bf16.mxu0 0
        %545 = vmatpush1.bf16.msra.mxu0 0
        %546 = vmatprep.subr.bf16.mxu0 0
        %547 = vmatpush1.bf16.msra.mxu0 0
        %548 = vmatprep.subr.bf16.mxu0 0
        %549 = vmatpush1.bf16.msra.mxu0 0
        %550 = vmatprep.subr.bf16.mxu0 0
        %551 = vmatpush1.bf16.msra.mxu0 0
        %552 = vmatprep.subr.bf16.mxu0 0
        %553 = vmatpush1.bf16.msra.mxu0 0
        %554 = vmatprep.mubr.bf16.mxu0 0
        %555 = vmatmul.mubr.bf16.gmra.mrb[0].mxu0 %v471
        %v556 = vpop.f32.mrb[0].mxu0
        %v557 = vadd.f32 %v387, %v556
        %v558 = vpop.f32.mrb[0].mxu0
        %v559 = vpop.f32.mrb[0].mxu0
        %v560 = vadd.f32 %v387, %v559
        %v561 = vpop.f32.mrb[0].mxu0
        %562 = vmatprep.mubr.bf16.mxu0 0
        %563 = vmatmul.mubr.bf16.gmra.mrb[0].mxu0 %v474
        %v564 = vpop.f32.mrb[0].mxu0
        %v565 = vadd.f32 %v387, %v564
        %v566 = vpop.f32.mrb[0].mxu0
        %v567 = vpop.f32.mrb[0].mxu0
        %v568 = vadd.f32 %v387, %v567
        %v569 = vpop.f32.mrb[0].mxu0
        %570 = vmatprep.mubr.bf16.mxu0 0
        %571 = vmatmul.mubr.bf16.gmra.mrb[0].mxu0 %v477
        %v572 = vpop.f32.mrb[0].mxu0
        %v573 = vadd.f32 %v387, %v572
        %v574 = vpop.f32.mrb[0].mxu0
        %v575 = vpop.f32.mrb[0].mxu0
        %v576 = vadd.f32 %v387, %v575
        %v577 = vpop.f32.mrb[0].mxu0
        %578 = vmatprep.mubr.bf16.mxu0 0
        %579 = vmatmul.mubr.bf16.gmra.mrb[0].mxu0 %v480
        %v580 = vpop.f32.mrb[0].mxu0
        %v581 = vadd.f32 %v387, %v580
        %v582 = vpop.f32.mrb[0].mxu0
        %v583 = vpop.f32.mrb[0].mxu0
        %v584 = vadd.f32 %v387, %v583
        %v585 = vpop.f32.mrb[0].mxu0
        %586 = vmatprep.mubr.bf16.mxu0 0
        %587 = vmatmul.mubr.bf16.gmra.mrb[0].mxu0 %v483
        %v588 = vpop.f32.mrb[0].mxu0
        %v589 = vadd.f32 %v387, %v588
        %v590 = vpop.f32.mrb[0].mxu0
        %v591 = vpop.f32.mrb[0].mxu0
        %v592 = vadd.f32 %v387, %v591
        %v593 = vpop.f32.mrb[0].mxu0
        %594 = vmatprep.mubr.bf16.mxu0 0
        %595 = vmatmul.mubr.bf16.gmra.mrb[0].mxu0 %v486
        %v596 = vpop.f32.mrb[0].mxu0
        %v597 = vadd.f32 %v387, %v596
        %v598 = vpop.f32.mrb[0].mxu0
        %v599 = vpop.f32.mrb[0].mxu0
        %v600 = vadd.f32 %v387, %v599
        %v601 = vpop.f32.mrb[0].mxu0
        %602 = vmatprep.mubr.bf16.mxu0 0
        %603 = vmatmul.mubr.bf16.gmra.mrb[0].mxu0 %v489
        %v604 = vpop.f32.mrb[0].mxu0
        %v605 = vadd.f32 %v387, %v604
        %v606 = vpop.f32.mrb[0].mxu0
        %v607 = vpop.f32.mrb[0].mxu0
        %v608 = vadd.f32 %v387, %v607
        %v609 = vpop.f32.mrb[0].mxu0
        %610 = vmatprep.mubr.bf16.mxu0 0
        %611 = vmatmul.mubr.bf16.gmra.mrb[0].mxu0 %v492
        %v612 = vpop.f32.mrb[0].mxu0
        %v613 = vadd.f32 %v387, %v612
        %v614 = vpop.f32.mrb[0].mxu0
        %v615 = vpop.f32.mrb[0].mxu0
        %v616 = vadd.f32 %v387, %v615
        %v617 = vpop.f32.mrb[0].mxu0
        %618 = vmatprep.mubr.bf16.mxu0 0
        %619 = vmatmul.mubr.bf16.gmra.mrb[0].mxu0 %v495
        %v620 = vpop.f32.mrb[0].mxu0
        %v621 = vadd.f32 %v387, %v620
        %v622 = vpop.f32.mrb[0].mxu0
        %v623 = vpop.f32.mrb[0].mxu0
        %v624 = vadd.f32 %v387, %v623
        %v625 = vpop.f32.mrb[0].mxu0
        %626 = vmatprep.mubr.bf16.mxu0 0
        %627 = vmatmul.mubr.bf16.gmra.mrb[0].mxu0 %v498
        %v628 = vpop.f32.mrb[0].mxu0
        %v629 = vadd.f32 %v387, %v628
        %v630 = vpop.f32.mrb[0].mxu0
        %v631 = vpop.f32.mrb[0].mxu0
        %v632 = vadd.f32 %v387, %v631
        %v633 = vpop.f32.mrb[0].mxu0
        %634 = vmatprep.mubr.bf16.mxu0 0
        %635 = vmatmul.mubr.bf16.gmra.mrb[0].mxu0 %v501
        %v636 = vpop.f32.mrb[0].mxu0
        %v637 = vadd.f32 %v387, %v636
        %v638 = vpop.f32.mrb[0].mxu0
        %v639 = vpop.f32.mrb[0].mxu0
        %v640 = vadd.f32 %v387, %v639
        %v641 = vpop.f32.mrb[0].mxu0
        %642 = vmatprep.mubr.bf16.mxu0 0
        %643 = vmatmul.mubr.bf16.gmra.mrb[0].mxu0 %v504
        %v644 = vpop.f32.mrb[0].mxu0
        %v645 = vadd.f32 %v387, %v644
        %v646 = vpop.f32.mrb[0].mxu0
        %v647 = vpop.f32.mrb[0].mxu0
        %v648 = vadd.f32 %v387, %v647
        %v649 = vpop.f32.mrb[0].mxu0
        %650 = vmatprep.mubr.bf16.mxu0 0
        %651 = vmatmul.mubr.bf16.gmra.mrb[0].mxu0 %v507
        %v652 = vpop.f32.mrb[0].mxu0
        %v653 = vadd.f32 %v387, %v652
        %v654 = vpop.f32.mrb[0].mxu0
        %v655 = vpop.f32.mrb[0].mxu0
        %v656 = vadd.f32 %v387, %v655
        %v657 = vpop.f32.mrb[0].mxu0
        %658 = vmatprep.mubr.bf16.mxu0 0
        %659 = vmatmul.mubr.bf16.gmra.mrb[0].mxu0 %v510
        %v660 = vpop.f32.mrb[0].mxu0
        %v661 = vadd.f32 %v387, %v660
        %v662 = vpop.f32.mrb[0].mxu0
        %v663 = vpop.f32.mrb[0].mxu0
        %v664 = vadd.f32 %v387, %v663
        %v665 = vpop.f32.mrb[0].mxu0
        %666 = vmatprep.mubr.bf16.mxu0 0
        %667 = vmatmul.mubr.bf16.gmra.mrb[0].mxu0 %v513
        %v668 = vpop.f32.mrb[0].mxu0
        %v669 = vadd.f32 %v387, %v668
        %v670 = vpop.f32.mrb[0].mxu0
        %v671 = vpop.f32.mrb[0].mxu0
        %v672 = vadd.f32 %v387, %v671
        %v673 = vpop.f32.mrb[0].mxu0
        %674 = vmatprep.mubr.bf16.mxu0 0
        %675 = vmatmul.mubr.bf16.gmra.mrb[0].mxu0 %v516
        %v676 = vpop.f32.mrb[0].mxu0
        %v677 = vadd.f32 %v387, %v676
        %v678 = vpop.f32.mrb[0].mxu0
        %v679 = vpop.f32.mrb[0].mxu0
        %v680 = vadd.f32 %v387, %v679
        %v681 = vpop.f32.mrb[0].mxu0
        %682 = vdwg.mxu0
        %v683 = vmax.f32 %v557, 0.0
        %v684 = vmax.f32 %v560, 0.0
        %v685 = vmax.f32 %v565, 0.0
        %v686 = vmax.f32 %v568, 0.0
        %v687 = vmax.f32 %v573, 0.0
        %v688 = vmax.f32 %v576, 0.0
        %v689 = vmax.f32 %v581, 0.0
        %v690 = vmax.f32 %v584, 0.0
        %v691 = vmax.f32 %v589, 0.0
        %v692 = vmax.f32 %v592, 0.0
        %v693 = vmax.f32 %v597, 0.0
        %v694 = vmax.f32 %v600, 0.0
        %v695 = vmax.f32 %v605, 0.0
        %v696 = vmax.f32 %v608, 0.0
        %v697 = vmax.f32 %v613, 0.0
        %v698 = vmax.f32 %v616, 0.0
        %v699 = vmax.f32 %v621, 0.0
        %v700 = vmax.f32 %v624, 0.0
        %v701 = vmax.f32 %v629, 0.0
        %v702 = vmax.f32 %v632, 0.0
        %v703 = vmax.f32 %v637, 0.0
        %v704 = vmax.f32 %v640, 0.0
        %v705 = vmax.f32 %v645, 0.0
        %v706 = vmax.f32 %v648, 0.0
        %v707 = vmax.f32 %v653, 0.0
        %v708 = vmax.f32 %v656, 0.0
        %v709 = vmax.f32 %v661, 0.0
        %v710 = vmax.f32 %v664, 0.0
        %v711 = vmax.f32 %v669, 0.0
        %v712 = vmax.f32 %v672, 0.0
        %v713 = vmax.f32 %v677, 0.0
        %v714 = vmax.f32 %v680, 0.0
        %715 = vst [vmem:[#allocation2] sm:$0xff] 0.0
        %716 = vst [vmem:[#allocation2 + $0x8] sm:$0xff] 0.0
        %717 = vst [vmem:[#allocation2 + $0x10] sm:$0xff] 0.0
        %718 = vst [vmem:[#allocation2 + $0x18] sm:$0xff] 0.0
        %719 = vst [vmem:[#allocation2 + $0x20] sm:$0xff] 0.0
        %720 = vst [vmem:[#allocation2 + $0x28] sm:$0xff] 0.0
        %721 = vst [vmem:[#allocation2 + $0x30] sm:$0xff] 0.0
        %722 = vst [vmem:[#allocation2 + $0x38] sm:$0xff] 0.0
        %723 = vst [vmem:[#allocation2 + $0x40] sm:$0xff] 0.0
        %724 = vst [vmem:[#allocation2 + $0x48] sm:$0xff] 0.0
        %725 = vst [vmem:[#allocation2 + $0x50] sm:$0xff] 0.0
        %726 = vst [vmem:[#allocation2 + $0x58] sm:$0xff] 0.0
        %727 = vst [vmem:[#allocation2 + $0x60] sm:$0xff] 0.0
        %728 = vst [vmem:[#allocation2 + $0x68] sm:$0xff] 0.0
        %729 = vst [vmem:[#allocation2 + $0x70] sm:$0xff] 0.0
        %730 = vst [vmem:[#allocation2 + $0x78] sm:$0xff] 0.0
        %731 = vst [vmem:[#allocation2 + $0x80] sm:$0xff] 0.0
        %732 = vst [vmem:[#allocation2 + $0x88] sm:$0xff] 0.0
        %733 = vst [vmem:[#allocation2 + $0x90] sm:$0xff] 0.0
        %734 = vst [vmem:[#allocation2 + $0x98] sm:$0xff] 0.0
        %735 = vst [vmem:[#allocation2 + $0xa0] sm:$0xff] 0.0
        %736 = vst [vmem:[#allocation2 + $0xa8] sm:$0xff] 0.0
        %737 = vst [vmem:[#allocation2 + $0xb0] sm:$0xff] 0.0
        %738 = vst [vmem:[#allocation2 + $0xb8] sm:$0xff] 0.0
        %739 = vst [vmem:[#allocation2 + $0xc0] sm:$0xff] 0.0
        %740 = vst [vmem:[#allocation2 + $0xc8] sm:$0xff] 0.0
        %741 = vst [vmem:[#allocation2 + $0xd0] sm:$0xff] 0.0
        %742 = vst [vmem:[#allocation2 + $0xd8] sm:$0xff] 0.0
        %743 = vst [vmem:[#allocation2 + $0xe0] sm:$0xff] 0.0
        %744 = vst [vmem:[#allocation2 + $0xe8] sm:$0xff] 0.0
        %745 = vst [vmem:[#allocation2 + $0xf0] sm:$0xff] 0.0
        %746 = vst [vmem:[#allocation2 + $0xf8] sm:$0xff] 0.0
        %747 = vst [vmem:[#allocation2 + $0x100] sm:$0xff] 0.0
        %748 = vst [vmem:[#allocation2 + $0x108] sm:$0xff] 0.0
        %749 = vst [vmem:[#allocation2 + $0x110] sm:$0xff] 0.0
        %750 = vst [vmem:[#allocation2 + $0x118] sm:$0xff] 0.0
        %751 = vst [vmem:[#allocation2 + $0x120] sm:$0xff] 0.0
        %752 = vst [vmem:[#allocation2 + $0x128] sm:$0xff] 0.0
        %753 = vst [vmem:[#allocation2 + $0x130] sm:$0xff] 0.0
        %754 = vst [vmem:[#allocation2 + $0x138] sm:$0xff] 0.0
        %755 = vst [vmem:[#allocation2 + $0x140] sm:$0xff] 0.0
        %756 = vst [vmem:[#allocation2 + $0x148] sm:$0xff] 0.0
        %757 = vst [vmem:[#allocation2 + $0x150] sm:$0xff] 0.0
        %758 = vst [vmem:[#allocation2 + $0x158] sm:$0xff] 0.0
        %759 = vst [vmem:[#allocation2 + $0x160] sm:$0xff] 0.0
        %760 = vst [vmem:[#allocation2 + $0x168] sm:$0xff] 0.0
        %761 = vst [vmem:[#allocation2 + $0x170] sm:$0xff] 0.0
        %762 = vst [vmem:[#allocation2 + $0x178] sm:$0xff] 0.0
        %763 = vst [vmem:[#allocation2 + $0x180] sm:$0xff] 0.0
        %764 = vst [vmem:[#allocation2 + $0x188] sm:$0xff] 0.0
        %765 = vst [vmem:[#allocation2 + $0x190] sm:$0xff] 0.0
        %766 = vst [vmem:[#allocation2 + $0x198] sm:$0xff] 0.0
        %767 = vst [vmem:[#allocation2 + $0x1a0] sm:$0xff] 0.0
        %768 = vst [vmem:[#allocation2 + $0x1a8] sm:$0xff] 0.0
        %769 = vst [vmem:[#allocation2 + $0x1b0] sm:$0xff] 0.0
        %770 = vst [vmem:[#allocation2 + $0x1b8] sm:$0xff] 0.0
        %771 = vst [vmem:[#allocation2 + $0x1c0] sm:$0xff] 0.0
        %772 = vst [vmem:[#allocation2 + $0x1c8] sm:$0xff] 0.0
        %773 = vst [vmem:[#allocation2 + $0x1d0] sm:$0xff] 0.0
        %774 = vst [vmem:[#allocation2 + $0x1d8] sm:$0xff] 0.0
        %775 = vst [vmem:[#allocation2 + $0x1e0] sm:$0xff] 0.0
        %776 = vst [vmem:[#allocation2 + $0x1e8] sm:$0xff] 0.0
        %777 = vst [vmem:[#allocation2 + $0x1f0] sm:$0xff] 0.0
        %778 = vst [vmem:[#allocation2 + $0x1f8] sm:$0xff] 0.0
        %779 = vst [vmem:[#allocation2 + $0x200] sm:$0xff] 0.0
        %780 = vst [vmem:[#allocation2 + $0x208] sm:$0xff] 0.0
        %781 = vst [vmem:[#allocation2 + $0x210] sm:$0xff] 0.0
        %782 = vst [vmem:[#allocation2 + $0x218] sm:$0xff] 0.0
        %783 = vst [vmem:[#allocation2 + $0x220] sm:$0xff] 0.0
        %784 = vst [vmem:[#allocation2 + $0x228] sm:$0xff] 0.0
        %785 = vst [vmem:[#allocation2 + $0x230] sm:$0xff] 0.0
        %786 = vst [vmem:[#allocation2 + $0x238] sm:$0xff] 0.0
        %s787 = scalar_lea.vmem [#allocation2], 32
        %788 = vst [vmem:[%s787 + $0x8] sm:$0xff] %v683
        %789 = vst [vmem:[%s787 + $0x10] sm:$0xff] %v684
        %790 = vst [vmem:[%s787 + $0x28] sm:$0xff] %v685
        %791 = vst [vmem:[%s787 + $0x30] sm:$0xff] %v686
        %792 = vst [vmem:[%s787 + $0x48] sm:$0xff] %v687
        %793 = vst [vmem:[%s787 + $0x50] sm:$0xff] %v688
        %794 = vst [vmem:[%s787 + $0x68] sm:$0xff] %v689
        %795 = vst [vmem:[%s787 + $0x70] sm:$0xff] %v690
        %796 = vst [vmem:[%s787 + $0x88] sm:$0xff] %v691
        %797 = vst [vmem:[%s787 + $0x90] sm:$0xff] %v692
        %798 = vst [vmem:[%s787 + $0xa8] sm:$0xff] %v693
        %799 = vst [vmem:[%s787 + $0xb0] sm:$0xff] %v694
        %800 = vst [vmem:[%s787 + $0xc8] sm:$0xff] %v695
        %801 = vst [vmem:[%s787 + $0xd0] sm:$0xff] %v696
        %802 = vst [vmem:[%s787 + $0xe8] sm:$0xff] %v697
        %803 = vst [vmem:[%s787 + $0xf0] sm:$0xff] %v698
        %804 = vst [vmem:[%s787 + $0x108] sm:$0xff] %v699
        %805 = vst [vmem:[%s787 + $0x110] sm:$0xff] %v700
        %806 = vst [vmem:[%s787 + $0x128] sm:$0xff] %v701
        %807 = vst [vmem:[%s787 + $0x130] sm:$0xff] %v702
        %808 = vst [vmem:[%s787 + $0x148] sm:$0xff] %v703
        %809 = vst [vmem:[%s787 + $0x150] sm:$0xff] %v704
        %810 = vst [vmem:[%s787 + $0x168] sm:$0xff] %v705
        %811 = vst [vmem:[%s787 + $0x170] sm:$0xff] %v706
        %812 = vst [vmem:[%s787 + $0x188] sm:$0xff] %v707
        %813 = vst [vmem:[%s787 + $0x190] sm:$0xff] %v708
        %814 = vst [vmem:[%s787 + $0x1a8] sm:$0xff] %v709
        %815 = vst [vmem:[%s787 + $0x1b0] sm:$0xff] %v710
        %816 = vst [vmem:[%s787 + $0x1c8] sm:$0xff] %v711
        %817 = vst [vmem:[%s787 + $0x1d0] sm:$0xff] %v712
        %818 = vst [vmem:[%s787 + $0x1e8] sm:$0xff] %v713
        %819 = vst [vmem:[%s787 + $0x1f0] sm:$0xff] %v714
        %v820 = vld [vmem:[#allocation2 + $0x7] sm:$0xff]
        %v821 = vld [vmem:[#allocation2 + $0xf] sm:$0xff]
        %v822 = vld [vmem:[#allocation2 + $0x27] sm:$0xff]
        %v823 = vld [vmem:[#allocation2 + $0x2f] sm:$0xff]
        %v824 = vld [vmem:[#allocation2 + $0x47] sm:$0xff]
        %v825 = vld [vmem:[#allocation2 + $0x4f] sm:$0xff]
        %v826 = vld [vmem:[#allocation2 + $0x67] sm:$0xff]
        %v827 = vld [vmem:[#allocation2 + $0x6f] sm:$0xff]
        %v828 = vld [vmem:[#allocation2 + $0x87] sm:$0xff]
        %v829 = vld [vmem:[#allocation2 + $0x8f] sm:$0xff]
        %v830 = vld [vmem:[#allocation2 + $0xa7] sm:$0xff]
        %v831 = vld [vmem:[#allocation2 + $0xaf] sm:$0xff]
        %v832 = vld [vmem:[#allocation2 + $0xc7] sm:$0xff]
        %v833 = vld [vmem:[#allocation2 + $0xcf] sm:$0xff]
        %v834 = vld [vmem:[#allocation2 + $0xe7] sm:$0xff]
        %v835 = vld [vmem:[#allocation2 + $0xef] sm:$0xff]
        %v836 = vld [vmem:[#allocation2 + $0x107] sm:$0xff]
        %v837 = vld [vmem:[#allocation2 + $0x10f] sm:$0xff]
        %v838 = vld [vmem:[#allocation2 + $0x127] sm:$0xff]
        %v839 = vld [vmem:[#allocation2 + $0x12f] sm:$0xff]
        %v840 = vld [vmem:[#allocation2 + $0x147] sm:$0xff]
        %v841 = vld [vmem:[#allocation2 + $0x14f] sm:$0xff]
        %v842 = vld [vmem:[#allocation2 + $0x167] sm:$0xff]
        %v843 = vld [vmem:[#allocation2 + $0x16f] sm:$0xff]
        %v844 = vld [vmem:[#allocation2 + $0x187] sm:$0xff]
        %v845 = vld [vmem:[#allocation2 + $0x18f] sm:$0xff]
        %v846 = vld [vmem:[#allocation2 + $0x1a7] sm:$0xff]
        %v847 = vld [vmem:[#allocation2 + $0x1af] sm:$0xff]
        %v848 = vld [vmem:[#allocation2 + $0x1c7] sm:$0xff]
        %v849 = vld [vmem:[#allocation2 + $0x1cf] sm:$0xff]
        %v850 = vld [vmem:[#allocation2 + $0x1e7] sm:$0xff]
        %v851 = vld [vmem:[#allocation2 + $0x1ef] sm:$0xff]
        %v852 = vpack.c.bf16 %v821, %v820
        %v853 = vpack.c.bf16 %v823, %v822
        %v854 = vpack.c.bf16 %v825, %v824
        %v855 = vpack.c.bf16 %v827, %v826
        %v856 = vpack.c.bf16 %v829, %v828
        %v857 = vpack.c.bf16 %v831, %v830
        %v858 = vpack.c.bf16 %v833, %v832
        %v859 = vpack.c.bf16 %v835, %v834
        %v860 = vpack.c.bf16 %v837, %v836
        %v861 = vpack.c.bf16 %v839, %v838
        %v862 = vpack.c.bf16 %v841, %v840
        %v863 = vpack.c.bf16 %v843, %v842
        %v864 = vpack.c.bf16 %v845, %v844
        %v865 = vpack.c.bf16 %v847, %v846
        %v866 = vpack.c.bf16 %v849, %v848
        %v867 = vpack.c.bf16 %v851, %v850
        %v868 = vld [vmem:[#allocation3] sm:$0xf]
        %v869 = vld [vmem:[#allocation3 + $0x4] sm:$0xf]
        %v870 = vld [vmem:[#allocation3 + $0x8] sm:$0xf]
        %v871 = vld [vmem:[#allocation3 + $0xc] sm:$0xf]
        %v872 = vld [vmem:[#allocation3 + $0x10] sm:$0xf]
        %v873 = vld [vmem:[#allocation3 + $0x14] sm:$0xf]
        %v874 = vld [vmem:[#allocation3 + $0x18] sm:$0xf]
        %v875 = vld [vmem:[#allocation3 + $0x1c] sm:$0xf]
        %v876 = vld [vmem:[#allocation3 + $0x20] sm:$0xf]
        %v877 = vld [vmem:[#allocation3 + $0x24] sm:$0xf]
        %v878 = vld [vmem:[#allocation3 + $0x28] sm:$0xf]
        %v879 = vld [vmem:[#allocation3 + $0x2c] sm:$0xf]
        %v880 = vld [vmem:[#allocation3 + $0x30] sm:$0xf]
        %v881 = vld [vmem:[#allocation3 + $0x34] sm:$0xf]
        %v882 = vld [vmem:[#allocation3 + $0x38] sm:$0xf]
        %v883 = vld [vmem:[#allocation3 + $0x3c] sm:$0xf]
        %v884 = vld [vmem:[#allocation2 + $0x8] sm:$0xff]
        %v885 = vld [vmem:[#allocation2 + $0x10] sm:$0xff]
        %v886 = vld [vmem:[#allocation2 + $0x28] sm:$0xff]
        %v887 = vld [vmem:[#allocation2 + $0x30] sm:$0xff]
        %v888 = vld [vmem:[#allocation2 + $0x48] sm:$0xff]
        %v889 = vld [vmem:[#allocation2 + $0x50] sm:$0xff]
        %v890 = vld [vmem:[#allocation2 + $0x68] sm:$0xff]
        %v891 = vld [vmem:[#allocation2 + $0x70] sm:$0xff]
        %v892 = vld [vmem:[#allocation2 + $0x88] sm:$0xff]
        %v893 = vld [vmem:[#allocation2 + $0x90] sm:$0xff]
        %v894 = vld [vmem:[#allocation2 + $0xa8] sm:$0xff]
        %v895 = vld [vmem:[#allocation2 + $0xb0] sm:$0xff]
        %v896 = vld [vmem:[#allocation2 + $0xc8] sm:$0xff]
        %v897 = vld [vmem:[#allocation2 + $0xd0] sm:$0xff]
        %v898 = vld [vmem:[#allocation2 + $0xe8] sm:$0xff]
        %v899 = vld [vmem:[#allocation2 + $0xf0] sm:$0xff]
        %v900 = vld [vmem:[#allocation2 + $0x108] sm:$0xff]
        %v901 = vld [vmem:[#allocation2 + $0x110] sm:$0xff]
        %v902 = vld [vmem:[#allocation2 + $0x128] sm:$0xff]
        %v903 = vld [vmem:[#allocation2 + $0x130] sm:$0xff]
        %v904 = vld [vmem:[#allocation2 + $0x148] sm:$0xff]
        %v905 = vld [vmem:[#allocation2 + $0x150] sm:$0xff]
        %v906 = vld [vmem:[#allocation2 + $0x168] sm:$0xff]
        %v907 = vld [vmem:[#allocation2 + $0x170] sm:$0xff]
        %v908 = vld [vmem:[#allocation2 + $0x188] sm:$0xff]
        %v909 = vld [vmem:[#allocation2 + $0x190] sm:$0xff]
        %v910 = vld [vmem:[#allocation2 + $0x1a8] sm:$0xff]
        %v911 = vld [vmem:[#allocation2 + $0x1b0] sm:$0xff]
        %v912 = vld [vmem:[#allocation2 + $0x1c8] sm:$0xff]
        %v913 = vld [vmem:[#allocation2 + $0x1d0] sm:$0xff]
        %v914 = vld [vmem:[#allocation2 + $0x1e8] sm:$0xff]
        %v915 = vld [vmem:[#allocation2 + $0x1f0] sm:$0xff]
        %v916 = vpack.c.bf16 %v885, %v884
        %v917 = vpack.c.bf16 %v887, %v886
        %v918 = vpack.c.bf16 %v889, %v888
        %v919 = vpack.c.bf16 %v891, %v890
        %v920 = vpack.c.bf16 %v893, %v892
        %v921 = vpack.c.bf16 %v895, %v894
        %v922 = vpack.c.bf16 %v897, %v896
        %v923 = vpack.c.bf16 %v899, %v898
        %v924 = vpack.c.bf16 %v901, %v900
        %v925 = vpack.c.bf16 %v903, %v902
        %v926 = vpack.c.bf16 %v905, %v904
        %v927 = vpack.c.bf16 %v907, %v906
        %v928 = vpack.c.bf16 %v909, %v908
        %v929 = vpack.c.bf16 %v911, %v910
        %v930 = vpack.c.bf16 %v913, %v912
        %v931 = vpack.c.bf16 %v915, %v914
        %s932 = scalar_lea.vmem [#allocation3], 64
        %v933 = vld [vmem:[%s932] sm:$0xf]
        %v934 = vld [vmem:[%s932 + $0x4] sm:$0xf]
        %v935 = vld [vmem:[%s932 + $0x8] sm:$0xf]
        %v936 = vld [vmem:[%s932 + $0xc] sm:$0xf]
        %v937 = vld [vmem:[%s932 + $0x10] sm:$0xf]
        %v938 = vld [vmem:[%s932 + $0x14] sm:$0xf]
        %v939 = vld [vmem:[%s932 + $0x18] sm:$0xf]
        %v940 = vld [vmem:[%s932 + $0x1c] sm:$0xf]
        %v941 = vld [vmem:[%s932 + $0x20] sm:$0xf]
        %v942 = vld [vmem:[%s932 + $0x24] sm:$0xf]
        %v943 = vld [vmem:[%s932 + $0x28] sm:$0xf]
        %v944 = vld [vmem:[%s932 + $0x2c] sm:$0xf]
        %v945 = vld [vmem:[%s932 + $0x30] sm:$0xf]
        %v946 = vld [vmem:[%s932 + $0x34] sm:$0xf]
        %v947 = vld [vmem:[%s932 + $0x38] sm:$0xf]
        %v948 = vld [vmem:[%s932 + $0x3c] sm:$0xf]
        %v965 = vunpack.c.l.b16 %v933
        %v966 = vunpack.c.l.b16 %v934
        %v967 = vunpack.c.l.b16 %v935
        %v968 = vunpack.c.l.b16 %v936
        %v969 = vunpack.c.l.b16 %v937
        %v970 = vunpack.c.l.b16 %v938
        %v971 = vunpack.c.l.b16 %v939
        %v972 = vunpack.c.l.b16 %v940
        %v973 = vunpack.c.l.b16 %v941
        %v974 = vunpack.c.l.b16 %v942
        %v975 = vunpack.c.l.b16 %v943
        %v976 = vunpack.c.l.b16 %v944
        %v977 = vunpack.c.l.b16 %v945
        %v978 = vunpack.c.l.b16 %v946
        %v979 = vunpack.c.l.b16 %v947
        %v980 = vunpack.c.l.b16 %v948
        %v981 = vpack.c.b16 %v966, %v965
        %v982 = vpack.c.b16 %v968, %v967
        %v983 = vpack.c.b16 %v970, %v969
        %v984 = vpack.c.b16 %v972, %v971
        %v985 = vpack.c.b16 %v974, %v973
        %v986 = vpack.c.b16 %v976, %v975
        %v987 = vpack.c.b16 %v978, %v977
        %v988 = vpack.c.b16 %v980, %v979
        %997 = vmatprep.subr.bf16.mxu0 0
        %998 = vmatpush1.bf16.msra.mxu0 %v981
        %999 = vmatprep.subr.bf16.mxu0 0
        %1000 = vmatpush1.bf16.msra.mxu0 %v982
        %1001 = vmatprep.subr.bf16.mxu0 0
        %1002 = vmatpush1.bf16.msra.mxu0 %v983
        %1003 = vmatprep.subr.bf16.mxu0 0
        %1004 = vmatpush1.bf16.msra.mxu0 %v984
        %1005 = vmatprep.subr.bf16.mxu0 0
        %1006 = vmatpush1.bf16.msra.mxu0 %v985
        %1007 = vmatprep.subr.bf16.mxu0 0
        %1008 = vmatpush1.bf16.msra.mxu0 %v986
        %1009 = vmatprep.subr.bf16.mxu0 0
        %1010 = vmatpush1.bf16.msra.mxu0 %v987
        %1011 = vmatprep.subr.bf16.mxu0 0
        %1012 = vmatpush1.bf16.msra.mxu0 %v988
        %1013 = vmatprep.subr.bf16.mxu0 0
        %1014 = vmatpush1.bf16.msra.mxu0 0
        %1015 = vmatprep.subr.bf16.mxu0 0
        %1016 = vmatpush1.bf16.msra.mxu0 0
        %1017 = vmatprep.subr.bf16.mxu0 0
        %1018 = vmatpush1.bf16.msra.mxu0 0
        %1019 = vmatprep.subr.bf16.mxu0 0
        %1020 = vmatpush1.bf16.msra.mxu0 0
        %1021 = vmatprep.subr.bf16.mxu0 0
        %1022 = vmatpush1.bf16.msra.mxu0 0
        %1023 = vmatprep.subr.bf16.mxu0 0
        %1024 = vmatpush1.bf16.msra.mxu0 0
        %1025 = vmatprep.subr.bf16.mxu0 0
        %1026 = vmatpush1.bf16.msra.mxu0 0
        %1027 = vmatprep.subr.bf16.mxu0 0
        %1028 = vmatpush1.bf16.msra.mxu0 0
        %1029 = vmatprep.mubr.bf16.mxu0 0
        %1030 = vmatmul.mubr.bf16.gmra.mrb[0].mxu0 %v916
        %v1031 = vpop.f32.mrb[0].mxu0
        %v1032 = vadd.f32 0.0, %v1031
        %v1033 = vpop.f32.mrb[0].mxu0
        %v1034 = vpop.f32.mrb[0].mxu0
        %v1035 = vadd.f32 0.0, %v1034
        %v1036 = vpop.f32.mrb[0].mxu0
        %1037 = vmatprep.mubr.bf16.mxu0 0
        %1038 = vmatmul.mubr.bf16.gmra.mrb[0].mxu0 %v917
        %v1039 = vpop.f32.mrb[0].mxu0
        %v1040 = vadd.f32 0.0, %v1039
        %v1041 = vpop.f32.mrb[0].mxu0
        %v1042 = vpop.f32.mrb[0].mxu0
        %v1043 = vadd.f32 0.0, %v1042
        %v1044 = vpop.f32.mrb[0].mxu0
        %1045 = vmatprep.mubr.bf16.mxu0 0
        %1046 = vmatmul.mubr.bf16.gmra.mrb[0].mxu0 %v918
        %v1047 = vpop.f32.mrb[0].mxu0
        %v1048 = vadd.f32 0.0, %v1047
        %v1049 = vpop.f32.mrb[0].mxu0
        %v1050 = vpop.f32.mrb[0].mxu0
        %v1051 = vadd.f32 0.0, %v1050
        %v1052 = vpop.f32.mrb[0].mxu0
        %1053 = vmatprep.mubr.bf16.mxu0 0
        %1054 = vmatmul.mubr.bf16.gmra.mrb[0].mxu0 %v919
        %v1055 = vpop.f32.mrb[0].mxu0
        %v1056 = vadd.f32 0.0, %v1055
        %v1057 = vpop.f32.mrb[0].mxu0
        %v1058 = vpop.f32.mrb[0].mxu0
        %v1059 = vadd.f32 0.0, %v1058
        %v1060 = vpop.f32.mrb[0].mxu0
        %1061 = vmatprep.mubr.bf16.mxu0 0
        %1062 = vmatmul.mubr.bf16.gmra.mrb[0].mxu0 %v920
        %v1063 = vpop.f32.mrb[0].mxu0
        %v1064 = vadd.f32 0.0, %v1063
        %v1065 = vpop.f32.mrb[0].mxu0
        %v1066 = vpop.f32.mrb[0].mxu0
        %v1067 = vadd.f32 0.0, %v1066
        %v1068 = vpop.f32.mrb[0].mxu0
        %1069 = vmatprep.mubr.bf16.mxu0 0
        %1070 = vmatmul.mubr.bf16.gmra.mrb[0].mxu0 %v921
        %v1071 = vpop.f32.mrb[0].mxu0
        %v1072 = vadd.f32 0.0, %v1071
        %v1073 = vpop.f32.mrb[0].mxu0
        %v1074 = vpop.f32.mrb[0].mxu0
        %v1075 = vadd.f32 0.0, %v1074
        %v1076 = vpop.f32.mrb[0].mxu0
        %1077 = vmatprep.mubr.bf16.mxu0 0
        %1078 = vmatmul.mubr.bf16.gmra.mrb[0].mxu0 %v922
        %v1079 = vpop.f32.mrb[0].mxu0
        %v1080 = vadd.f32 0.0, %v1079
        %v1081 = vpop.f32.mrb[0].mxu0
        %v1082 = vpop.f32.mrb[0].mxu0
        %v1083 = vadd.f32 0.0, %v1082
        %v1084 = vpop.f32.mrb[0].mxu0
        %1085 = vmatprep.mubr.bf16.mxu0 0
        %1086 = vmatmul.mubr.bf16.gmra.mrb[0].mxu0 %v923
        %v1087 = vpop.f32.mrb[0].mxu0
        %v1088 = vadd.f32 0.0, %v1087
        %v1089 = vpop.f32.mrb[0].mxu0
        %v1090 = vpop.f32.mrb[0].mxu0
        %v1091 = vadd.f32 0.0, %v1090
        %v1092 = vpop.f32.mrb[0].mxu0
        %1093 = vmatprep.mubr.bf16.mxu0 0
        %1094 = vmatmul.mubr.bf16.gmra.mrb[0].mxu0 %v924
        %v1095 = vpop.f32.mrb[0].mxu0
        %v1096 = vadd.f32 0.0, %v1095
        %v1097 = vpop.f32.mrb[0].mxu0
        %v1098 = vpop.f32.mrb[0].mxu0
        %v1099 = vadd.f32 0.0, %v1098
        %v1100 = vpop.f32.mrb[0].mxu0
        %1101 = vmatprep.mubr.bf16.mxu0 0
        %1102 = vmatmul.mubr.bf16.gmra.mrb[0].mxu0 %v925
        %v1103 = vpop.f32.mrb[0].mxu0
        %v1104 = vadd.f32 0.0, %v1103
        %v1105 = vpop.f32.mrb[0].mxu0
        %v1106 = vpop.f32.mrb[0].mxu0
        %v1107 = vadd.f32 0.0, %v1106
        %v1108 = vpop.f32.mrb[0].mxu0
        %1109 = vmatprep.mubr.bf16.mxu0 0
        %1110 = vmatmul.mubr.bf16.gmra.mrb[0].mxu0 %v926
        %v1111 = vpop.f32.mrb[0].mxu0
        %v1112 = vadd.f32 0.0, %v1111
        %v1113 = vpop.f32.mrb[0].mxu0
        %v1114 = vpop.f32.mrb[0].mxu0
        %v1115 = vadd.f32 0.0, %v1114
        %v1116 = vpop.f32.mrb[0].mxu0
        %1117 = vmatprep.mubr.bf16.mxu0 0
        %1118 = vmatmul.mubr.bf16.gmra.mrb[0].mxu0 %v927
        %v1119 = vpop.f32.mrb[0].mxu0
        %v1120 = vadd.f32 0.0, %v1119
        %v1121 = vpop.f32.mrb[0].mxu0
        %v1122 = vpop.f32.mrb[0].mxu0
        %v1123 = vadd.f32 0.0, %v1122
        %v1124 = vpop.f32.mrb[0].mxu0
        %1125 = vmatprep.mubr.bf16.mxu0 0
        %1126 = vmatmul.mubr.bf16.gmra.mrb[0].mxu0 %v928
        %v1127 = vpop.f32.mrb[0].mxu0
        %v1128 = vadd.f32 0.0, %v1127
        %v1129 = vpop.f32.mrb[0].mxu0
        %v1130 = vpop.f32.mrb[0].mxu0
        %v1131 = vadd.f32 0.0, %v1130
        %v1132 = vpop.f32.mrb[0].mxu0
        %1133 = vmatprep.mubr.bf16.mxu0 0
        %1134 = vmatmul.mubr.bf16.gmra.mrb[0].mxu0 %v929
        %v1135 = vpop.f32.mrb[0].mxu0
        %v1136 = vadd.f32 0.0, %v1135
        %v1137 = vpop.f32.mrb[0].mxu0
        %v1138 = vpop.f32.mrb[0].mxu0
        %v1139 = vadd.f32 0.0, %v1138
        %v1140 = vpop.f32.mrb[0].mxu0
        %1141 = vmatprep.mubr.bf16.mxu0 0
        %1142 = vmatmul.mubr.bf16.gmra.mrb[0].mxu0 %v930
        %v1143 = vpop.f32.mrb[0].mxu0
        %v1144 = vadd.f32 0.0, %v1143
        %v1145 = vpop.f32.mrb[0].mxu0
        %v1146 = vpop.f32.mrb[0].mxu0
        %v1147 = vadd.f32 0.0, %v1146
        %v1148 = vpop.f32.mrb[0].mxu0
        %1149 = vmatprep.mubr.bf16.mxu0 0
        %1150 = vmatmul.mubr.bf16.gmra.mrb[0].mxu0 %v931
        %v1151 = vpop.f32.mrb[0].mxu0
        %v1152 = vadd.f32 0.0, %v1151
        %v1153 = vpop.f32.mrb[0].mxu0
        %v1154 = vpop.f32.mrb[0].mxu0
        %v1155 = vadd.f32 0.0, %v1154
        %v1156 = vpop.f32.mrb[0].mxu0
        %1157 = vdwg.mxu0
        %v1174 = vunpack.c.l.b16 %v868
        %v1175 = vunpack.c.l.b16 %v869
        %v1176 = vunpack.c.l.b16 %v870
        %v1177 = vunpack.c.l.b16 %v871
        %v1178 = vunpack.c.l.b16 %v872
        %v1179 = vunpack.c.l.b16 %v873
        %v1180 = vunpack.c.l.b16 %v874
        %v1181 = vunpack.c.l.b16 %v875
        %v1182 = vunpack.c.l.b16 %v876
        %v1183 = vunpack.c.l.b16 %v877
        %v1184 = vunpack.c.l.b16 %v878
        %v1185 = vunpack.c.l.b16 %v879
        %v1186 = vunpack.c.l.b16 %v880
        %v1187 = vunpack.c.l.b16 %v881
        %v1188 = vunpack.c.l.b16 %v882
        %v1189 = vunpack.c.l.b16 %v883
        %v1190 = vpack.c.b16 %v1175, %v1174
        %v1191 = vpack.c.b16 %v1177, %v1176
        %v1192 = vpack.c.b16 %v1179, %v1178
        %v1193 = vpack.c.b16 %v1181, %v1180
        %v1194 = vpack.c.b16 %v1183, %v1182
        %v1195 = vpack.c.b16 %v1185, %v1184
        %v1196 = vpack.c.b16 %v1187, %v1186
        %v1197 = vpack.c.b16 %v1189, %v1188
        %1206 = vmatprep.subr.bf16.mxu0 0
        %1207 = vmatpush1.bf16.msra.mxu0 %v1190
        %1208 = vmatprep.subr.bf16.mxu0 0
        %1209 = vmatpush1.bf16.msra.mxu0 %v1191
        %1210 = vmatprep.subr.bf16.mxu0 0
        %1211 = vmatpush1.bf16.msra.mxu0 %v1192
        %1212 = vmatprep.subr.bf16.mxu0 0
        %1213 = vmatpush1.bf16.msra.mxu0 %v1193
        %1214 = vmatprep.subr.bf16.mxu0 0
        %1215 = vmatpush1.bf16.msra.mxu0 %v1194
        %1216 = vmatprep.subr.bf16.mxu0 0
        %1217 = vmatpush1.bf16.msra.mxu0 %v1195
        %1218 = vmatprep.subr.bf16.mxu0 0
        %1219 = vmatpush1.bf16.msra.mxu0 %v1196
        %1220 = vmatprep.subr.bf16.mxu0 0
        %1221 = vmatpush1.bf16.msra.mxu0 %v1197
        %1222 = vmatprep.subr.bf16.mxu0 0
        %1223 = vmatpush1.bf16.msra.mxu0 0
        %1224 = vmatprep.subr.bf16.mxu0 0
        %1225 = vmatpush1.bf16.msra.mxu0 0
        %1226 = vmatprep.subr.bf16.mxu0 0
        %1227 = vmatpush1.bf16.msra.mxu0 0
        %1228 = vmatprep.subr.bf16.mxu0 0
        %1229 = vmatpush1.bf16.msra.mxu0 0
        %1230 = vmatprep.subr.bf16.mxu0 0
        %1231 = vmatpush1.bf16.msra.mxu0 0
        %1232 = vmatprep.subr.bf16.mxu0 0
        %1233 = vmatpush1.bf16.msra.mxu0 0
        %1234 = vmatprep.subr.bf16.mxu0 0
        %1235 = vmatpush1.bf16.msra.mxu0 0
        %1236 = vmatprep.subr.bf16.mxu0 0
        %1237 = vmatpush1.bf16.msra.mxu0 0
        %1238 = vmatprep.mubr.bf16.mxu0 0
        %1239 = vmatmul.mubr.bf16.gmra.mrb[0].mxu0 %v852
        %v1240 = vpop.f32.mrb[0].mxu0
        %v1241 = vadd.f32 %v1032, %v1240
        %v1242 = vpop.f32.mrb[0].mxu0
        %v1243 = vpop.f32.mrb[0].mxu0
        %v1244 = vadd.f32 %v1035, %v1243
        %v1245 = vpop.f32.mrb[0].mxu0
        %1246 = vmatprep.mubr.bf16.mxu0 0
        %1247 = vmatmul.mubr.bf16.gmra.mrb[0].mxu0 %v853
        %v1248 = vpop.f32.mrb[0].mxu0
        %v1249 = vadd.f32 %v1040, %v1248
        %v1250 = vpop.f32.mrb[0].mxu0
        %v1251 = vpop.f32.mrb[0].mxu0
        %v1252 = vadd.f32 %v1043, %v1251
        %v1253 = vpop.f32.mrb[0].mxu0
        %1254 = vmatprep.mubr.bf16.mxu0 0
        %1255 = vmatmul.mubr.bf16.gmra.mrb[0].mxu0 %v854
        %v1256 = vpop.f32.mrb[0].mxu0
        %v1257 = vadd.f32 %v1048, %v1256
        %v1258 = vpop.f32.mrb[0].mxu0
        %v1259 = vpop.f32.mrb[0].mxu0
        %v1260 = vadd.f32 %v1051, %v1259
        %v1261 = vpop.f32.mrb[0].mxu0
        %1262 = vmatprep.mubr.bf16.mxu0 0
        %1263 = vmatmul.mubr.bf16.gmra.mrb[0].mxu0 %v855
        %v1264 = vpop.f32.mrb[0].mxu0
        %v1265 = vadd.f32 %v1056, %v1264
        %v1266 = vpop.f32.mrb[0].mxu0
        %v1267 = vpop.f32.mrb[0].mxu0
        %v1268 = vadd.f32 %v1059, %v1267
        %v1269 = vpop.f32.mrb[0].mxu0
        %1270 = vmatprep.mubr.bf16.mxu0 0
        %1271 = vmatmul.mubr.bf16.gmra.mrb[0].mxu0 %v856
        %v1272 = vpop.f32.mrb[0].mxu0
        %v1273 = vadd.f32 %v1064, %v1272
        %v1274 = vpop.f32.mrb[0].mxu0
        %v1275 = vpop.f32.mrb[0].mxu0
        %v1276 = vadd.f32 %v1067, %v1275
        %v1277 = vpop.f32.mrb[0].mxu0
        %1278 = vmatprep.mubr.bf16.mxu0 0
        %1279 = vmatmul.mubr.bf16.gmra.mrb[0].mxu0 %v857
        %v1280 = vpop.f32.mrb[0].mxu0
        %v1281 = vadd.f32 %v1072, %v1280
        %v1282 = vpop.f32.mrb[0].mxu0
        %v1283 = vpop.f32.mrb[0].mxu0
        %v1284 = vadd.f32 %v1075, %v1283
        %v1285 = vpop.f32.mrb[0].mxu0
        %1286 = vmatprep.mubr.bf16.mxu0 0
        %1287 = vmatmul.mubr.bf16.gmra.mrb[0].mxu0 %v858
        %v1288 = vpop.f32.mrb[0].mxu0
        %v1289 = vadd.f32 %v1080, %v1288
        %v1290 = vpop.f32.mrb[0].mxu0
        %v1291 = vpop.f32.mrb[0].mxu0
        %v1292 = vadd.f32 %v1083, %v1291
        %v1293 = vpop.f32.mrb[0].mxu0
        %1294 = vmatprep.mubr.bf16.mxu0 0
        %1295 = vmatmul.mubr.bf16.gmra.mrb[0].mxu0 %v859
        %v1296 = vpop.f32.mrb[0].mxu0
        %v1297 = vadd.f32 %v1088, %v1296
        %v1298 = vpop.f32.mrb[0].mxu0
        %v1299 = vpop.f32.mrb[0].mxu0
        %v1300 = vadd.f32 %v1091, %v1299
        %v1301 = vpop.f32.mrb[0].mxu0
        %1302 = vmatprep.mubr.bf16.mxu0 0
        %1303 = vmatmul.mubr.bf16.gmra.mrb[0].mxu0 %v860
        %v1304 = vpop.f32.mrb[0].mxu0
        %v1305 = vadd.f32 %v1096, %v1304
        %v1306 = vpop.f32.mrb[0].mxu0
        %v1307 = vpop.f32.mrb[0].mxu0
        %v1308 = vadd.f32 %v1099, %v1307
        %v1309 = vpop.f32.mrb[0].mxu0
        %1310 = vmatprep.mubr.bf16.mxu0 0
        %1311 = vmatmul.mubr.bf16.gmra.mrb[0].mxu0 %v861
        %v1312 = vpop.f32.mrb[0].mxu0
        %v1313 = vadd.f32 %v1104, %v1312
        %v1314 = vpop.f32.mrb[0].mxu0
        %v1315 = vpop.f32.mrb[0].mxu0
        %v1316 = vadd.f32 %v1107, %v1315
        %v1317 = vpop.f32.mrb[0].mxu0
        %1318 = vmatprep.mubr.bf16.mxu0 0
        %1319 = vmatmul.mubr.bf16.gmra.mrb[0].mxu0 %v862
        %v1320 = vpop.f32.mrb[0].mxu0
        %v1321 = vadd.f32 %v1112, %v1320
        %v1322 = vpop.f32.mrb[0].mxu0
        %v1323 = vpop.f32.mrb[0].mxu0
        %v1324 = vadd.f32 %v1115, %v1323
        %v1325 = vpop.f32.mrb[0].mxu0
        %1326 = vmatprep.mubr.bf16.mxu0 0
        %1327 = vmatmul.mubr.bf16.gmra.mrb[0].mxu0 %v863
        %v1328 = vpop.f32.mrb[0].mxu0
        %v1329 = vadd.f32 %v1120, %v1328
        %v1330 = vpop.f32.mrb[0].mxu0
        %v1331 = vpop.f32.mrb[0].mxu0
        %v1332 = vadd.f32 %v1123, %v1331
        %v1333 = vpop.f32.mrb[0].mxu0
        %1334 = vmatprep.mubr.bf16.mxu0 0
        %1335 = vmatmul.mubr.bf16.gmra.mrb[0].mxu0 %v864
        %v1336 = vpop.f32.mrb[0].mxu0
        %v1337 = vadd.f32 %v1128, %v1336
        %v1338 = vpop.f32.mrb[0].mxu0
        %v1339 = vpop.f32.mrb[0].mxu0
        %v1340 = vadd.f32 %v1131, %v1339
        %v1341 = vpop.f32.mrb[0].mxu0
        %1342 = vmatprep.mubr.bf16.mxu0 0
        %1343 = vmatmul.mubr.bf16.gmra.mrb[0].mxu0 %v865
        %v1344 = vpop.f32.mrb[0].mxu0
        %v1345 = vadd.f32 %v1136, %v1344
        %v1346 = vpop.f32.mrb[0].mxu0
        %v1347 = vpop.f32.mrb[0].mxu0
        %v1348 = vadd.f32 %v1139, %v1347
        %v1349 = vpop.f32.mrb[0].mxu0
        %1350 = vmatprep.mubr.bf16.mxu0 0
        %1351 = vmatmul.mubr.bf16.gmra.mrb[0].mxu0 %v866
        %v1352 = vpop.f32.mrb[0].mxu0
        %v1353 = vadd.f32 %v1144, %v1352
        %v1354 = vpop.f32.mrb[0].mxu0
        %v1355 = vpop.f32.mrb[0].mxu0
        %v1356 = vadd.f32 %v1147, %v1355
        %v1357 = vpop.f32.mrb[0].mxu0
        %1358 = vmatprep.mubr.bf16.mxu0 0
        %1359 = vmatmul.mubr.bf16.gmra.mrb[0].mxu0 %v867
        %v1360 = vpop.f32.mrb[0].mxu0
        %v1361 = vadd.f32 %v1152, %v1360
        %v1362 = vpop.f32.mrb[0].mxu0
        %v1363 = vpop.f32.mrb[0].mxu0
        %v1364 = vadd.f32 %v1155, %v1363
        %v1365 = vpop.f32.mrb[0].mxu0
        %1366 = vdwg.mxu0
        %v1367 = vld [vmem:[#allocation2 + $0x9] sm:$0xff]
        %v1368 = vld [vmem:[#allocation2 + $0x11] sm:$0xff]
        %v1369 = vld [vmem:[#allocation2 + $0x29] sm:$0xff]
        %v1370 = vld [vmem:[#allocation2 + $0x31] sm:$0xff]
        %v1371 = vld [vmem:[#allocation2 + $0x49] sm:$0xff]
        %v1372 = vld [vmem:[#allocation2 + $0x51] sm:$0xff]
        %v1373 = vld [vmem:[#allocation2 + $0x69] sm:$0xff]
        %v1374 = vld [vmem:[#allocation2 + $0x71] sm:$0xff]
        %v1375 = vld [vmem:[#allocation2 + $0x89] sm:$0xff]
        %v1376 = vld [vmem:[#allocation2 + $0x91] sm:$0xff]
        %v1377 = vld [vmem:[#allocation2 + $0xa9] sm:$0xff]
        %v1378 = vld [vmem:[#allocation2 + $0xb1] sm:$0xff]
        %v1379 = vld [vmem:[#allocation2 + $0xc9] sm:$0xff]
        %v1380 = vld [vmem:[#allocation2 + $0xd1] sm:$0xff]
        %v1381 = vld [vmem:[#allocation2 + $0xe9] sm:$0xff]
        %v1382 = vld [vmem:[#allocation2 + $0xf1] sm:$0xff]
        %v1383 = vld [vmem:[#allocation2 + $0x109] sm:$0xff]
        %v1384 = vld [vmem:[#allocation2 + $0x111] sm:$0xff]
        %v1385 = vld [vmem:[#allocation2 + $0x129] sm:$0xff]
        %v1386 = vld [vmem:[#allocation2 + $0x131] sm:$0xff]
        %v1387 = vld [vmem:[#allocation2 + $0x149] sm:$0xff]
        %v1388 = vld [vmem:[#allocation2 + $0x151] sm:$0xff]
        %v1389 = vld [vmem:[#allocation2 + $0x169] sm:$0xff]
        %v1390 = vld [vmem:[#allocation2 + $0x171] sm:$0xff]
        %v1391 = vld [vmem:[#allocation2 + $0x189] sm:$0xff]
        %v1392 = vld [vmem:[#allocation2 + $0x191] sm:$0xff]
        %v1393 = vld [vmem:[#allocation2 + $0x1a9] sm:$0xff]
        %v1394 = vld [vmem:[#allocation2 + $0x1b1] sm:$0xff]
        %v1395 = vld [vmem:[#allocation2 + $0x1c9] sm:$0xff]
        %v1396 = vld [vmem:[#allocation2 + $0x1d1] sm:$0xff]
        %v1397 = vld [vmem:[#allocation2 + $0x1e9] sm:$0xff]
        %v1398 = vld [vmem:[#allocation2 + $0x1f1] sm:$0xff]
        %v1399 = vpack.c.bf16 %v1368, %v1367
        %v1400 = vpack.c.bf16 %v1370, %v1369
        %v1401 = vpack.c.bf16 %v1372, %v1371
        %v1402 = vpack.c.bf16 %v1374, %v1373
        %v1403 = vpack.c.bf16 %v1376, %v1375
        %v1404 = vpack.c.bf16 %v1378, %v1377
        %v1405 = vpack.c.bf16 %v1380, %v1379
        %v1406 = vpack.c.bf16 %v1382, %v1381
        %v1407 = vpack.c.bf16 %v1384, %v1383
        %v1408 = vpack.c.bf16 %v1386, %v1385
        %v1409 = vpack.c.bf16 %v1388, %v1387
        %v1410 = vpack.c.bf16 %v1390, %v1389
        %v1411 = vpack.c.bf16 %v1392, %v1391
        %v1412 = vpack.c.bf16 %v1394, %v1393
        %v1413 = vpack.c.bf16 %v1396, %v1395
        %v1414 = vpack.c.bf16 %v1398, %v1397
        %s1415 = scalar_lea.vmem [#allocation3], 128
        %v1416 = vld [vmem:[%s1415] sm:$0xf]
        %v1417 = vld [vmem:[%s1415 + $0x4] sm:$0xf]
        %v1418 = vld [vmem:[%s1415 + $0x8] sm:$0xf]
        %v1419 = vld [vmem:[%s1415 + $0xc] sm:$0xf]
        %v1420 = vld [vmem:[%s1415 + $0x10] sm:$0xf]
        %v1421 = vld [vmem:[%s1415 + $0x14] sm:$0xf]
        %v1422 = vld [vmem:[%s1415 + $0x18] sm:$0xf]
        %v1423 = vld [vmem:[%s1415 + $0x1c] sm:$0xf]
        %v1424 = vld [vmem:[%s1415 + $0x20] sm:$0xf]
        %v1425 = vld [vmem:[%s1415 + $0x24] sm:$0xf]
        %v1426 = vld [vmem:[%s1415 + $0x28] sm:$0xf]
        %v1427 = vld [vmem:[%s1415 + $0x2c] sm:$0xf]
        %v1428 = vld [vmem:[%s1415 + $0x30] sm:$0xf]
        %v1429 = vld [vmem:[%s1415 + $0x34] sm:$0xf]
        %v1430 = vld [vmem:[%s1415 + $0x38] sm:$0xf]
        %v1431 = vld [vmem:[%s1415 + $0x3c] sm:$0xf]
        %v1448 = vunpack.c.l.b16 %v1416
        %v1449 = vunpack.c.l.b16 %v1417
        %v1450 = vunpack.c.l.b16 %v1418
        %v1451 = vunpack.c.l.b16 %v1419
        %v1452 = vunpack.c.l.b16 %v1420
        %v1453 = vunpack.c.l.b16 %v1421
        %v1454 = vunpack.c.l.b16 %v1422
        %v1455 = vunpack.c.l.b16 %v1423
        %v1456 = vunpack.c.l.b16 %v1424
        %v1457 = vunpack.c.l.b16 %v1425
        %v1458 = vunpack.c.l.b16 %v1426
        %v1459 = vunpack.c.l.b16 %v1427
        %v1460 = vunpack.c.l.b16 %v1428
        %v1461 = vunpack.c.l.b16 %v1429
        %v1462 = vunpack.c.l.b16 %v1430
        %v1463 = vunpack.c.l.b16 %v1431
        %v1464 = vpack.c.b16 %v1449, %v1448
        %v1465 = vpack.c.b16 %v1451, %v1450
        %v1466 = vpack.c.b16 %v1453, %v1452
        %v1467 = vpack.c.b16 %v1455, %v1454
        %v1468 = vpack.c.b16 %v1457, %v1456
        %v1469 = vpack.c.b16 %v1459, %v1458
        %v1470 = vpack.c.b16 %v1461, %v1460
        %v1471 = vpack.c.b16 %v1463, %v1462
        %1480 = vmatprep.subr.bf16.mxu0 0
        %1481 = vmatpush1.bf16.msra.mxu0 %v1464
        %1482 = vmatprep.subr.bf16.mxu0 0
        %1483 = vmatpush1.bf16.msra.mxu0 %v1465
        %1484 = vmatprep.subr.bf16.mxu0 0
        %1485 = vmatpush1.bf16.msra.mxu0 %v1466
        %1486 = vmatprep.subr.bf16.mxu0 0
        %1487 = vmatpush1.bf16.msra.mxu0 %v1467
        %1488 = vmatprep.subr.bf16.mxu0 0
        %1489 = vmatpush1.bf16.msra.mxu0 %v1468
        %1490 = vmatprep.subr.bf16.mxu0 0
        %1491 = vmatpush1.bf16.msra.mxu0 %v1469
        %1492 = vmatprep.subr.bf16.mxu0 0
        %1493 = vmatpush1.bf16.msra.mxu0 %v1470
        %1494 = vmatprep.subr.bf16.mxu0 0
        %1495 = vmatpush1.bf16.msra.mxu0 %v1471
        %1496 = vmatprep.subr.bf16.mxu0 0
        %1497 = vmatpush1.bf16.msra.mxu0 0
        %1498 = vmatprep.subr.bf16.mxu0 0
        %1499 = vmatpush1.bf16.msra.mxu0 0
        %1500 = vmatprep.subr.bf16.mxu0 0
        %1501 = vmatpush1.bf16.msra.mxu0 0
        %1502 = vmatprep.subr.bf16.mxu0 0
        %1503 = vmatpush1.bf16.msra.mxu0 0
        %1504 = vmatprep.subr.bf16.mxu0 0
        %1505 = vmatpush1.bf16.msra.mxu0 0
        %1506 = vmatprep.subr.bf16.mxu0 0
        %1507 = vmatpush1.bf16.msra.mxu0 0
        %1508 = vmatprep.subr.bf16.mxu0 0
        %1509 = vmatpush1.bf16.msra.mxu0 0
        %1510 = vmatprep.subr.bf16.mxu0 0
        %1511 = vmatpush1.bf16.msra.mxu0 0
        %1512 = vmatprep.mubr.bf16.mxu0 0
        %1513 = vmatmul.mubr.bf16.gmra.mrb[0].mxu0 %v1399
        %v1514 = vpop.f32.mrb[0].mxu0
        %v1515 = vadd.f32 0.0, %v1514
        %v1516 = vpop.f32.mrb[0].mxu0
        %v1517 = vpop.f32.mrb[0].mxu0
        %v1518 = vadd.f32 0.0, %v1517
        %v1519 = vpop.f32.mrb[0].mxu0
        %1520 = vmatprep.mubr.bf16.mxu0 0
        %1521 = vmatmul.mubr.bf16.gmra.mrb[0].mxu0 %v1400
        %v1522 = vpop.f32.mrb[0].mxu0
        %v1523 = vadd.f32 0.0, %v1522
        %v1524 = vpop.f32.mrb[0].mxu0
        %v1525 = vpop.f32.mrb[0].mxu0
        %v1526 = vadd.f32 0.0, %v1525
        %v1527 = vpop.f32.mrb[0].mxu0
        %1528 = vmatprep.mubr.bf16.mxu0 0
        %1529 = vmatmul.mubr.bf16.gmra.mrb[0].mxu0 %v1401
        %v1530 = vpop.f32.mrb[0].mxu0
        %v1531 = vadd.f32 0.0, %v1530
        %v1532 = vpop.f32.mrb[0].mxu0
        %v1533 = vpop.f32.mrb[0].mxu0
        %v1534 = vadd.f32 0.0, %v1533
        %v1535 = vpop.f32.mrb[0].mxu0
        %1536 = vmatprep.mubr.bf16.mxu0 0
        %1537 = vmatmul.mubr.bf16.gmra.mrb[0].mxu0 %v1402
        %v1538 = vpop.f32.mrb[0].mxu0
        %v1539 = vadd.f32 0.0, %v1538
        %v1540 = vpop.f32.mrb[0].mxu0
        %v1541 = vpop.f32.mrb[0].mxu0
        %v1542 = vadd.f32 0.0, %v1541
        %v1543 = vpop.f32.mrb[0].mxu0
        %1544 = vmatprep.mubr.bf16.mxu0 0
        %1545 = vmatmul.mubr.bf16.gmra.mrb[0].mxu0 %v1403
        %v1546 = vpop.f32.mrb[0].mxu0
        %v1547 = vadd.f32 0.0, %v1546
        %v1548 = vpop.f32.mrb[0].mxu0
        %v1549 = vpop.f32.mrb[0].mxu0
        %v1550 = vadd.f32 0.0, %v1549
        %v1551 = vpop.f32.mrb[0].mxu0
        %1552 = vmatprep.mubr.bf16.mxu0 0
        %1553 = vmatmul.mubr.bf16.gmra.mrb[0].mxu0 %v1404
        %v1554 = vpop.f32.mrb[0].mxu0
        %v1555 = vadd.f32 0.0, %v1554
        %v1556 = vpop.f32.mrb[0].mxu0
        %v1557 = vpop.f32.mrb[0].mxu0
        %v1558 = vadd.f32 0.0, %v1557
        %v1559 = vpop.f32.mrb[0].mxu0
        %1560 = vmatprep.mubr.bf16.mxu0 0
        %1561 = vmatmul.mubr.bf16.gmra.mrb[0].mxu0 %v1405
        %v1562 = vpop.f32.mrb[0].mxu0
        %v1563 = vadd.f32 0.0, %v1562
        %v1564 = vpop.f32.mrb[0].mxu0
        %v1565 = vpop.f32.mrb[0].mxu0
        %v1566 = vadd.f32 0.0, %v1565
        %v1567 = vpop.f32.mrb[0].mxu0
        %1568 = vmatprep.mubr.bf16.mxu0 0
        %1569 = vmatmul.mubr.bf16.gmra.mrb[0].mxu0 %v1406
        %v1570 = vpop.f32.mrb[0].mxu0
        %v1571 = vadd.f32 0.0, %v1570
        %v1572 = vpop.f32.mrb[0].mxu0
        %v1573 = vpop.f32.mrb[0].mxu0
        %v1574 = vadd.f32 0.0, %v1573
        %v1575 = vpop.f32.mrb[0].mxu0
        %1576 = vmatprep.mubr.bf16.mxu0 0
        %1577 = vmatmul.mubr.bf16.gmra.mrb[0].mxu0 %v1407
        %v1578 = vpop.f32.mrb[0].mxu0
        %v1579 = vadd.f32 0.0, %v1578
        %v1580 = vpop.f32.mrb[0].mxu0
        %v1581 = vpop.f32.mrb[0].mxu0
        %v1582 = vadd.f32 0.0, %v1581
        %v1583 = vpop.f32.mrb[0].mxu0
        %1584 = vmatprep.mubr.bf16.mxu0 0
        %1585 = vmatmul.mubr.bf16.gmra.mrb[0].mxu0 %v1408
        %v1586 = vpop.f32.mrb[0].mxu0
        %v1587 = vadd.f32 0.0, %v1586
        %v1588 = vpop.f32.mrb[0].mxu0
        %v1589 = vpop.f32.mrb[0].mxu0
        %v1590 = vadd.f32 0.0, %v1589
        %v1591 = vpop.f32.mrb[0].mxu0
        %1592 = vmatprep.mubr.bf16.mxu0 0
        %1593 = vmatmul.mubr.bf16.gmra.mrb[0].mxu0 %v1409
        %v1594 = vpop.f32.mrb[0].mxu0
        %v1595 = vadd.f32 0.0, %v1594
        %v1596 = vpop.f32.mrb[0].mxu0
        %v1597 = vpop.f32.mrb[0].mxu0
        %v1598 = vadd.f32 0.0, %v1597
        %v1599 = vpop.f32.mrb[0].mxu0
        %1600 = vmatprep.mubr.bf16.mxu0 0
        %1601 = vmatmul.mubr.bf16.gmra.mrb[0].mxu0 %v1410
        %v1602 = vpop.f32.mrb[0].mxu0
        %v1603 = vadd.f32 0.0, %v1602
        %v1604 = vpop.f32.mrb[0].mxu0
        %v1605 = vpop.f32.mrb[0].mxu0
        %v1606 = vadd.f32 0.0, %v1605
        %v1607 = vpop.f32.mrb[0].mxu0
        %1608 = vmatprep.mubr.bf16.mxu0 0
        %1609 = vmatmul.mubr.bf16.gmra.mrb[0].mxu0 %v1411
        %v1610 = vpop.f32.mrb[0].mxu0
        %v1611 = vadd.f32 0.0, %v1610
        %v1612 = vpop.f32.mrb[0].mxu0
        %v1613 = vpop.f32.mrb[0].mxu0
        %v1614 = vadd.f32 0.0, %v1613
        %v1615 = vpop.f32.mrb[0].mxu0
        %1616 = vmatprep.mubr.bf16.mxu0 0
        %1617 = vmatmul.mubr.bf16.gmra.mrb[0].mxu0 %v1412
        %v1618 = vpop.f32.mrb[0].mxu0
        %v1619 = vadd.f32 0.0, %v1618
        %v1620 = vpop.f32.mrb[0].mxu0
        %v1621 = vpop.f32.mrb[0].mxu0
        %v1622 = vadd.f32 0.0, %v1621
        %v1623 = vpop.f32.mrb[0].mxu0
        %1624 = vmatprep.mubr.bf16.mxu0 0
        %1625 = vmatmul.mubr.bf16.gmra.mrb[0].mxu0 %v1413
        %v1626 = vpop.f32.mrb[0].mxu0
        %v1627 = vadd.f32 0.0, %v1626
        %v1628 = vpop.f32.mrb[0].mxu0
        %v1629 = vpop.f32.mrb[0].mxu0
        %v1630 = vadd.f32 0.0, %v1629
        %v1631 = vpop.f32.mrb[0].mxu0
        %1632 = vmatprep.mubr.bf16.mxu0 0
        %1633 = vmatmul.mubr.bf16.gmra.mrb[0].mxu0 %v1414
        %v1634 = vpop.f32.mrb[0].mxu0
        %v1635 = vadd.f32 0.0, %v1634
        %v1636 = vpop.f32.mrb[0].mxu0
        %v1637 = vpop.f32.mrb[0].mxu0
        %v1638 = vadd.f32 0.0, %v1637
        %v1639 = vpop.f32.mrb[0].mxu0
        %1640 = vdwg.mxu0
        %v1641 = vadd.f32 %v1241, %v1515
        %v1642 = vadd.f32 %v1244, %v1518
        %v1643 = vadd.f32 %v1249, %v1523
        %v1644 = vadd.f32 %v1252, %v1526
        %v1645 = vadd.f32 %v1257, %v1531
        %v1646 = vadd.f32 %v1260, %v1534
        %v1647 = vadd.f32 %v1265, %v1539
        %v1648 = vadd.f32 %v1268, %v1542
        %v1649 = vadd.f32 %v1273, %v1547
        %v1650 = vadd.f32 %v1276, %v1550
        %v1651 = vadd.f32 %v1281, %v1555
        %v1652 = vadd.f32 %v1284, %v1558
        %v1653 = vadd.f32 %v1289, %v1563
        %v1654 = vadd.f32 %v1292, %v1566
        %v1655 = vadd.f32 %v1297, %v1571
        %v1656 = vadd.f32 %v1300, %v1574
        %v1657 = vadd.f32 %v1305, %v1579
        %v1658 = vadd.f32 %v1308, %v1582
        %v1659 = vadd.f32 %v1313, %v1587
        %v1660 = vadd.f32 %v1316, %v1590
        %v1661 = vadd.f32 %v1321, %v1595
        %v1662 = vadd.f32 %v1324, %v1598
        %v1663 = vadd.f32 %v1329, %v1603
        %v1664 = vadd.f32 %v1332, %v1606
        %v1665 = vadd.f32 %v1337, %v1611
        %v1666 = vadd.f32 %v1340, %v1614
        %v1667 = vadd.f32 %v1345, %v1619
        %v1668 = vadd.f32 %v1348, %v1622
        %v1669 = vadd.f32 %v1353, %v1627
        %v1670 = vadd.f32 %v1356, %v1630
        %v1671 = vadd.f32 %v1361, %v1635
        %v1672 = vadd.f32 %v1364, %v1638
        %v1673 = vld [vmem:[%s787 + $0x7] sm:$0xff]
        %v1674 = vld [vmem:[%s787 + $0xf] sm:$0xff]
        %v1675 = vld [vmem:[%s787 + $0x27] sm:$0xff]
        %v1676 = vld [vmem:[%s787 + $0x2f] sm:$0xff]
        %v1677 = vld [vmem:[%s787 + $0x47] sm:$0xff]
        %v1678 = vld [vmem:[%s787 + $0x4f] sm:$0xff]
        %v1679 = vld [vmem:[%s787 + $0x67] sm:$0xff]
        %v1680 = vld [vmem:[%s787 + $0x6f] sm:$0xff]
        %v1681 = vld [vmem:[%s787 + $0x87] sm:$0xff]
        %v1682 = vld [vmem:[%s787 + $0x8f] sm:$0xff]
        %v1683 = vld [vmem:[%s787 + $0xa7] sm:$0xff]
        %v1684 = vld [vmem:[%s787 + $0xaf] sm:$0xff]
        %v1685 = vld [vmem:[%s787 + $0xc7] sm:$0xff]
        %v1686 = vld [vmem:[%s787 + $0xcf] sm:$0xff]
        %v1687 = vld [vmem:[%s787 + $0xe7] sm:$0xff]
        %v1688 = vld [vmem:[%s787 + $0xef] sm:$0xff]
        %v1689 = vld [vmem:[%s787 + $0x107] sm:$0xff]
        %v1690 = vld [vmem:[%s787 + $0x10f] sm:$0xff]
        %v1691 = vld [vmem:[%s787 + $0x127] sm:$0xff]
        %v1692 = vld [vmem:[%s787 + $0x12f] sm:$0xff]
        %v1693 = vld [vmem:[%s787 + $0x147] sm:$0xff]
        %v1694 = vld [vmem:[%s787 + $0x14f] sm:$0xff]
        %v1695 = vld [vmem:[%s787 + $0x167] sm:$0xff]
        %v1696 = vld [vmem:[%s787 + $0x16f] sm:$0xff]
        %v1697 = vld [vmem:[%s787 + $0x187] sm:$0xff]
        %v1698 = vld [vmem:[%s787 + $0x18f] sm:$0xff]
        %v1699 = vld [vmem:[%s787 + $0x1a7] sm:$0xff]
        %v1700 = vld [vmem:[%s787 + $0x1af] sm:$0xff]
        %v1701 = vld [vmem:[%s787 + $0x1c7] sm:$0xff]
        %v1702 = vld [vmem:[%s787 + $0x1cf] sm:$0xff]
        %v1703 = vld [vmem:[%s787 + $0x1e7] sm:$0xff]
        %v1704 = vld [vmem:[%s787 + $0x1ef] sm:$0xff]
        %v1705 = vpack.c.bf16 %v1674, %v1673
        %v1706 = vpack.c.bf16 %v1676, %v1675
        %v1707 = vpack.c.bf16 %v1678, %v1677
        %v1708 = vpack.c.bf16 %v1680, %v1679
        %v1709 = vpack.c.bf16 %v1682, %v1681
        %v1710 = vpack.c.bf16 %v1684, %v1683
        %v1711 = vpack.c.bf16 %v1686, %v1685
        %v1712 = vpack.c.bf16 %v1688, %v1687
        %v1713 = vpack.c.bf16 %v1690, %v1689
        %v1714 = vpack.c.bf16 %v1692, %v1691
        %v1715 = vpack.c.bf16 %v1694, %v1693
        %v1716 = vpack.c.bf16 %v1696, %v1695
        %v1717 = vpack.c.bf16 %v1698, %v1697
        %v1718 = vpack.c.bf16 %v1700, %v1699
        %v1719 = vpack.c.bf16 %v1702, %v1701
        %v1720 = vpack.c.bf16 %v1704, %v1703
        %s1721 = scalar_lea.vmem [#allocation3], 192
        %v1722 = vld [vmem:[%s1721] sm:$0xf]
        %v1723 = vld [vmem:[%s1721 + $0x4] sm:$0xf]
        %v1724 = vld [vmem:[%s1721 + $0x8] sm:$0xf]
        %v1725 = vld [vmem:[%s1721 + $0xc] sm:$0xf]
        %v1726 = vld [vmem:[%s1721 + $0x10] sm:$0xf]
        %v1727 = vld [vmem:[%s1721 + $0x14] sm:$0xf]
        %v1728 = vld [vmem:[%s1721 + $0x18] sm:$0xf]
        %v1729 = vld [vmem:[%s1721 + $0x1c] sm:$0xf]
        %v1730 = vld [vmem:[%s1721 + $0x20] sm:$0xf]
        %v1731 = vld [vmem:[%s1721 + $0x24] sm:$0xf]
        %v1732 = vld [vmem:[%s1721 + $0x28] sm:$0xf]
        %v1733 = vld [vmem:[%s1721 + $0x2c] sm:$0xf]
        %v1734 = vld [vmem:[%s1721 + $0x30] sm:$0xf]
        %v1735 = vld [vmem:[%s1721 + $0x34] sm:$0xf]
        %v1736 = vld [vmem:[%s1721 + $0x38] sm:$0xf]
        %v1737 = vld [vmem:[%s1721 + $0x3c] sm:$0xf]
        %v1754 = vunpack.c.l.b16 %v1722
        %v1755 = vunpack.c.l.b16 %v1723
        %v1756 = vunpack.c.l.b16 %v1724
        %v1757 = vunpack.c.l.b16 %v1725
        %v1758 = vunpack.c.l.b16 %v1726
        %v1759 = vunpack.c.l.b16 %v1727
        %v1760 = vunpack.c.l.b16 %v1728
        %v1761 = vunpack.c.l.b16 %v1729
        %v1762 = vunpack.c.l.b16 %v1730
        %v1763 = vunpack.c.l.b16 %v1731
        %v1764 = vunpack.c.l.b16 %v1732
        %v1765 = vunpack.c.l.b16 %v1733
        %v1766 = vunpack.c.l.b16 %v1734
        %v1767 = vunpack.c.l.b16 %v1735
        %v1768 = vunpack.c.l.b16 %v1736
        %v1769 = vunpack.c.l.b16 %v1737
        %v1770 = vpack.c.b16 %v1755, %v1754
        %v1771 = vpack.c.b16 %v1757, %v1756
        %v1772 = vpack.c.b16 %v1759, %v1758
        %v1773 = vpack.c.b16 %v1761, %v1760
        %v1774 = vpack.c.b16 %v1763, %v1762
        %v1775 = vpack.c.b16 %v1765, %v1764
        %v1776 = vpack.c.b16 %v1767, %v1766
        %v1777 = vpack.c.b16 %v1769, %v1768
        %1786 = vmatprep.subr.bf16.mxu0 0
        %1787 = vmatpush1.bf16.msra.mxu0 %v1770
        %1788 = vmatprep.subr.bf16.mxu0 0
        %1789 = vmatpush1.bf16.msra.mxu0 %v1771
        %1790 = vmatprep.subr.bf16.mxu0 0
        %1791 = vmatpush1.bf16.msra.mxu0 %v1772
        %1792 = vmatprep.subr.bf16.mxu0 0
        %1793 = vmatpush1.bf16.msra.mxu0 %v1773
        %1794 = vmatprep.subr.bf16.mxu0 0
        %1795 = vmatpush1.bf16.msra.mxu0 %v1774
        %1796 = vmatprep.subr.bf16.mxu0 0
        %1797 = vmatpush1.bf16.msra.mxu0 %v1775
        %1798 = vmatprep.subr.bf16.mxu0 0
        %1799 = vmatpush1.bf16.msra.mxu0 %v1776
        %1800 = vmatprep.subr.bf16.mxu0 0
        %1801 = vmatpush1.bf16.msra.mxu0 %v1777
        %1802 = vmatprep.subr.bf16.mxu0 0
        %1803 = vmatpush1.bf16.msra.mxu0 0
        %1804 = vmatprep.subr.bf16.mxu0 0
        %1805 = vmatpush1.bf16.msra.mxu0 0
        %1806 = vmatprep.subr.bf16.mxu0 0
        %1807 = vmatpush1.bf16.msra.mxu0 0
        %1808 = vmatprep.subr.bf16.mxu0 0
        %1809 = vmatpush1.bf16.msra.mxu0 0
        %1810 = vmatprep.subr.bf16.mxu0 0
        %1811 = vmatpush1.bf16.msra.mxu0 0
        %1812 = vmatprep.subr.bf16.mxu0 0
        %1813 = vmatpush1.bf16.msra.mxu0 0
        %1814 = vmatprep.subr.bf16.mxu0 0
        %1815 = vmatpush1.bf16.msra.mxu0 0
        %1816 = vmatprep.subr.bf16.mxu0 0
        %1817 = vmatpush1.bf16.msra.mxu0 0
        %1818 = vmatprep.mubr.bf16.mxu0 0
        %1819 = vmatmul.mubr.bf16.gmra.mrb[0].mxu0 %v1705
        %v1820 = vpop.f32.mrb[0].mxu0
        %v1821 = vadd.f32 0.0, %v1820
        %v1822 = vpop.f32.mrb[0].mxu0
        %v1823 = vpop.f32.mrb[0].mxu0
        %v1824 = vadd.f32 0.0, %v1823
        %v1825 = vpop.f32.mrb[0].mxu0
        %1826 = vmatprep.mubr.bf16.mxu0 0
        %1827 = vmatmul.mubr.bf16.gmra.mrb[0].mxu0 %v1706
        %v1828 = vpop.f32.mrb[0].mxu0
        %v1829 = vadd.f32 0.0, %v1828
        %v1830 = vpop.f32.mrb[0].mxu0
        %v1831 = vpop.f32.mrb[0].mxu0
        %v1832 = vadd.f32 0.0, %v1831
        %v1833 = vpop.f32.mrb[0].mxu0
        %1834 = vmatprep.mubr.bf16.mxu0 0
        %1835 = vmatmul.mubr.bf16.gmra.mrb[0].mxu0 %v1707
        %v1836 = vpop.f32.mrb[0].mxu0
        %v1837 = vadd.f32 0.0, %v1836
        %v1838 = vpop.f32.mrb[0].mxu0
        %v1839 = vpop.f32.mrb[0].mxu0
        %v1840 = vadd.f32 0.0, %v1839
        %v1841 = vpop.f32.mrb[0].mxu0
        %1842 = vmatprep.mubr.bf16.mxu0 0
        %1843 = vmatmul.mubr.bf16.gmra.mrb[0].mxu0 %v1708
        %v1844 = vpop.f32.mrb[0].mxu0
        %v1845 = vadd.f32 0.0, %v1844
        %v1846 = vpop.f32.mrb[0].mxu0
        %v1847 = vpop.f32.mrb[0].mxu0
        %v1848 = vadd.f32 0.0, %v1847
        %v1849 = vpop.f32.mrb[0].mxu0
        %1850 = vmatprep.mubr.bf16.mxu0 0
        %1851 = vmatmul.mubr.bf16.gmra.mrb[0].mxu0 %v1709
        %v1852 = vpop.f32.mrb[0].mxu0
        %v1853 = vadd.f32 0.0, %v1852
        %v1854 = vpop.f32.mrb[0].mxu0
        %v1855 = vpop.f32.mrb[0].mxu0
        %v1856 = vadd.f32 0.0, %v1855
        %v1857 = vpop.f32.mrb[0].mxu0
        %1858 = vmatprep.mubr.bf16.mxu0 0
        %1859 = vmatmul.mubr.bf16.gmra.mrb[0].mxu0 %v1710
        %v1860 = vpop.f32.mrb[0].mxu0
        %v1861 = vadd.f32 0.0, %v1860
        %v1862 = vpop.f32.mrb[0].mxu0
        %v1863 = vpop.f32.mrb[0].mxu0
        %v1864 = vadd.f32 0.0, %v1863
        %v1865 = vpop.f32.mrb[0].mxu0
        %1866 = vmatprep.mubr.bf16.mxu0 0
        %1867 = vmatmul.mubr.bf16.gmra.mrb[0].mxu0 %v1711
        %v1868 = vpop.f32.mrb[0].mxu0
        %v1869 = vadd.f32 0.0, %v1868
        %v1870 = vpop.f32.mrb[0].mxu0
        %v1871 = vpop.f32.mrb[0].mxu0
        %v1872 = vadd.f32 0.0, %v1871
        %v1873 = vpop.f32.mrb[0].mxu0
        %1874 = vmatprep.mubr.bf16.mxu0 0
        %1875 = vmatmul.mubr.bf16.gmra.mrb[0].mxu0 %v1712
        %v1876 = vpop.f32.mrb[0].mxu0
        %v1877 = vadd.f32 0.0, %v1876
        %v1878 = vpop.f32.mrb[0].mxu0
        %v1879 = vpop.f32.mrb[0].mxu0
        %v1880 = vadd.f32 0.0, %v1879
        %v1881 = vpop.f32.mrb[0].mxu0
        %1882 = vmatprep.mubr.bf16.mxu0 0
        %1883 = vmatmul.mubr.bf16.gmra.mrb[0].mxu0 %v1713
        %v1884 = vpop.f32.mrb[0].mxu0
        %v1885 = vadd.f32 0.0, %v1884
        %v1886 = vpop.f32.mrb[0].mxu0
        %v1887 = vpop.f32.mrb[0].mxu0
        %v1888 = vadd.f32 0.0, %v1887
        %v1889 = vpop.f32.mrb[0].mxu0
        %1890 = vmatprep.mubr.bf16.mxu0 0
        %1891 = vmatmul.mubr.bf16.gmra.mrb[0].mxu0 %v1714
        %v1892 = vpop.f32.mrb[0].mxu0
        %v1893 = vadd.f32 0.0, %v1892
        %v1894 = vpop.f32.mrb[0].mxu0
        %v1895 = vpop.f32.mrb[0].mxu0
        %v1896 = vadd.f32 0.0, %v1895
        %v1897 = vpop.f32.mrb[0].mxu0
        %1898 = vmatprep.mubr.bf16.mxu0 0
        %1899 = vmatmul.mubr.bf16.gmra.mrb[0].mxu0 %v1715
        %v1900 = vpop.f32.mrb[0].mxu0
        %v1901 = vadd.f32 0.0, %v1900
        %v1902 = vpop.f32.mrb[0].mxu0
        %v1903 = vpop.f32.mrb[0].mxu0
        %v1904 = vadd.f32 0.0, %v1903
        %v1905 = vpop.f32.mrb[0].mxu0
        %1906 = vmatprep.mubr.bf16.mxu0 0
        %1907 = vmatmul.mubr.bf16.gmra.mrb[0].mxu0 %v1716
        %v1908 = vpop.f32.mrb[0].mxu0
        %v1909 = vadd.f32 0.0, %v1908
        %v1910 = vpop.f32.mrb[0].mxu0
        %v1911 = vpop.f32.mrb[0].mxu0
        %v1912 = vadd.f32 0.0, %v1911
        %v1913 = vpop.f32.mrb[0].mxu0
        %1914 = vmatprep.mubr.bf16.mxu0 0
        %1915 = vmatmul.mubr.bf16.gmra.mrb[0].mxu0 %v1717
        %v1916 = vpop.f32.mrb[0].mxu0
        %v1917 = vadd.f32 0.0, %v1916
        %v1918 = vpop.f32.mrb[0].mxu0
        %v1919 = vpop.f32.mrb[0].mxu0
        %v1920 = vadd.f32 0.0, %v1919
        %v1921 = vpop.f32.mrb[0].mxu0
        %1922 = vmatprep.mubr.bf16.mxu0 0
        %1923 = vmatmul.mubr.bf16.gmra.mrb[0].mxu0 %v1718
        %v1924 = vpop.f32.mrb[0].mxu0
        %v1925 = vadd.f32 0.0, %v1924
        %v1926 = vpop.f32.mrb[0].mxu0
        %v1927 = vpop.f32.mrb[0].mxu0
        %v1928 = vadd.f32 0.0, %v1927
        %v1929 = vpop.f32.mrb[0].mxu0
        %1930 = vmatprep.mubr.bf16.mxu0 0
        %1931 = vmatmul.mubr.bf16.gmra.mrb[0].mxu0 %v1719
        %v1932 = vpop.f32.mrb[0].mxu0
        %v1933 = vadd.f32 0.0, %v1932
        %v1934 = vpop.f32.mrb[0].mxu0
        %v1935 = vpop.f32.mrb[0].mxu0
        %v1936 = vadd.f32 0.0, %v1935
        %v1937 = vpop.f32.mrb[0].mxu0
        %1938 = vmatprep.mubr.bf16.mxu0 0
        %1939 = vmatmul.mubr.bf16.gmra.mrb[0].mxu0 %v1720
        %v1940 = vpop.f32.mrb[0].mxu0
        %v1941 = vadd.f32 0.0, %v1940
        %v1942 = vpop.f32.mrb[0].mxu0
        %v1943 = vpop.f32.mrb[0].mxu0
        %v1944 = vadd.f32 0.0, %v1943
        %v1945 = vpop.f32.mrb[0].mxu0
        %1946 = vdwg.mxu0
        %v1947 = vadd.f32 %v1641, %v1821
        %v1948 = vadd.f32 %v1642, %v1824
        %v1949 = vadd.f32 %v1643, %v1829
        %v1950 = vadd.f32 %v1644, %v1832
        %v1951 = vadd.f32 %v1645, %v1837
        %v1952 = vadd.f32 %v1646, %v1840
        %v1953 = vadd.f32 %v1647, %v1845
        %v1954 = vadd.f32 %v1648, %v1848
        %v1955 = vadd.f32 %v1649, %v1853
        %v1956 = vadd.f32 %v1650, %v1856
        %v1957 = vadd.f32 %v1651, %v1861
        %v1958 = vadd.f32 %v1652, %v1864
        %v1959 = vadd.f32 %v1653, %v1869
        %v1960 = vadd.f32 %v1654, %v1872
        %v1961 = vadd.f32 %v1655, %v1877
        %v1962 = vadd.f32 %v1656, %v1880
        %v1963 = vadd.f32 %v1657, %v1885
        %v1964 = vadd.f32 %v1658, %v1888
        %v1965 = vadd.f32 %v1659, %v1893
        %v1966 = vadd.f32 %v1660, %v1896
        %v1967 = vadd.f32 %v1661, %v1901
        %v1968 = vadd.f32 %v1662, %v1904
        %v1969 = vadd.f32 %v1663, %v1909
        %v1970 = vadd.f32 %v1664, %v1912
        %v1971 = vadd.f32 %v1665, %v1917
        %v1972 = vadd.f32 %v1666, %v1920
        %v1973 = vadd.f32 %v1667, %v1925
        %v1974 = vadd.f32 %v1668, %v1928
        %v1975 = vadd.f32 %v1669, %v1933
        %v1976 = vadd.f32 %v1670, %v1936
        %v1977 = vadd.f32 %v1671, %v1941
        %v1978 = vadd.f32 %v1672, %v1944
        %v1979 = vld [vmem:[%s787 + $0x8] sm:$0xff]
        %v1980 = vld [vmem:[%s787 + $0x10] sm:$0xff]
        %v1981 = vld [vmem:[%s787 + $0x28] sm:$0xff]
        %v1982 = vld [vmem:[%s787 + $0x30] sm:$0xff]
        %v1983 = vld [vmem:[%s787 + $0x48] sm:$0xff]
        %v1984 = vld [vmem:[%s787 + $0x50] sm:$0xff]
        %v1985 = vld [vmem:[%s787 + $0x68] sm:$0xff]
        %v1986 = vld [vmem:[%s787 + $0x70] sm:$0xff]
        %v1987 = vld [vmem:[%s787 + $0x88] sm:$0xff]
        %v1988 = vld [vmem:[%s787 + $0x90] sm:$0xff]
        %v1989 = vld [vmem:[%s787 + $0xa8] sm:$0xff]
        %v1990 = vld [vmem:[%s787 + $0xb0] sm:$0xff]
        %v1991 = vld [vmem:[%s787 + $0xc8] sm:$0xff]
        %v1992 = vld [vmem:[%s787 + $0xd0] sm:$0xff]
        %v1993 = vld [vmem:[%s787 + $0xe8] sm:$0xff]
        %v1994 = vld [vmem:[%s787 + $0xf0] sm:$0xff]
        %v1995 = vld [vmem:[%s787 + $0x108] sm:$0xff]
        %v1996 = vld [vmem:[%s787 + $0x110] sm:$0xff]
        %v1997 = vld [vmem:[%s787 + $0x128] sm:$0xff]
        %v1998 = vld [vmem:[%s787 + $0x130] sm:$0xff]
        %v1999 = vld [vmem:[%s787 + $0x148] sm:$0xff]
        %v2000 = vld [vmem:[%s787 + $0x150] sm:$0xff]
        %v2001 = vld [vmem:[%s787 + $0x168] sm:$0xff]
        %v2002 = vld [vmem:[%s787 + $0x170] sm:$0xff]
        %v2003 = vld [vmem:[%s787 + $0x188] sm:$0xff]
        %v2004 = vld [vmem:[%s787 + $0x190] sm:$0xff]
        %v2005 = vld [vmem:[%s787 + $0x1a8] sm:$0xff]
        %v2006 = vld [vmem:[%s787 + $0x1b0] sm:$0xff]
        %v2007 = vld [vmem:[%s787 + $0x1c8] sm:$0xff]
        %v2008 = vld [vmem:[%s787 + $0x1d0] sm:$0xff]
        %v2009 = vld [vmem:[%s787 + $0x1e8] sm:$0xff]
        %v2010 = vld [vmem:[%s787 + $0x1f0] sm:$0xff]
        %v2011 = vpack.c.bf16 %v1980, %v1979
        %v2012 = vpack.c.bf16 %v1982, %v1981
        %v2013 = vpack.c.bf16 %v1984, %v1983
        %v2014 = vpack.c.bf16 %v1986, %v1985
        %v2015 = vpack.c.bf16 %v1988, %v1987
        %v2016 = vpack.c.bf16 %v1990, %v1989
        %v2017 = vpack.c.bf16 %v1992, %v1991
        %v2018 = vpack.c.bf16 %v1994, %v1993
        %v2019 = vpack.c.bf16 %v1996, %v1995
        %v2020 = vpack.c.bf16 %v1998, %v1997
        %v2021 = vpack.c.bf16 %v2000, %v1999
        %v2022 = vpack.c.bf16 %v2002, %v2001
        %v2023 = vpack.c.bf16 %v2004, %v2003
        %v2024 = vpack.c.bf16 %v2006, %v2005
        %v2025 = vpack.c.bf16 %v2008, %v2007
        %v2026 = vpack.c.bf16 %v2010, %v2009
        %s2027 = scalar_lea.vmem [#allocation3], 256
        %v2028 = vld [vmem:[%s2027] sm:$0xf]
        %v2029 = vld [vmem:[%s2027 + $0x4] sm:$0xf]
        %v2030 = vld [vmem:[%s2027 + $0x8] sm:$0xf]
        %v2031 = vld [vmem:[%s2027 + $0xc] sm:$0xf]
        %v2032 = vld [vmem:[%s2027 + $0x10] sm:$0xf]
        %v2033 = vld [vmem:[%s2027 + $0x14] sm:$0xf]
        %v2034 = vld [vmem:[%s2027 + $0x18] sm:$0xf]
        %v2035 = vld [vmem:[%s2027 + $0x1c] sm:$0xf]
        %v2036 = vld [vmem:[%s2027 + $0x20] sm:$0xf]
        %v2037 = vld [vmem:[%s2027 + $0x24] sm:$0xf]
        %v2038 = vld [vmem:[%s2027 + $0x28] sm:$0xf]
        %v2039 = vld [vmem:[%s2027 + $0x2c] sm:$0xf]
        %v2040 = vld [vmem:[%s2027 + $0x30] sm:$0xf]
        %v2041 = vld [vmem:[%s2027 + $0x34] sm:$0xf]
        %v2042 = vld [vmem:[%s2027 + $0x38] sm:$0xf]
        %v2043 = vld [vmem:[%s2027 + $0x3c] sm:$0xf]
        %v2060 = vunpack.c.l.b16 %v2028
        %v2061 = vunpack.c.l.b16 %v2029
        %v2062 = vunpack.c.l.b16 %v2030
        %v2063 = vunpack.c.l.b16 %v2031
        %v2064 = vunpack.c.l.b16 %v2032
        %v2065 = vunpack.c.l.b16 %v2033
        %v2066 = vunpack.c.l.b16 %v2034
        %v2067 = vunpack.c.l.b16 %v2035
        %v2068 = vunpack.c.l.b16 %v2036
        %v2069 = vunpack.c.l.b16 %v2037
        %v2070 = vunpack.c.l.b16 %v2038
        %v2071 = vunpack.c.l.b16 %v2039
        %v2072 = vunpack.c.l.b16 %v2040
        %v2073 = vunpack.c.l.b16 %v2041
        %v2074 = vunpack.c.l.b16 %v2042
        %v2075 = vunpack.c.l.b16 %v2043
        %v2076 = vpack.c.b16 %v2061, %v2060
        %v2077 = vpack.c.b16 %v2063, %v2062
        %v2078 = vpack.c.b16 %v2065, %v2064
        %v2079 = vpack.c.b16 %v2067, %v2066
        %v2080 = vpack.c.b16 %v2069, %v2068
        %v2081 = vpack.c.b16 %v2071, %v2070
        %v2082 = vpack.c.b16 %v2073, %v2072
        %v2083 = vpack.c.b16 %v2075, %v2074
        %2092 = vmatprep.subr.bf16.mxu0 0
        %2093 = vmatpush1.bf16.msra.mxu0 %v2076
        %2094 = vmatprep.subr.bf16.mxu0 0
        %2095 = vmatpush1.bf16.msra.mxu0 %v2077
        %2096 = vmatprep.subr.bf16.mxu0 0
        %2097 = vmatpush1.bf16.msra.mxu0 %v2078
        %2098 = vmatprep.subr.bf16.mxu0 0
        %2099 = vmatpush1.bf16.msra.mxu0 %v2079
        %2100 = vmatprep.subr.bf16.mxu0 0
        %2101 = vmatpush1.bf16.msra.mxu0 %v2080
        %2102 = vmatprep.subr.bf16.mxu0 0
        %2103 = vmatpush1.bf16.msra.mxu0 %v2081
        %2104 = vmatprep.subr.bf16.mxu0 0
        %2105 = vmatpush1.bf16.msra.mxu0 %v2082
        %2106 = vmatprep.subr.bf16.mxu0 0
        %2107 = vmatpush1.bf16.msra.mxu0 %v2083
        %2108 = vmatprep.subr.bf16.mxu0 0
        %2109 = vmatpush1.bf16.msra.mxu0 0
        %2110 = vmatprep.subr.bf16.mxu0 0
        %2111 = vmatpush1.bf16.msra.mxu0 0
        %2112 = vmatprep.subr.bf16.mxu0 0
        %2113 = vmatpush1.bf16.msra.mxu0 0
        %2114 = vmatprep.subr.bf16.mxu0 0
        %2115 = vmatpush1.bf16.msra.mxu0 0
        %2116 = vmatprep.subr.bf16.mxu0 0
        %2117 = vmatpush1.bf16.msra.mxu0 0
        %2118 = vmatprep.subr.bf16.mxu0 0
        %2119 = vmatpush1.bf16.msra.mxu0 0
        %2120 = vmatprep.subr.bf16.mxu0 0
        %2121 = vmatpush1.bf16.msra.mxu0 0
        %2122 = vmatprep.subr.bf16.mxu0 0
        %2123 = vmatpush1.bf16.msra.mxu0 0
        %2124 = vmatprep.mubr.bf16.mxu0 0
        %2125 = vmatmul.mubr.bf16.gmra.mrb[0].mxu0 %v2011
        %v2126 = vpop.f32.mrb[0].mxu0
        %v2127 = vadd.f32 0.0, %v2126
        %v2128 = vpop.f32.mrb[0].mxu0
        %v2129 = vpop.f32.mrb[0].mxu0
        %v2130 = vadd.f32 0.0, %v2129
        %v2131 = vpop.f32.mrb[0].mxu0
        %2132 = vmatprep.mubr.bf16.mxu0 0
        %2133 = vmatmul.mubr.bf16.gmra.mrb[0].mxu0 %v2012
        %v2134 = vpop.f32.mrb[0].mxu0
        %v2135 = vadd.f32 0.0, %v2134
        %v2136 = vpop.f32.mrb[0].mxu0
        %v2137 = vpop.f32.mrb[0].mxu0
        %v2138 = vadd.f32 0.0, %v2137
        %v2139 = vpop.f32.mrb[0].mxu0
        %2140 = vmatprep.mubr.bf16.mxu0 0
        %2141 = vmatmul.mubr.bf16.gmra.mrb[0].mxu0 %v2013
        %v2142 = vpop.f32.mrb[0].mxu0
        %v2143 = vadd.f32 0.0, %v2142
        %v2144 = vpop.f32.mrb[0].mxu0
        %v2145 = vpop.f32.mrb[0].mxu0
        %v2146 = vadd.f32 0.0, %v2145
        %v2147 = vpop.f32.mrb[0].mxu0
        %2148 = vmatprep.mubr.bf16.mxu0 0
        %2149 = vmatmul.mubr.bf16.gmra.mrb[0].mxu0 %v2014
        %v2150 = vpop.f32.mrb[0].mxu0
        %v2151 = vadd.f32 0.0, %v2150
        %v2152 = vpop.f32.mrb[0].mxu0
        %v2153 = vpop.f32.mrb[0].mxu0
        %v2154 = vadd.f32 0.0, %v2153
        %v2155 = vpop.f32.mrb[0].mxu0
        %2156 = vmatprep.mubr.bf16.mxu0 0
        %2157 = vmatmul.mubr.bf16.gmra.mrb[0].mxu0 %v2015
        %v2158 = vpop.f32.mrb[0].mxu0
        %v2159 = vadd.f32 0.0, %v2158
        %v2160 = vpop.f32.mrb[0].mxu0
        %v2161 = vpop.f32.mrb[0].mxu0
        %v2162 = vadd.f32 0.0, %v2161
        %v2163 = vpop.f32.mrb[0].mxu0
        %2164 = vmatprep.mubr.bf16.mxu0 0
        %2165 = vmatmul.mubr.bf16.gmra.mrb[0].mxu0 %v2016
        %v2166 = vpop.f32.mrb[0].mxu0
        %v2167 = vadd.f32 0.0, %v2166
        %v2168 = vpop.f32.mrb[0].mxu0
        %v2169 = vpop.f32.mrb[0].mxu0
        %v2170 = vadd.f32 0.0, %v2169
        %v2171 = vpop.f32.mrb[0].mxu0
        %2172 = vmatprep.mubr.bf16.mxu0 0
        %2173 = vmatmul.mubr.bf16.gmra.mrb[0].mxu0 %v2017
        %v2174 = vpop.f32.mrb[0].mxu0
        %v2175 = vadd.f32 0.0, %v2174
        %v2176 = vpop.f32.mrb[0].mxu0
        %v2177 = vpop.f32.mrb[0].mxu0
        %v2178 = vadd.f32 0.0, %v2177
        %v2179 = vpop.f32.mrb[0].mxu0
        %2180 = vmatprep.mubr.bf16.mxu0 0
        %2181 = vmatmul.mubr.bf16.gmra.mrb[0].mxu0 %v2018
        %v2182 = vpop.f32.mrb[0].mxu0
        %v2183 = vadd.f32 0.0, %v2182
        %v2184 = vpop.f32.mrb[0].mxu0
        %v2185 = vpop.f32.mrb[0].mxu0
        %v2186 = vadd.f32 0.0, %v2185
        %v2187 = vpop.f32.mrb[0].mxu0
        %2188 = vmatprep.mubr.bf16.mxu0 0
        %2189 = vmatmul.mubr.bf16.gmra.mrb[0].mxu0 %v2019
        %v2190 = vpop.f32.mrb[0].mxu0
        %v2191 = vadd.f32 0.0, %v2190
        %v2192 = vpop.f32.mrb[0].mxu0
        %v2193 = vpop.f32.mrb[0].mxu0
        %v2194 = vadd.f32 0.0, %v2193
        %v2195 = vpop.f32.mrb[0].mxu0
        %2196 = vmatprep.mubr.bf16.mxu0 0
        %2197 = vmatmul.mubr.bf16.gmra.mrb[0].mxu0 %v2020
        %v2198 = vpop.f32.mrb[0].mxu0
        %v2199 = vadd.f32 0.0, %v2198
        %v2200 = vpop.f32.mrb[0].mxu0
        %v2201 = vpop.f32.mrb[0].mxu0
        %v2202 = vadd.f32 0.0, %v2201
        %v2203 = vpop.f32.mrb[0].mxu0
        %2204 = vmatprep.mubr.bf16.mxu0 0
        %2205 = vmatmul.mubr.bf16.gmra.mrb[0].mxu0 %v2021
        %v2206 = vpop.f32.mrb[0].mxu0
        %v2207 = vadd.f32 0.0, %v2206
        %v2208 = vpop.f32.mrb[0].mxu0
        %v2209 = vpop.f32.mrb[0].mxu0
        %v2210 = vadd.f32 0.0, %v2209
        %v2211 = vpop.f32.mrb[0].mxu0
        %2212 = vmatprep.mubr.bf16.mxu0 0
        %2213 = vmatmul.mubr.bf16.gmra.mrb[0].mxu0 %v2022
        %v2214 = vpop.f32.mrb[0].mxu0
        %v2215 = vadd.f32 0.0, %v2214
        %v2216 = vpop.f32.mrb[0].mxu0
        %v2217 = vpop.f32.mrb[0].mxu0
        %v2218 = vadd.f32 0.0, %v2217
        %v2219 = vpop.f32.mrb[0].mxu0
        %2220 = vmatprep.mubr.bf16.mxu0 0
        %2221 = vmatmul.mubr.bf16.gmra.mrb[0].mxu0 %v2023
        %v2222 = vpop.f32.mrb[0].mxu0
        %v2223 = vadd.f32 0.0, %v2222
        %v2224 = vpop.f32.mrb[0].mxu0
        %v2225 = vpop.f32.mrb[0].mxu0
        %v2226 = vadd.f32 0.0, %v2225
        %v2227 = vpop.f32.mrb[0].mxu0
        %2228 = vmatprep.mubr.bf16.mxu0 0
        %2229 = vmatmul.mubr.bf16.gmra.mrb[0].mxu0 %v2024
        %v2230 = vpop.f32.mrb[0].mxu0
        %v2231 = vadd.f32 0.0, %v2230
        %v2232 = vpop.f32.mrb[0].mxu0
        %v2233 = vpop.f32.mrb[0].mxu0
        %v2234 = vadd.f32 0.0, %v2233
        %v2235 = vpop.f32.mrb[0].mxu0
        %2236 = vmatprep.mubr.bf16.mxu0 0
        %2237 = vmatmul.mubr.bf16.gmra.mrb[0].mxu0 %v2025
        %v2238 = vpop.f32.mrb[0].mxu0
        %v2239 = vadd.f32 0.0, %v2238
        %v2240 = vpop.f32.mrb[0].mxu0
        %v2241 = vpop.f32.mrb[0].mxu0
        %v2242 = vadd.f32 0.0, %v2241
        %v2243 = vpop.f32.mrb[0].mxu0
        %2244 = vmatprep.mubr.bf16.mxu0 0
        %2245 = vmatmul.mubr.bf16.gmra.mrb[0].mxu0 %v2026
        %v2246 = vpop.f32.mrb[0].mxu0
        %v2247 = vadd.f32 0.0, %v2246
        %v2248 = vpop.f32.mrb[0].mxu0
        %v2249 = vpop.f32.mrb[0].mxu0
        %v2250 = vadd.f32 0.0, %v2249
        %v2251 = vpop.f32.mrb[0].mxu0
        %2252 = vdwg.mxu0
        %v2253 = vadd.f32 %v1947, %v2127
        %v2254 = vadd.f32 %v1948, %v2130
        %v2255 = vadd.f32 %v1949, %v2135
        %v2256 = vadd.f32 %v1950, %v2138
        %v2257 = vadd.f32 %v1951, %v2143
        %v2258 = vadd.f32 %v1952, %v2146
        %v2259 = vadd.f32 %v1953, %v2151
        %v2260 = vadd.f32 %v1954, %v2154
        %v2261 = vadd.f32 %v1955, %v2159
        %v2262 = vadd.f32 %v1956, %v2162
        %v2263 = vadd.f32 %v1957, %v2167
        %v2264 = vadd.f32 %v1958, %v2170
        %v2265 = vadd.f32 %v1959, %v2175
        %v2266 = vadd.f32 %v1960, %v2178
        %v2267 = vadd.f32 %v1961, %v2183
        %v2268 = vadd.f32 %v1962, %v2186
        %v2269 = vadd.f32 %v1963, %v2191
        %v2270 = vadd.f32 %v1964, %v2194
        %v2271 = vadd.f32 %v1965, %v2199
        %v2272 = vadd.f32 %v1966, %v2202
        %v2273 = vadd.f32 %v1967, %v2207
        %v2274 = vadd.f32 %v1968, %v2210
        %v2275 = vadd.f32 %v1969, %v2215
        %v2276 = vadd.f32 %v1970, %v2218
        %v2277 = vadd.f32 %v1971, %v2223
        %v2278 = vadd.f32 %v1972, %v2226
        %v2279 = vadd.f32 %v1973, %v2231
        %v2280 = vadd.f32 %v1974, %v2234
        %v2281 = vadd.f32 %v1975, %v2239
        %v2282 = vadd.f32 %v1976, %v2242
        %v2283 = vadd.f32 %v1977, %v2247
        %v2284 = vadd.f32 %v1978, %v2250
        %v2285 = vld [vmem:[%s787 + $0x9] sm:$0xff]
        %v2286 = vld [vmem:[%s787 + $0x11] sm:$0xff]
        %v2287 = vld [vmem:[%s787 + $0x29] sm:$0xff]
        %v2288 = vld [vmem:[%s787 + $0x31] sm:$0xff]
        %v2289 = vld [vmem:[%s787 + $0x49] sm:$0xff]
        %v2290 = vld [vmem:[%s787 + $0x51] sm:$0xff]
        %v2291 = vld [vmem:[%s787 + $0x69] sm:$0xff]
        %v2292 = vld [vmem:[%s787 + $0x71] sm:$0xff]
        %v2293 = vld [vmem:[%s787 + $0x89] sm:$0xff]
        %v2294 = vld [vmem:[%s787 + $0x91] sm:$0xff]
        %v2295 = vld [vmem:[%s787 + $0xa9] sm:$0xff]
        %v2296 = vld [vmem:[%s787 + $0xb1] sm:$0xff]
        %v2297 = vld [vmem:[%s787 + $0xc9] sm:$0xff]
        %v2298 = vld [vmem:[%s787 + $0xd1] sm:$0xff]
        %v2299 = vld [vmem:[%s787 + $0xe9] sm:$0xff]
        %v2300 = vld [vmem:[%s787 + $0xf1] sm:$0xff]
        %v2301 = vld [vmem:[%s787 + $0x109] sm:$0xff]
        %v2302 = vld [vmem:[%s787 + $0x111] sm:$0xff]
        %v2303 = vld [vmem:[%s787 + $0x129] sm:$0xff]
        %v2304 = vld [vmem:[%s787 + $0x131] sm:$0xff]
        %v2305 = vld [vmem:[%s787 + $0x149] sm:$0xff]
        %v2306 = vld [vmem:[%s787 + $0x151] sm:$0xff]
        %v2307 = vld [vmem:[%s787 + $0x169] sm:$0xff]
        %v2308 = vld [vmem:[%s787 + $0x171] sm:$0xff]
        %v2309 = vld [vmem:[%s787 + $0x189] sm:$0xff]
        %v2310 = vld [vmem:[%s787 + $0x191] sm:$0xff]
        %v2311 = vld [vmem:[%s787 + $0x1a9] sm:$0xff]
        %v2312 = vld [vmem:[%s787 + $0x1b1] sm:$0xff]
        %v2313 = vld [vmem:[%s787 + $0x1c9] sm:$0xff]
        %v2314 = vld [vmem:[%s787 + $0x1d1] sm:$0xff]
        %v2315 = vld [vmem:[%s787 + $0x1e9] sm:$0xff]
        %v2316 = vld [vmem:[%s787 + $0x1f1] sm:$0xff]
        %v2317 = vpack.c.bf16 %v2286, %v2285
        %v2318 = vpack.c.bf16 %v2288, %v2287
        %v2319 = vpack.c.bf16 %v2290, %v2289
        %v2320 = vpack.c.bf16 %v2292, %v2291
        %v2321 = vpack.c.bf16 %v2294, %v2293
        %v2322 = vpack.c.bf16 %v2296, %v2295
        %v2323 = vpack.c.bf16 %v2298, %v2297
        %v2324 = vpack.c.bf16 %v2300, %v2299
        %v2325 = vpack.c.bf16 %v2302, %v2301
        %v2326 = vpack.c.bf16 %v2304, %v2303
        %v2327 = vpack.c.bf16 %v2306, %v2305
        %v2328 = vpack.c.bf16 %v2308, %v2307
        %v2329 = vpack.c.bf16 %v2310, %v2309
        %v2330 = vpack.c.bf16 %v2312, %v2311
        %v2331 = vpack.c.bf16 %v2314, %v2313
        %v2332 = vpack.c.bf16 %v2316, %v2315
        %s2333 = scalar_lea.vmem [#allocation3], 320
        %v2334 = vld [vmem:[%s2333] sm:$0xf]
        %v2335 = vld [vmem:[%s2333 + $0x4] sm:$0xf]
        %v2336 = vld [vmem:[%s2333 + $0x8] sm:$0xf]
        %v2337 = vld [vmem:[%s2333 + $0xc] sm:$0xf]
        %v2338 = vld [vmem:[%s2333 + $0x10] sm:$0xf]
        %v2339 = vld [vmem:[%s2333 + $0x14] sm:$0xf]
        %v2340 = vld [vmem:[%s2333 + $0x18] sm:$0xf]
        %v2341 = vld [vmem:[%s2333 + $0x1c] sm:$0xf]
        %v2342 = vld [vmem:[%s2333 + $0x20] sm:$0xf]
        %v2343 = vld [vmem:[%s2333 + $0x24] sm:$0xf]
        %v2344 = vld [vmem:[%s2333 + $0x28] sm:$0xf]
        %v2345 = vld [vmem:[%s2333 + $0x2c] sm:$0xf]
        %v2346 = vld [vmem:[%s2333 + $0x30] sm:$0xf]
        %v2347 = vld [vmem:[%s2333 + $0x34] sm:$0xf]
        %v2348 = vld [vmem:[%s2333 + $0x38] sm:$0xf]
        %v2349 = vld [vmem:[%s2333 + $0x3c] sm:$0xf]
        %v2366 = vunpack.c.l.b16 %v2334
        %v2367 = vunpack.c.l.b16 %v2335
        %v2368 = vunpack.c.l.b16 %v2336
        %v2369 = vunpack.c.l.b16 %v2337
        %v2370 = vunpack.c.l.b16 %v2338
        %v2371 = vunpack.c.l.b16 %v2339
        %v2372 = vunpack.c.l.b16 %v2340
        %v2373 = vunpack.c.l.b16 %v2341
        %v2374 = vunpack.c.l.b16 %v2342
        %v2375 = vunpack.c.l.b16 %v2343
        %v2376 = vunpack.c.l.b16 %v2344
        %v2377 = vunpack.c.l.b16 %v2345
        %v2378 = vunpack.c.l.b16 %v2346
        %v2379 = vunpack.c.l.b16 %v2347
        %v2380 = vunpack.c.l.b16 %v2348
        %v2381 = vunpack.c.l.b16 %v2349
        %v2382 = vpack.c.b16 %v2367, %v2366
        %v2383 = vpack.c.b16 %v2369, %v2368
        %v2384 = vpack.c.b16 %v2371, %v2370
        %v2385 = vpack.c.b16 %v2373, %v2372
        %v2386 = vpack.c.b16 %v2375, %v2374
        %v2387 = vpack.c.b16 %v2377, %v2376
        %v2388 = vpack.c.b16 %v2379, %v2378
        %v2389 = vpack.c.b16 %v2381, %v2380
        %2398 = vmatprep.subr.bf16.mxu0 0
        %2399 = vmatpush1.bf16.msra.mxu0 %v2382
        %2400 = vmatprep.subr.bf16.mxu0 0
        %2401 = vmatpush1.bf16.msra.mxu0 %v2383
        %2402 = vmatprep.subr.bf16.mxu0 0
        %2403 = vmatpush1.bf16.msra.mxu0 %v2384
        %2404 = vmatprep.subr.bf16.mxu0 0
        %2405 = vmatpush1.bf16.msra.mxu0 %v2385
        %2406 = vmatprep.subr.bf16.mxu0 0
        %2407 = vmatpush1.bf16.msra.mxu0 %v2386
        %2408 = vmatprep.subr.bf16.mxu0 0
        %2409 = vmatpush1.bf16.msra.mxu0 %v2387
        %2410 = vmatprep.subr.bf16.mxu0 0
        %2411 = vmatpush1.bf16.msra.mxu0 %v2388
        %2412 = vmatprep.subr.bf16.mxu0 0
        %2413 = vmatpush1.bf16.msra.mxu0 %v2389
        %2414 = vmatprep.subr.bf16.mxu0 0
        %2415 = vmatpush1.bf16.msra.mxu0 0
        %2416 = vmatprep.subr.bf16.mxu0 0
        %2417 = vmatpush1.bf16.msra.mxu0 0
        %2418 = vmatprep.subr.bf16.mxu0 0
        %2419 = vmatpush1.bf16.msra.mxu0 0
        %2420 = vmatprep.subr.bf16.mxu0 0
        %2421 = vmatpush1.bf16.msra.mxu0 0
        %2422 = vmatprep.subr.bf16.mxu0 0
        %2423 = vmatpush1.bf16.msra.mxu0 0
        %2424 = vmatprep.subr.bf16.mxu0 0
        %2425 = vmatpush1.bf16.msra.mxu0 0
        %2426 = vmatprep.subr.bf16.mxu0 0
        %2427 = vmatpush1.bf16.msra.mxu0 0
        %2428 = vmatprep.subr.bf16.mxu0 0
        %2429 = vmatpush1.bf16.msra.mxu0 0
        %2430 = vmatprep.mubr.bf16.mxu0 0
        %2431 = vmatmul.mubr.bf16.gmra.mrb[0].mxu0 %v2317
        %v2432 = vpop.f32.mrb[0].mxu0
        %v2433 = vadd.f32 0.0, %v2432
        %v2434 = vpop.f32.mrb[0].mxu0
        %v2435 = vpop.f32.mrb[0].mxu0
        %v2436 = vadd.f32 0.0, %v2435
        %v2437 = vpop.f32.mrb[0].mxu0
        %2438 = vmatprep.mubr.bf16.mxu0 0
        %2439 = vmatmul.mubr.bf16.gmra.mrb[0].mxu0 %v2318
        %v2440 = vpop.f32.mrb[0].mxu0
        %v2441 = vadd.f32 0.0, %v2440
        %v2442 = vpop.f32.mrb[0].mxu0
        %v2443 = vpop.f32.mrb[0].mxu0
        %v2444 = vadd.f32 0.0, %v2443
        %v2445 = vpop.f32.mrb[0].mxu0
        %2446 = vmatprep.mubr.bf16.mxu0 0
        %2447 = vmatmul.mubr.bf16.gmra.mrb[0].mxu0 %v2319
        %v2448 = vpop.f32.mrb[0].mxu0
        %v2449 = vadd.f32 0.0, %v2448
        %v2450 = vpop.f32.mrb[0].mxu0
        %v2451 = vpop.f32.mrb[0].mxu0
        %v2452 = vadd.f32 0.0, %v2451
        %v2453 = vpop.f32.mrb[0].mxu0
        %2454 = vmatprep.mubr.bf16.mxu0 0
        %2455 = vmatmul.mubr.bf16.gmra.mrb[0].mxu0 %v2320
        %v2456 = vpop.f32.mrb[0].mxu0
        %v2457 = vadd.f32 0.0, %v2456
        %v2458 = vpop.f32.mrb[0].mxu0
        %v2459 = vpop.f32.mrb[0].mxu0
        %v2460 = vadd.f32 0.0, %v2459
        %v2461 = vpop.f32.mrb[0].mxu0
        %2462 = vmatprep.mubr.bf16.mxu0 0
        %2463 = vmatmul.mubr.bf16.gmra.mrb[0].mxu0 %v2321
        %v2464 = vpop.f32.mrb[0].mxu0
        %v2465 = vadd.f32 0.0, %v2464
        %v2466 = vpop.f32.mrb[0].mxu0
        %v2467 = vpop.f32.mrb[0].mxu0
        %v2468 = vadd.f32 0.0, %v2467
        %v2469 = vpop.f32.mrb[0].mxu0
        %2470 = vmatprep.mubr.bf16.mxu0 0
        %2471 = vmatmul.mubr.bf16.gmra.mrb[0].mxu0 %v2322
        %v2472 = vpop.f32.mrb[0].mxu0
        %v2473 = vadd.f32 0.0, %v2472
        %v2474 = vpop.f32.mrb[0].mxu0
        %v2475 = vpop.f32.mrb[0].mxu0
        %v2476 = vadd.f32 0.0, %v2475
        %v2477 = vpop.f32.mrb[0].mxu0
        %2478 = vmatprep.mubr.bf16.mxu0 0
        %2479 = vmatmul.mubr.bf16.gmra.mrb[0].mxu0 %v2323
        %v2480 = vpop.f32.mrb[0].mxu0
        %v2481 = vadd.f32 0.0, %v2480
        %v2482 = vpop.f32.mrb[0].mxu0
        %v2483 = vpop.f32.mrb[0].mxu0
        %v2484 = vadd.f32 0.0, %v2483
        %v2485 = vpop.f32.mrb[0].mxu0
        %2486 = vmatprep.mubr.bf16.mxu0 0
        %2487 = vmatmul.mubr.bf16.gmra.mrb[0].mxu0 %v2324
        %v2488 = vpop.f32.mrb[0].mxu0
        %v2489 = vadd.f32 0.0, %v2488
        %v2490 = vpop.f32.mrb[0].mxu0
        %v2491 = vpop.f32.mrb[0].mxu0
        %v2492 = vadd.f32 0.0, %v2491
        %v2493 = vpop.f32.mrb[0].mxu0
        %2494 = vmatprep.mubr.bf16.mxu0 0
        %2495 = vmatmul.mubr.bf16.gmra.mrb[0].mxu0 %v2325
        %v2496 = vpop.f32.mrb[0].mxu0
        %v2497 = vadd.f32 0.0, %v2496
        %v2498 = vpop.f32.mrb[0].mxu0
        %v2499 = vpop.f32.mrb[0].mxu0
        %v2500 = vadd.f32 0.0, %v2499
        %v2501 = vpop.f32.mrb[0].mxu0
        %2502 = vmatprep.mubr.bf16.mxu0 0
        %2503 = vmatmul.mubr.bf16.gmra.mrb[0].mxu0 %v2326
        %v2504 = vpop.f32.mrb[0].mxu0
        %v2505 = vadd.f32 0.0, %v2504
        %v2506 = vpop.f32.mrb[0].mxu0
        %v2507 = vpop.f32.mrb[0].mxu0
        %v2508 = vadd.f32 0.0, %v2507
        %v2509 = vpop.f32.mrb[0].mxu0
        %2510 = vmatprep.mubr.bf16.mxu0 0
        %2511 = vmatmul.mubr.bf16.gmra.mrb[0].mxu0 %v2327
        %v2512 = vpop.f32.mrb[0].mxu0
        %v2513 = vadd.f32 0.0, %v2512
        %v2514 = vpop.f32.mrb[0].mxu0
        %v2515 = vpop.f32.mrb[0].mxu0
        %v2516 = vadd.f32 0.0, %v2515
        %v2517 = vpop.f32.mrb[0].mxu0
        %2518 = vmatprep.mubr.bf16.mxu0 0
        %2519 = vmatmul.mubr.bf16.gmra.mrb[0].mxu0 %v2328
        %v2520 = vpop.f32.mrb[0].mxu0
        %v2521 = vadd.f32 0.0, %v2520
        %v2522 = vpop.f32.mrb[0].mxu0
        %v2523 = vpop.f32.mrb[0].mxu0
        %v2524 = vadd.f32 0.0, %v2523
        %v2525 = vpop.f32.mrb[0].mxu0
        %2526 = vmatprep.mubr.bf16.mxu0 0
        %2527 = vmatmul.mubr.bf16.gmra.mrb[0].mxu0 %v2329
        %v2528 = vpop.f32.mrb[0].mxu0
        %v2529 = vadd.f32 0.0, %v2528
        %v2530 = vpop.f32.mrb[0].mxu0
        %v2531 = vpop.f32.mrb[0].mxu0
        %v2532 = vadd.f32 0.0, %v2531
        %v2533 = vpop.f32.mrb[0].mxu0
        %2534 = vmatprep.mubr.bf16.mxu0 0
        %2535 = vmatmul.mubr.bf16.gmra.mrb[0].mxu0 %v2330
        %v2536 = vpop.f32.mrb[0].mxu0
        %v2537 = vadd.f32 0.0, %v2536
        %v2538 = vpop.f32.mrb[0].mxu0
        %v2539 = vpop.f32.mrb[0].mxu0
        %v2540 = vadd.f32 0.0, %v2539
        %v2541 = vpop.f32.mrb[0].mxu0
        %2542 = vmatprep.mubr.bf16.mxu0 0
        %2543 = vmatmul.mubr.bf16.gmra.mrb[0].mxu0 %v2331
        %v2544 = vpop.f32.mrb[0].mxu0
        %v2545 = vadd.f32 0.0, %v2544
        %v2546 = vpop.f32.mrb[0].mxu0
        %v2547 = vpop.f32.mrb[0].mxu0
        %v2548 = vadd.f32 0.0, %v2547
        %v2549 = vpop.f32.mrb[0].mxu0
        %2550 = vmatprep.mubr.bf16.mxu0 0
        %2551 = vmatmul.mubr.bf16.gmra.mrb[0].mxu0 %v2332
        %v2552 = vpop.f32.mrb[0].mxu0
        %v2553 = vadd.f32 0.0, %v2552
        %v2554 = vpop.f32.mrb[0].mxu0
        %v2555 = vpop.f32.mrb[0].mxu0
        %v2556 = vadd.f32 0.0, %v2555
        %v2557 = vpop.f32.mrb[0].mxu0
        %2558 = vdwg.mxu0
        %v2559 = vadd.f32 %v2253, %v2433
        %v2560 = vadd.f32 %v2254, %v2436
        %v2561 = vadd.f32 %v2255, %v2441
        %v2562 = vadd.f32 %v2256, %v2444
        %v2563 = vadd.f32 %v2257, %v2449
        %v2564 = vadd.f32 %v2258, %v2452
        %v2565 = vadd.f32 %v2259, %v2457
        %v2566 = vadd.f32 %v2260, %v2460
        %v2567 = vadd.f32 %v2261, %v2465
        %v2568 = vadd.f32 %v2262, %v2468
        %v2569 = vadd.f32 %v2263, %v2473
        %v2570 = vadd.f32 %v2264, %v2476
        %v2571 = vadd.f32 %v2265, %v2481
        %v2572 = vadd.f32 %v2266, %v2484
        %v2573 = vadd.f32 %v2267, %v2489
        %v2574 = vadd.f32 %v2268, %v2492
        %v2575 = vadd.f32 %v2269, %v2497
        %v2576 = vadd.f32 %v2270, %v2500
        %v2577 = vadd.f32 %v2271, %v2505
        %v2578 = vadd.f32 %v2272, %v2508
        %v2579 = vadd.f32 %v2273, %v2513
        %v2580 = vadd.f32 %v2274, %v2516
        %v2581 = vadd.f32 %v2275, %v2521
        %v2582 = vadd.f32 %v2276, %v2524
        %v2583 = vadd.f32 %v2277, %v2529
        %v2584 = vadd.f32 %v2278, %v2532
        %v2585 = vadd.f32 %v2279, %v2537
        %v2586 = vadd.f32 %v2280, %v2540
        %v2587 = vadd.f32 %v2281, %v2545
        %v2588 = vadd.f32 %v2282, %v2548
        %v2589 = vadd.f32 %v2283, %v2553
        %v2590 = vadd.f32 %v2284, %v2556
        %s2591 = scalar_lea.vmem [#allocation2], 64
        %v2592 = vld [vmem:[%s2591 + $0x7] sm:$0xff]
        %v2593 = vld [vmem:[%s2591 + $0xf] sm:$0xff]
        %v2594 = vld [vmem:[%s2591 + $0x27] sm:$0xff]
        %v2595 = vld [vmem:[%s2591 + $0x2f] sm:$0xff]
        %v2596 = vld [vmem:[%s2591 + $0x47] sm:$0xff]
        %v2597 = vld [vmem:[%s2591 + $0x4f] sm:$0xff]
        %v2598 = vld [vmem:[%s2591 + $0x67] sm:$0xff]
        %v2599 = vld [vmem:[%s2591 + $0x6f] sm:$0xff]
        %v2600 = vld [vmem:[%s2591 + $0x87] sm:$0xff]
        %v2601 = vld [vmem:[%s2591 + $0x8f] sm:$0xff]
        %v2602 = vld [vmem:[%s2591 + $0xa7] sm:$0xff]
        %v2603 = vld [vmem:[%s2591 + $0xaf] sm:$0xff]
        %v2604 = vld [vmem:[%s2591 + $0xc7] sm:$0xff]
        %v2605 = vld [vmem:[%s2591 + $0xcf] sm:$0xff]
        %v2606 = vld [vmem:[%s2591 + $0xe7] sm:$0xff]
        %v2607 = vld [vmem:[%s2591 + $0xef] sm:$0xff]
        %v2608 = vld [vmem:[%s2591 + $0x107] sm:$0xff]
        %v2609 = vld [vmem:[%s2591 + $0x10f] sm:$0xff]
        %v2610 = vld [vmem:[%s2591 + $0x127] sm:$0xff]
        %v2611 = vld [vmem:[%s2591 + $0x12f] sm:$0xff]
        %v2612 = vld [vmem:[%s2591 + $0x147] sm:$0xff]
        %v2613 = vld [vmem:[%s2591 + $0x14f] sm:$0xff]
        %v2614 = vld [vmem:[%s2591 + $0x167] sm:$0xff]
        %v2615 = vld [vmem:[%s2591 + $0x16f] sm:$0xff]
        %v2616 = vld [vmem:[%s2591 + $0x187] sm:$0xff]
        %v2617 = vld [vmem:[%s2591 + $0x18f] sm:$0xff]
        %v2618 = vld [vmem:[%s2591 + $0x1a7] sm:$0xff]
        %v2619 = vld [vmem:[%s2591 + $0x1af] sm:$0xff]
        %v2620 = vld [vmem:[%s2591 + $0x1c7] sm:$0xff]
        %v2621 = vld [vmem:[%s2591 + $0x1cf] sm:$0xff]
        %v2622 = vld [vmem:[%s2591 + $0x1e7] sm:$0xff]
        %v2623 = vld [vmem:[%s2591 + $0x1ef] sm:$0xff]
        %v2624 = vpack.c.bf16 %v2593, %v2592
        %v2625 = vpack.c.bf16 %v2595, %v2594
        %v2626 = vpack.c.bf16 %v2597, %v2596
        %v2627 = vpack.c.bf16 %v2599, %v2598
        %v2628 = vpack.c.bf16 %v2601, %v2600
        %v2629 = vpack.c.bf16 %v2603, %v2602
        %v2630 = vpack.c.bf16 %v2605, %v2604
        %v2631 = vpack.c.bf16 %v2607, %v2606
        %v2632 = vpack.c.bf16 %v2609, %v2608
        %v2633 = vpack.c.bf16 %v2611, %v2610
        %v2634 = vpack.c.bf16 %v2613, %v2612
        %v2635 = vpack.c.bf16 %v2615, %v2614
        %v2636 = vpack.c.bf16 %v2617, %v2616
        %v2637 = vpack.c.bf16 %v2619, %v2618
        %v2638 = vpack.c.bf16 %v2621, %v2620
        %v2639 = vpack.c.bf16 %v2623, %v2622
        %s2640 = scalar_lea.vmem [#allocation3], 384
        %v2641 = vld [vmem:[%s2640] sm:$0xf]
        %v2642 = vld [vmem:[%s2640 + $0x4] sm:$0xf]
        %v2643 = vld [vmem:[%s2640 + $0x8] sm:$0xf]
        %v2644 = vld [vmem:[%s2640 + $0xc] sm:$0xf]
        %v2645 = vld [vmem:[%s2640 + $0x10] sm:$0xf]
        %v2646 = vld [vmem:[%s2640 + $0x14] sm:$0xf]
        %v2647 = vld [vmem:[%s2640 + $0x18] sm:$0xf]
        %v2648 = vld [vmem:[%s2640 + $0x1c] sm:$0xf]
        %v2649 = vld [vmem:[%s2640 + $0x20] sm:$0xf]
        %v2650 = vld [vmem:[%s2640 + $0x24] sm:$0xf]
        %v2651 = vld [vmem:[%s2640 + $0x28] sm:$0xf]
        %v2652 = vld [vmem:[%s2640 + $0x2c] sm:$0xf]
        %v2653 = vld [vmem:[%s2640 + $0x30] sm:$0xf]
        %v2654 = vld [vmem:[%s2640 + $0x34] sm:$0xf]
        %v2655 = vld [vmem:[%s2640 + $0x38] sm:$0xf]
        %v2656 = vld [vmem:[%s2640 + $0x3c] sm:$0xf]
        %v2673 = vunpack.c.l.b16 %v2641
        %v2674 = vunpack.c.l.b16 %v2642
        %v2675 = vunpack.c.l.b16 %v2643
        %v2676 = vunpack.c.l.b16 %v2644
        %v2677 = vunpack.c.l.b16 %v2645
        %v2678 = vunpack.c.l.b16 %v2646
        %v2679 = vunpack.c.l.b16 %v2647
        %v2680 = vunpack.c.l.b16 %v2648
        %v2681 = vunpack.c.l.b16 %v2649
        %v2682 = vunpack.c.l.b16 %v2650
        %v2683 = vunpack.c.l.b16 %v2651
        %v2684 = vunpack.c.l.b16 %v2652
        %v2685 = vunpack.c.l.b16 %v2653
        %v2686 = vunpack.c.l.b16 %v2654
        %v2687 = vunpack.c.l.b16 %v2655
        %v2688 = vunpack.c.l.b16 %v2656
        %v2689 = vpack.c.b16 %v2674, %v2673
        %v2690 = vpack.c.b16 %v2676, %v2675
        %v2691 = vpack.c.b16 %v2678, %v2677
        %v2692 = vpack.c.b16 %v2680, %v2679
        %v2693 = vpack.c.b16 %v2682, %v2681
        %v2694 = vpack.c.b16 %v2684, %v2683
        %v2695 = vpack.c.b16 %v2686, %v2685
        %v2696 = vpack.c.b16 %v2688, %v2687
        %2705 = vmatprep.subr.bf16.mxu0 0
        %2706 = vmatpush1.bf16.msra.mxu0 %v2689
        %2707 = vmatprep.subr.bf16.mxu0 0
        %2708 = vmatpush1.bf16.msra.mxu0 %v2690
        %2709 = vmatprep.subr.bf16.mxu0 0
        %2710 = vmatpush1.bf16.msra.mxu0 %v2691
        %2711 = vmatprep.subr.bf16.mxu0 0
        %2712 = vmatpush1.bf16.msra.mxu0 %v2692
        %2713 = vmatprep.subr.bf16.mxu0 0
        %2714 = vmatpush1.bf16.msra.mxu0 %v2693
        %2715 = vmatprep.subr.bf16.mxu0 0
        %2716 = vmatpush1.bf16.msra.mxu0 %v2694
        %2717 = vmatprep.subr.bf16.mxu0 0
        %2718 = vmatpush1.bf16.msra.mxu0 %v2695
        %2719 = vmatprep.subr.bf16.mxu0 0
        %2720 = vmatpush1.bf16.msra.mxu0 %v2696
        %2721 = vmatprep.subr.bf16.mxu0 0
        %2722 = vmatpush1.bf16.msra.mxu0 0
        %2723 = vmatprep.subr.bf16.mxu0 0
        %2724 = vmatpush1.bf16.msra.mxu0 0
        %2725 = vmatprep.subr.bf16.mxu0 0
        %2726 = vmatpush1.bf16.msra.mxu0 0
        %2727 = vmatprep.subr.bf16.mxu0 0
        %2728 = vmatpush1.bf16.msra.mxu0 0
        %2729 = vmatprep.subr.bf16.mxu0 0
        %2730 = vmatpush1.bf16.msra.mxu0 0
        %2731 = vmatprep.subr.bf16.mxu0 0
        %2732 = vmatpush1.bf16.msra.mxu0 0
        %2733 = vmatprep.subr.bf16.mxu0 0
        %2734 = vmatpush1.bf16.msra.mxu0 0
        %2735 = vmatprep.subr.bf16.mxu0 0
        %2736 = vmatpush1.bf16.msra.mxu0 0
        %2737 = vmatprep.mubr.bf16.mxu0 0
        %2738 = vmatmul.mubr.bf16.gmra.mrb[0].mxu0 %v2624
        %v2739 = vpop.f32.mrb[0].mxu0
        %v2740 = vadd.f32 0.0, %v2739
        %v2741 = vpop.f32.mrb[0].mxu0
        %v2742 = vpop.f32.mrb[0].mxu0
        %v2743 = vadd.f32 0.0, %v2742
        %v2744 = vpop.f32.mrb[0].mxu0
        %2745 = vmatprep.mubr.bf16.mxu0 0
        %2746 = vmatmul.mubr.bf16.gmra.mrb[0].mxu0 %v2625
        %v2747 = vpop.f32.mrb[0].mxu0
        %v2748 = vadd.f32 0.0, %v2747
        %v2749 = vpop.f32.mrb[0].mxu0
        %v2750 = vpop.f32.mrb[0].mxu0
        %v2751 = vadd.f32 0.0, %v2750
        %v2752 = vpop.f32.mrb[0].mxu0
        %2753 = vmatprep.mubr.bf16.mxu0 0
        %2754 = vmatmul.mubr.bf16.gmra.mrb[0].mxu0 %v2626
        %v2755 = vpop.f32.mrb[0].mxu0
        %v2756 = vadd.f32 0.0, %v2755
        %v2757 = vpop.f32.mrb[0].mxu0
        %v2758 = vpop.f32.mrb[0].mxu0
        %v2759 = vadd.f32 0.0, %v2758
        %v2760 = vpop.f32.mrb[0].mxu0
        %2761 = vmatprep.mubr.bf16.mxu0 0
        %2762 = vmatmul.mubr.bf16.gmra.mrb[0].mxu0 %v2627
        %v2763 = vpop.f32.mrb[0].mxu0
        %v2764 = vadd.f32 0.0, %v2763
        %v2765 = vpop.f32.mrb[0].mxu0
        %v2766 = vpop.f32.mrb[0].mxu0
        %v2767 = vadd.f32 0.0, %v2766
        %v2768 = vpop.f32.mrb[0].mxu0
        %2769 = vmatprep.mubr.bf16.mxu0 0
        %2770 = vmatmul.mubr.bf16.gmra.mrb[0].mxu0 %v2628
        %v2771 = vpop.f32.mrb[0].mxu0
        %v2772 = vadd.f32 0.0, %v2771
        %v2773 = vpop.f32.mrb[0].mxu0
        %v2774 = vpop.f32.mrb[0].mxu0
        %v2775 = vadd.f32 0.0, %v2774
        %v2776 = vpop.f32.mrb[0].mxu0
        %2777 = vmatprep.mubr.bf16.mxu0 0
        %2778 = vmatmul.mubr.bf16.gmra.mrb[0].mxu0 %v2629
        %v2779 = vpop.f32.mrb[0].mxu0
        %v2780 = vadd.f32 0.0, %v2779
        %v2781 = vpop.f32.mrb[0].mxu0
        %v2782 = vpop.f32.mrb[0].mxu0
        %v2783 = vadd.f32 0.0, %v2782
        %v2784 = vpop.f32.mrb[0].mxu0
        %2785 = vmatprep.mubr.bf16.mxu0 0
        %2786 = vmatmul.mubr.bf16.gmra.mrb[0].mxu0 %v2630
        %v2787 = vpop.f32.mrb[0].mxu0
        %v2788 = vadd.f32 0.0, %v2787
        %v2789 = vpop.f32.mrb[0].mxu0
        %v2790 = vpop.f32.mrb[0].mxu0
        %v2791 = vadd.f32 0.0, %v2790
        %v2792 = vpop.f32.mrb[0].mxu0
        %2793 = vmatprep.mubr.bf16.mxu0 0
        %2794 = vmatmul.mubr.bf16.gmra.mrb[0].mxu0 %v2631
        %v2795 = vpop.f32.mrb[0].mxu0
        %v2796 = vadd.f32 0.0, %v2795
        %v2797 = vpop.f32.mrb[0].mxu0
        %v2798 = vpop.f32.mrb[0].mxu0
        %v2799 = vadd.f32 0.0, %v2798
        %v2800 = vpop.f32.mrb[0].mxu0
        %2801 = vmatprep.mubr.bf16.mxu0 0
        %2802 = vmatmul.mubr.bf16.gmra.mrb[0].mxu0 %v2632
        %v2803 = vpop.f32.mrb[0].mxu0
        %v2804 = vadd.f32 0.0, %v2803
        %v2805 = vpop.f32.mrb[0].mxu0
        %v2806 = vpop.f32.mrb[0].mxu0
        %v2807 = vadd.f32 0.0, %v2806
        %v2808 = vpop.f32.mrb[0].mxu0
        %2809 = vmatprep.mubr.bf16.mxu0 0
        %2810 = vmatmul.mubr.bf16.gmra.mrb[0].mxu0 %v2633
        %v2811 = vpop.f32.mrb[0].mxu0
        %v2812 = vadd.f32 0.0, %v2811
        %v2813 = vpop.f32.mrb[0].mxu0
        %v2814 = vpop.f32.mrb[0].mxu0
        %v2815 = vadd.f32 0.0, %v2814
        %v2816 = vpop.f32.mrb[0].mxu0
        %2817 = vmatprep.mubr.bf16.mxu0 0
        %2818 = vmatmul.mubr.bf16.gmra.mrb[0].mxu0 %v2634
        %v2819 = vpop.f32.mrb[0].mxu0
        %v2820 = vadd.f32 0.0, %v2819
        %v2821 = vpop.f32.mrb[0].mxu0
        %v2822 = vpop.f32.mrb[0].mxu0
        %v2823 = vadd.f32 0.0, %v2822
        %v2824 = vpop.f32.mrb[0].mxu0
        %2825 = vmatprep.mubr.bf16.mxu0 0
        %2826 = vmatmul.mubr.bf16.gmra.mrb[0].mxu0 %v2635
        %v2827 = vpop.f32.mrb[0].mxu0
        %v2828 = vadd.f32 0.0, %v2827
        %v2829 = vpop.f32.mrb[0].mxu0
        %v2830 = vpop.f32.mrb[0].mxu0
        %v2831 = vadd.f32 0.0, %v2830
        %v2832 = vpop.f32.mrb[0].mxu0
        %2833 = vmatprep.mubr.bf16.mxu0 0
        %2834 = vmatmul.mubr.bf16.gmra.mrb[0].mxu0 %v2636
        %v2835 = vpop.f32.mrb[0].mxu0
        %v2836 = vadd.f32 0.0, %v2835
        %v2837 = vpop.f32.mrb[0].mxu0
        %v2838 = vpop.f32.mrb[0].mxu0
        %v2839 = vadd.f32 0.0, %v2838
        %v2840 = vpop.f32.mrb[0].mxu0
        %2841 = vmatprep.mubr.bf16.mxu0 0
        %2842 = vmatmul.mubr.bf16.gmra.mrb[0].mxu0 %v2637
        %v2843 = vpop.f32.mrb[0].mxu0
        %v2844 = vadd.f32 0.0, %v2843
        %v2845 = vpop.f32.mrb[0].mxu0
        %v2846 = vpop.f32.mrb[0].mxu0
        %v2847 = vadd.f32 0.0, %v2846
        %v2848 = vpop.f32.mrb[0].mxu0
        %2849 = vmatprep.mubr.bf16.mxu0 0
        %2850 = vmatmul.mubr.bf16.gmra.mrb[0].mxu0 %v2638
        %v2851 = vpop.f32.mrb[0].mxu0
        %v2852 = vadd.f32 0.0, %v2851
        %v2853 = vpop.f32.mrb[0].mxu0
        %v2854 = vpop.f32.mrb[0].mxu0
        %v2855 = vadd.f32 0.0, %v2854
        %v2856 = vpop.f32.mrb[0].mxu0
        %2857 = vmatprep.mubr.bf16.mxu0 0
        %2858 = vmatmul.mubr.bf16.gmra.mrb[0].mxu0 %v2639
        %v2859 = vpop.f32.mrb[0].mxu0
        %v2860 = vadd.f32 0.0, %v2859
        %v2861 = vpop.f32.mrb[0].mxu0
        %v2862 = vpop.f32.mrb[0].mxu0
        %v2863 = vadd.f32 0.0, %v2862
        %v2864 = vpop.f32.mrb[0].mxu0
        %2865 = vdwg.mxu0
        %v2866 = vadd.f32 %v2559, %v2740
        %v2867 = vadd.f32 %v2560, %v2743
        %v2868 = vadd.f32 %v2561, %v2748
        %v2869 = vadd.f32 %v2562, %v2751
        %v2870 = vadd.f32 %v2563, %v2756
        %v2871 = vadd.f32 %v2564, %v2759
        %v2872 = vadd.f32 %v2565, %v2764
        %v2873 = vadd.f32 %v2566, %v2767
        %v2874 = vadd.f32 %v2567, %v2772
        %v2875 = vadd.f32 %v2568, %v2775
        %v2876 = vadd.f32 %v2569, %v2780
        %v2877 = vadd.f32 %v2570, %v2783
        %v2878 = vadd.f32 %v2571, %v2788
        %v2879 = vadd.f32 %v2572, %v2791
        %v2880 = vadd.f32 %v2573, %v2796
        %v2881 = vadd.f32 %v2574, %v2799
        %v2882 = vadd.f32 %v2575, %v2804
        %v2883 = vadd.f32 %v2576, %v2807
        %v2884 = vadd.f32 %v2577, %v2812
        %v2885 = vadd.f32 %v2578, %v2815
        %v2886 = vadd.f32 %v2579, %v2820
        %v2887 = vadd.f32 %v2580, %v2823
        %v2888 = vadd.f32 %v2581, %v2828
        %v2889 = vadd.f32 %v2582, %v2831
        %v2890 = vadd.f32 %v2583, %v2836
        %v2891 = vadd.f32 %v2584, %v2839
        %v2892 = vadd.f32 %v2585, %v2844
        %v2893 = vadd.f32 %v2586, %v2847
        %v2894 = vadd.f32 %v2587, %v2852
        %v2895 = vadd.f32 %v2588, %v2855
        %v2896 = vadd.f32 %v2589, %v2860
        %v2897 = vadd.f32 %v2590, %v2863
        %v2898 = vld [vmem:[%s2591 + $0x8] sm:$0xff]
        %v2899 = vld [vmem:[%s2591 + $0x10] sm:$0xff]
        %v2900 = vld [vmem:[%s2591 + $0x28] sm:$0xff]
        %v2901 = vld [vmem:[%s2591 + $0x30] sm:$0xff]
        %v2902 = vld [vmem:[%s2591 + $0x48] sm:$0xff]
        %v2903 = vld [vmem:[%s2591 + $0x50] sm:$0xff]
        %v2904 = vld [vmem:[%s2591 + $0x68] sm:$0xff]
        %v2905 = vld [vmem:[%s2591 + $0x70] sm:$0xff]
        %v2906 = vld [vmem:[%s2591 + $0x88] sm:$0xff]
        %v2907 = vld [vmem:[%s2591 + $0x90] sm:$0xff]
        %v2908 = vld [vmem:[%s2591 + $0xa8] sm:$0xff]
        %v2909 = vld [vmem:[%s2591 + $0xb0] sm:$0xff]
        %v2910 = vld [vmem:[%s2591 + $0xc8] sm:$0xff]
        %v2911 = vld [vmem:[%s2591 + $0xd0] sm:$0xff]
        %v2912 = vld [vmem:[%s2591 + $0xe8] sm:$0xff]
        %v2913 = vld [vmem:[%s2591 + $0xf0] sm:$0xff]
        %v2914 = vld [vmem:[%s2591 + $0x108] sm:$0xff]
        %v2915 = vld [vmem:[%s2591 + $0x110] sm:$0xff]
        %v2916 = vld [vmem:[%s2591 + $0x128] sm:$0xff]
        %v2917 = vld [vmem:[%s2591 + $0x130] sm:$0xff]
        %v2918 = vld [vmem:[%s2591 + $0x148] sm:$0xff]
        %v2919 = vld [vmem:[%s2591 + $0x150] sm:$0xff]
        %v2920 = vld [vmem:[%s2591 + $0x168] sm:$0xff]
        %v2921 = vld [vmem:[%s2591 + $0x170] sm:$0xff]
        %v2922 = vld [vmem:[%s2591 + $0x188] sm:$0xff]
        %v2923 = vld [vmem:[%s2591 + $0x190] sm:$0xff]
        %v2924 = vld [vmem:[%s2591 + $0x1a8] sm:$0xff]
        %v2925 = vld [vmem:[%s2591 + $0x1b0] sm:$0xff]
        %v2926 = vld [vmem:[%s2591 + $0x1c8] sm:$0xff]
        %v2927 = vld [vmem:[%s2591 + $0x1d0] sm:$0xff]
        %v2928 = vld [vmem:[%s2591 + $0x1e8] sm:$0xff]
        %v2929 = vld [vmem:[%s2591 + $0x1f0] sm:$0xff]
        %v2930 = vpack.c.bf16 %v2899, %v2898
        %v2931 = vpack.c.bf16 %v2901, %v2900
        %v2932 = vpack.c.bf16 %v2903, %v2902
        %v2933 = vpack.c.bf16 %v2905, %v2904
        %v2934 = vpack.c.bf16 %v2907, %v2906
        %v2935 = vpack.c.bf16 %v2909, %v2908
        %v2936 = vpack.c.bf16 %v2911, %v2910
        %v2937 = vpack.c.bf16 %v2913, %v2912
        %v2938 = vpack.c.bf16 %v2915, %v2914
        %v2939 = vpack.c.bf16 %v2917, %v2916
        %v2940 = vpack.c.bf16 %v2919, %v2918
        %v2941 = vpack.c.bf16 %v2921, %v2920
        %v2942 = vpack.c.bf16 %v2923, %v2922
        %v2943 = vpack.c.bf16 %v2925, %v2924
        %v2944 = vpack.c.bf16 %v2927, %v2926
        %v2945 = vpack.c.bf16 %v2929, %v2928
        %s2946 = scalar_lea.vmem [#allocation3], 448
        %v2947 = vld [vmem:[%s2946] sm:$0xf]
        %v2948 = vld [vmem:[%s2946 + $0x4] sm:$0xf]
        %v2949 = vld [vmem:[%s2946 + $0x8] sm:$0xf]
        %v2950 = vld [vmem:[%s2946 + $0xc] sm:$0xf]
        %v2951 = vld [vmem:[%s2946 + $0x10] sm:$0xf]
        %v2952 = vld [vmem:[%s2946 + $0x14] sm:$0xf]
        %v2953 = vld [vmem:[%s2946 + $0x18] sm:$0xf]
        %v2954 = vld [vmem:[%s2946 + $0x1c] sm:$0xf]
        %v2955 = vld [vmem:[%s2946 + $0x20] sm:$0xf]
        %v2956 = vld [vmem:[%s2946 + $0x24] sm:$0xf]
        %v2957 = vld [vmem:[%s2946 + $0x28] sm:$0xf]
        %v2958 = vld [vmem:[%s2946 + $0x2c] sm:$0xf]
        %v2959 = vld [vmem:[%s2946 + $0x30] sm:$0xf]
        %v2960 = vld [vmem:[%s2946 + $0x34] sm:$0xf]
        %v2961 = vld [vmem:[%s2946 + $0x38] sm:$0xf]
        %v2962 = vld [vmem:[%s2946 + $0x3c] sm:$0xf]
        %v2979 = vunpack.c.l.b16 %v2947
        %v2980 = vunpack.c.l.b16 %v2948
        %v2981 = vunpack.c.l.b16 %v2949
        %v2982 = vunpack.c.l.b16 %v2950
        %v2983 = vunpack.c.l.b16 %v2951
        %v2984 = vunpack.c.l.b16 %v2952
        %v2985 = vunpack.c.l.b16 %v2953
        %v2986 = vunpack.c.l.b16 %v2954
        %v2987 = vunpack.c.l.b16 %v2955
        %v2988 = vunpack.c.l.b16 %v2956
        %v2989 = vunpack.c.l.b16 %v2957
        %v2990 = vunpack.c.l.b16 %v2958
        %v2991 = vunpack.c.l.b16 %v2959
        %v2992 = vunpack.c.l.b16 %v2960
        %v2993 = vunpack.c.l.b16 %v2961
        %v2994 = vunpack.c.l.b16 %v2962
        %v2995 = vpack.c.b16 %v2980, %v2979
        %v2996 = vpack.c.b16 %v2982, %v2981
        %v2997 = vpack.c.b16 %v2984, %v2983
        %v2998 = vpack.c.b16 %v2986, %v2985
        %v2999 = vpack.c.b16 %v2988, %v2987
        %v3000 = vpack.c.b16 %v2990, %v2989
        %v3001 = vpack.c.b16 %v2992, %v2991
        %v3002 = vpack.c.b16 %v2994, %v2993
        %3011 = vmatprep.subr.bf16.mxu0 0
        %3012 = vmatpush1.bf16.msra.mxu0 %v2995
        %3013 = vmatprep.subr.bf16.mxu0 0
        %3014 = vmatpush1.bf16.msra.mxu0 %v2996
        %3015 = vmatprep.subr.bf16.mxu0 0
        %3016 = vmatpush1.bf16.msra.mxu0 %v2997
        %3017 = vmatprep.subr.bf16.mxu0 0
        %3018 = vmatpush1.bf16.msra.mxu0 %v2998
        %3019 = vmatprep.subr.bf16.mxu0 0
        %3020 = vmatpush1.bf16.msra.mxu0 %v2999
        %3021 = vmatprep.subr.bf16.mxu0 0
        %3022 = vmatpush1.bf16.msra.mxu0 %v3000
        %3023 = vmatprep.subr.bf16.mxu0 0
        %3024 = vmatpush1.bf16.msra.mxu0 %v3001
        %3025 = vmatprep.subr.bf16.mxu0 0
        %3026 = vmatpush1.bf16.msra.mxu0 %v3002
        %3027 = vmatprep.subr.bf16.mxu0 0
        %3028 = vmatpush1.bf16.msra.mxu0 0
        %3029 = vmatprep.subr.bf16.mxu0 0
        %3030 = vmatpush1.bf16.msra.mxu0 0
        %3031 = vmatprep.subr.bf16.mxu0 0
        %3032 = vmatpush1.bf16.msra.mxu0 0
        %3033 = vmatprep.subr.bf16.mxu0 0
        %3034 = vmatpush1.bf16.msra.mxu0 0
        %3035 = vmatprep.subr.bf16.mxu0 0
        %3036 = vmatpush1.bf16.msra.mxu0 0
        %3037 = vmatprep.subr.bf16.mxu0 0
        %3038 = vmatpush1.bf16.msra.mxu0 0
        %3039 = vmatprep.subr.bf16.mxu0 0
        %3040 = vmatpush1.bf16.msra.mxu0 0
        %3041 = vmatprep.subr.bf16.mxu0 0
        %3042 = vmatpush1.bf16.msra.mxu0 0
        %3043 = vmatprep.mubr.bf16.mxu0 0
        %3044 = vmatmul.mubr.bf16.gmra.mrb[0].mxu0 %v2930
        %v3045 = vpop.f32.mrb[0].mxu0
        %v3046 = vadd.f32 0.0, %v3045
        %v3047 = vpop.f32.mrb[0].mxu0
        %v3048 = vpop.f32.mrb[0].mxu0
        %v3049 = vadd.f32 0.0, %v3048
        %v3050 = vpop.f32.mrb[0].mxu0
        %3051 = vmatprep.mubr.bf16.mxu0 0
        %3052 = vmatmul.mubr.bf16.gmra.mrb[0].mxu0 %v2931
        %v3053 = vpop.f32.mrb[0].mxu0
        %v3054 = vadd.f32 0.0, %v3053
        %v3055 = vpop.f32.mrb[0].mxu0
        %v3056 = vpop.f32.mrb[0].mxu0
        %v3057 = vadd.f32 0.0, %v3056
        %v3058 = vpop.f32.mrb[0].mxu0
        %3059 = vmatprep.mubr.bf16.mxu0 0
        %3060 = vmatmul.mubr.bf16.gmra.mrb[0].mxu0 %v2932
        %v3061 = vpop.f32.mrb[0].mxu0
        %v3062 = vadd.f32 0.0, %v3061
        %v3063 = vpop.f32.mrb[0].mxu0
        %v3064 = vpop.f32.mrb[0].mxu0
        %v3065 = vadd.f32 0.0, %v3064
        %v3066 = vpop.f32.mrb[0].mxu0
        %3067 = vmatprep.mubr.bf16.mxu0 0
        %3068 = vmatmul.mubr.bf16.gmra.mrb[0].mxu0 %v2933
        %v3069 = vpop.f32.mrb[0].mxu0
        %v3070 = vadd.f32 0.0, %v3069
        %v3071 = vpop.f32.mrb[0].mxu0
        %v3072 = vpop.f32.mrb[0].mxu0
        %v3073 = vadd.f32 0.0, %v3072
        %v3074 = vpop.f32.mrb[0].mxu0
        %3075 = vmatprep.mubr.bf16.mxu0 0
        %3076 = vmatmul.mubr.bf16.gmra.mrb[0].mxu0 %v2934
        %v3077 = vpop.f32.mrb[0].mxu0
        %v3078 = vadd.f32 0.0, %v3077
        %v3079 = vpop.f32.mrb[0].mxu0
        %v3080 = vpop.f32.mrb[0].mxu0
        %v3081 = vadd.f32 0.0, %v3080
        %v3082 = vpop.f32.mrb[0].mxu0
        %3083 = vmatprep.mubr.bf16.mxu0 0
        %3084 = vmatmul.mubr.bf16.gmra.mrb[0].mxu0 %v2935
        %v3085 = vpop.f32.mrb[0].mxu0
        %v3086 = vadd.f32 0.0, %v3085
        %v3087 = vpop.f32.mrb[0].mxu0
        %v3088 = vpop.f32.mrb[0].mxu0
        %v3089 = vadd.f32 0.0, %v3088
        %v3090 = vpop.f32.mrb[0].mxu0
        %3091 = vmatprep.mubr.bf16.mxu0 0
        %3092 = vmatmul.mubr.bf16.gmra.mrb[0].mxu0 %v2936
        %v3093 = vpop.f32.mrb[0].mxu0
        %v3094 = vadd.f32 0.0, %v3093
        %v3095 = vpop.f32.mrb[0].mxu0
        %v3096 = vpop.f32.mrb[0].mxu0
        %v3097 = vadd.f32 0.0, %v3096
        %v3098 = vpop.f32.mrb[0].mxu0
        %3099 = vmatprep.mubr.bf16.mxu0 0
        %3100 = vmatmul.mubr.bf16.gmra.mrb[0].mxu0 %v2937
        %v3101 = vpop.f32.mrb[0].mxu0
        %v3102 = vadd.f32 0.0, %v3101
        %v3103 = vpop.f32.mrb[0].mxu0
        %v3104 = vpop.f32.mrb[0].mxu0
        %v3105 = vadd.f32 0.0, %v3104
        %v3106 = vpop.f32.mrb[0].mxu0
        %3107 = vmatprep.mubr.bf16.mxu0 0
        %3108 = vmatmul.mubr.bf16.gmra.mrb[0].mxu0 %v2938
        %v3109 = vpop.f32.mrb[0].mxu0
        %v3110 = vadd.f32 0.0, %v3109
        %v3111 = vpop.f32.mrb[0].mxu0
        %v3112 = vpop.f32.mrb[0].mxu0
        %v3113 = vadd.f32 0.0, %v3112
        %v3114 = vpop.f32.mrb[0].mxu0
        %3115 = vmatprep.mubr.bf16.mxu0 0
        %3116 = vmatmul.mubr.bf16.gmra.mrb[0].mxu0 %v2939
        %v3117 = vpop.f32.mrb[0].mxu0
        %v3118 = vadd.f32 0.0, %v3117
        %v3119 = vpop.f32.mrb[0].mxu0
        %v3120 = vpop.f32.mrb[0].mxu0
        %v3121 = vadd.f32 0.0, %v3120
        %v3122 = vpop.f32.mrb[0].mxu0
        %3123 = vmatprep.mubr.bf16.mxu0 0
        %3124 = vmatmul.mubr.bf16.gmra.mrb[0].mxu0 %v2940
        %v3125 = vpop.f32.mrb[0].mxu0
        %v3126 = vadd.f32 0.0, %v3125
        %v3127 = vpop.f32.mrb[0].mxu0
        %v3128 = vpop.f32.mrb[0].mxu0
        %v3129 = vadd.f32 0.0, %v3128
        %v3130 = vpop.f32.mrb[0].mxu0
        %3131 = vmatprep.mubr.bf16.mxu0 0
        %3132 = vmatmul.mubr.bf16.gmra.mrb[0].mxu0 %v2941
        %v3133 = vpop.f32.mrb[0].mxu0
        %v3134 = vadd.f32 0.0, %v3133
        %v3135 = vpop.f32.mrb[0].mxu0
        %v3136 = vpop.f32.mrb[0].mxu0
        %v3137 = vadd.f32 0.0, %v3136
        %v3138 = vpop.f32.mrb[0].mxu0
        %3139 = vmatprep.mubr.bf16.mxu0 0
        %3140 = vmatmul.mubr.bf16.gmra.mrb[0].mxu0 %v2942
        %v3141 = vpop.f32.mrb[0].mxu0
        %v3142 = vadd.f32 0.0, %v3141
        %v3143 = vpop.f32.mrb[0].mxu0
        %v3144 = vpop.f32.mrb[0].mxu0
        %v3145 = vadd.f32 0.0, %v3144
        %v3146 = vpop.f32.mrb[0].mxu0
        %3147 = vmatprep.mubr.bf16.mxu0 0
        %3148 = vmatmul.mubr.bf16.gmra.mrb[0].mxu0 %v2943
        %v3149 = vpop.f32.mrb[0].mxu0
        %v3150 = vadd.f32 0.0, %v3149
        %v3151 = vpop.f32.mrb[0].mxu0
        %v3152 = vpop.f32.mrb[0].mxu0
        %v3153 = vadd.f32 0.0, %v3152
        %v3154 = vpop.f32.mrb[0].mxu0
        %3155 = vmatprep.mubr.bf16.mxu0 0
        %3156 = vmatmul.mubr.bf16.gmra.mrb[0].mxu0 %v2944
        %v3157 = vpop.f32.mrb[0].mxu0
        %v3158 = vadd.f32 0.0, %v3157
        %v3159 = vpop.f32.mrb[0].mxu0
        %v3160 = vpop.f32.mrb[0].mxu0
        %v3161 = vadd.f32 0.0, %v3160
        %v3162 = vpop.f32.mrb[0].mxu0
        %3163 = vmatprep.mubr.bf16.mxu0 0
        %3164 = vmatmul.mubr.bf16.gmra.mrb[0].mxu0 %v2945
        %v3165 = vpop.f32.mrb[0].mxu0
        %v3166 = vadd.f32 0.0, %v3165
        %v3167 = vpop.f32.mrb[0].mxu0
        %v3168 = vpop.f32.mrb[0].mxu0
        %v3169 = vadd.f32 0.0, %v3168
        %v3170 = vpop.f32.mrb[0].mxu0
        %3171 = vdwg.mxu0
        %v3172 = vadd.f32 %v2866, %v3046
        %v3173 = vadd.f32 %v2867, %v3049
        %v3174 = vadd.f32 %v2868, %v3054
        %v3175 = vadd.f32 %v2869, %v3057
        %v3176 = vadd.f32 %v2870, %v3062
        %v3177 = vadd.f32 %v2871, %v3065
        %v3178 = vadd.f32 %v2872, %v3070
        %v3179 = vadd.f32 %v2873, %v3073
        %v3180 = vadd.f32 %v2874, %v3078
        %v3181 = vadd.f32 %v2875, %v3081
        %v3182 = vadd.f32 %v2876, %v3086
        %v3183 = vadd.f32 %v2877, %v3089
        %v3184 = vadd.f32 %v2878, %v3094
        %v3185 = vadd.f32 %v2879, %v3097
        %v3186 = vadd.f32 %v2880, %v3102
        %v3187 = vadd.f32 %v2881, %v3105
        %v3188 = vadd.f32 %v2882, %v3110
        %v3189 = vadd.f32 %v2883, %v3113
        %v3190 = vadd.f32 %v2884, %v3118
        %v3191 = vadd.f32 %v2885, %v3121
        %v3192 = vadd.f32 %v2886, %v3126
        %v3193 = vadd.f32 %v2887, %v3129
        %v3194 = vadd.f32 %v2888, %v3134
        %v3195 = vadd.f32 %v2889, %v3137
        %v3196 = vadd.f32 %v2890, %v3142
        %v3197 = vadd.f32 %v2891, %v3145
        %v3198 = vadd.f32 %v2892, %v3150
        %v3199 = vadd.f32 %v2893, %v3153
        %v3200 = vadd.f32 %v2894, %v3158
        %v3201 = vadd.f32 %v2895, %v3161
        %v3202 = vadd.f32 %v2896, %v3166
        %v3203 = vadd.f32 %v2897, %v3169
        %v3204 = vld [vmem:[%s2591 + $0x9] sm:$0xff]
        %v3205 = vld [vmem:[%s2591 + $0x11] sm:$0xff]
        %v3206 = vld [vmem:[%s2591 + $0x29] sm:$0xff]
        %v3207 = vld [vmem:[%s2591 + $0x31] sm:$0xff]
        %v3208 = vld [vmem:[%s2591 + $0x49] sm:$0xff]
        %v3209 = vld [vmem:[%s2591 + $0x51] sm:$0xff]
        %v3210 = vld [vmem:[%s2591 + $0x69] sm:$0xff]
        %v3211 = vld [vmem:[%s2591 + $0x71] sm:$0xff]
        %v3212 = vld [vmem:[%s2591 + $0x89] sm:$0xff]
        %v3213 = vld [vmem:[%s2591 + $0x91] sm:$0xff]
        %v3214 = vld [vmem:[%s2591 + $0xa9] sm:$0xff]
        %v3215 = vld [vmem:[%s2591 + $0xb1] sm:$0xff]
        %v3216 = vld [vmem:[%s2591 + $0xc9] sm:$0xff]
        %v3217 = vld [vmem:[%s2591 + $0xd1] sm:$0xff]
        %v3218 = vld [vmem:[%s2591 + $0xe9] sm:$0xff]
        %v3219 = vld [vmem:[%s2591 + $0xf1] sm:$0xff]
        %v3220 = vld [vmem:[%s2591 + $0x109] sm:$0xff]
        %v3221 = vld [vmem:[%s2591 + $0x111] sm:$0xff]
        %v3222 = vld [vmem:[%s2591 + $0x129] sm:$0xff]
        %v3223 = vld [vmem:[%s2591 + $0x131] sm:$0xff]
        %v3224 = vld [vmem:[%s2591 + $0x149] sm:$0xff]
        %v3225 = vld [vmem:[%s2591 + $0x151] sm:$0xff]
        %v3226 = vld [vmem:[%s2591 + $0x169] sm:$0xff]
        %v3227 = vld [vmem:[%s2591 + $0x171] sm:$0xff]
        %v3228 = vld [vmem:[%s2591 + $0x189] sm:$0xff]
        %v3229 = vld [vmem:[%s2591 + $0x191] sm:$0xff]
        %v3230 = vld [vmem:[%s2591 + $0x1a9] sm:$0xff]
        %v3231 = vld [vmem:[%s2591 + $0x1b1] sm:$0xff]
        %v3232 = vld [vmem:[%s2591 + $0x1c9] sm:$0xff]
        %v3233 = vld [vmem:[%s2591 + $0x1d1] sm:$0xff]
        %v3234 = vld [vmem:[%s2591 + $0x1e9] sm:$0xff]
        %v3235 = vld [vmem:[%s2591 + $0x1f1] sm:$0xff]
        %v3236 = vpack.c.bf16 %v3205, %v3204
        %v3237 = vpack.c.bf16 %v3207, %v3206
        %v3238 = vpack.c.bf16 %v3209, %v3208
        %v3239 = vpack.c.bf16 %v3211, %v3210
        %v3240 = vpack.c.bf16 %v3213, %v3212
        %v3241 = vpack.c.bf16 %v3215, %v3214
        %v3242 = vpack.c.bf16 %v3217, %v3216
        %v3243 = vpack.c.bf16 %v3219, %v3218
        %v3244 = vpack.c.bf16 %v3221, %v3220
        %v3245 = vpack.c.bf16 %v3223, %v3222
        %v3246 = vpack.c.bf16 %v3225, %v3224
        %v3247 = vpack.c.bf16 %v3227, %v3226
        %v3248 = vpack.c.bf16 %v3229, %v3228
        %v3249 = vpack.c.bf16 %v3231, %v3230
        %v3250 = vpack.c.bf16 %v3233, %v3232
        %v3251 = vpack.c.bf16 %v3235, %v3234
        %s3252 = scalar_lea.vmem [#allocation3], 512
        %v3253 = vld [vmem:[%s3252] sm:$0xf]
        %v3254 = vld [vmem:[%s3252 + $0x4] sm:$0xf]
        %v3255 = vld [vmem:[%s3252 + $0x8] sm:$0xf]
        %v3256 = vld [vmem:[%s3252 + $0xc] sm:$0xf]
        %v3257 = vld [vmem:[%s3252 + $0x10] sm:$0xf]
        %v3258 = vld [vmem:[%s3252 + $0x14] sm:$0xf]
        %v3259 = vld [vmem:[%s3252 + $0x18] sm:$0xf]
        %v3260 = vld [vmem:[%s3252 + $0x1c] sm:$0xf]
        %v3261 = vld [vmem:[%s3252 + $0x20] sm:$0xf]
        %v3262 = vld [vmem:[%s3252 + $0x24] sm:$0xf]
        %v3263 = vld [vmem:[%s3252 + $0x28] sm:$0xf]
        %v3264 = vld [vmem:[%s3252 + $0x2c] sm:$0xf]
        %v3265 = vld [vmem:[%s3252 + $0x30] sm:$0xf]
        %v3266 = vld [vmem:[%s3252 + $0x34] sm:$0xf]
        %v3267 = vld [vmem:[%s3252 + $0x38] sm:$0xf]
        %v3268 = vld [vmem:[%s3252 + $0x3c] sm:$0xf]
        %v3285 = vunpack.c.l.b16 %v3253
        %v3286 = vunpack.c.l.b16 %v3254
        %v3287 = vunpack.c.l.b16 %v3255
        %v3288 = vunpack.c.l.b16 %v3256
        %v3289 = vunpack.c.l.b16 %v3257
        %v3290 = vunpack.c.l.b16 %v3258
        %v3291 = vunpack.c.l.b16 %v3259
        %v3292 = vunpack.c.l.b16 %v3260
        %v3293 = vunpack.c.l.b16 %v3261
        %v3294 = vunpack.c.l.b16 %v3262
        %v3295 = vunpack.c.l.b16 %v3263
        %v3296 = vunpack.c.l.b16 %v3264
        %v3297 = vunpack.c.l.b16 %v3265
        %v3298 = vunpack.c.l.b16 %v3266
        %v3299 = vunpack.c.l.b16 %v3267
        %v3300 = vunpack.c.l.b16 %v3268
        %v3301 = vpack.c.b16 %v3286, %v3285
        %v3302 = vpack.c.b16 %v3288, %v3287
        %v3303 = vpack.c.b16 %v3290, %v3289
        %v3304 = vpack.c.b16 %v3292, %v3291
        %v3305 = vpack.c.b16 %v3294, %v3293
        %v3306 = vpack.c.b16 %v3296, %v3295
        %v3307 = vpack.c.b16 %v3298, %v3297
        %v3308 = vpack.c.b16 %v3300, %v3299
        %3317 = vmatprep.subr.bf16.mxu0 0
        %3318 = vmatpush1.bf16.msra.mxu0 %v3301
        %3319 = vmatprep.subr.bf16.mxu0 0
        %3320 = vmatpush1.bf16.msra.mxu0 %v3302
        %3321 = vmatprep.subr.bf16.mxu0 0
        %3322 = vmatpush1.bf16.msra.mxu0 %v3303
        %3323 = vmatprep.subr.bf16.mxu0 0
        %3324 = vmatpush1.bf16.msra.mxu0 %v3304
        %3325 = vmatprep.subr.bf16.mxu0 0
        %3326 = vmatpush1.bf16.msra.mxu0 %v3305
        %3327 = vmatprep.subr.bf16.mxu0 0
        %3328 = vmatpush1.bf16.msra.mxu0 %v3306
        %3329 = vmatprep.subr.bf16.mxu0 0
        %3330 = vmatpush1.bf16.msra.mxu0 %v3307
        %3331 = vmatprep.subr.bf16.mxu0 0
        %3332 = vmatpush1.bf16.msra.mxu0 %v3308
        %3333 = vmatprep.subr.bf16.mxu0 0
        %3334 = vmatpush1.bf16.msra.mxu0 0
        %3335 = vmatprep.subr.bf16.mxu0 0
        %3336 = vmatpush1.bf16.msra.mxu0 0
        %3337 = vmatprep.subr.bf16.mxu0 0
        %3338 = vmatpush1.bf16.msra.mxu0 0
        %3339 = vmatprep.subr.bf16.mxu0 0
        %3340 = vmatpush1.bf16.msra.mxu0 0
        %3341 = vmatprep.subr.bf16.mxu0 0
        %3342 = vmatpush1.bf16.msra.mxu0 0
        %3343 = vmatprep.subr.bf16.mxu0 0
        %3344 = vmatpush1.bf16.msra.mxu0 0
        %3345 = vmatprep.subr.bf16.mxu0 0
        %3346 = vmatpush1.bf16.msra.mxu0 0
        %3347 = vmatprep.subr.bf16.mxu0 0
        %3348 = vmatpush1.bf16.msra.mxu0 0
        %3349 = vmatprep.mubr.bf16.mxu0 0
        %3350 = vmatmul.mubr.bf16.gmra.mrb[0].mxu0 %v3236
        %v3351 = vpop.f32.mrb[0].mxu0
        %v3352 = vadd.f32 0.0, %v3351
        %v3353 = vpop.f32.mrb[0].mxu0
        %v3354 = vpop.f32.mrb[0].mxu0
        %v3355 = vadd.f32 0.0, %v3354
        %v3356 = vpop.f32.mrb[0].mxu0
        %3357 = vmatprep.mubr.bf16.mxu0 0
        %3358 = vmatmul.mubr.bf16.gmra.mrb[0].mxu0 %v3237
        %v3359 = vpop.f32.mrb[0].mxu0
        %v3360 = vadd.f32 0.0, %v3359
        %v3361 = vpop.f32.mrb[0].mxu0
        %v3362 = vpop.f32.mrb[0].mxu0
        %v3363 = vadd.f32 0.0, %v3362
        %v3364 = vpop.f32.mrb[0].mxu0
        %3365 = vmatprep.mubr.bf16.mxu0 0
        %3366 = vmatmul.mubr.bf16.gmra.mrb[0].mxu0 %v3238
        %v3367 = vpop.f32.mrb[0].mxu0
        %v3368 = vadd.f32 0.0, %v3367
        %v3369 = vpop.f32.mrb[0].mxu0
        %v3370 = vpop.f32.mrb[0].mxu0
        %v3371 = vadd.f32 0.0, %v3370
        %v3372 = vpop.f32.mrb[0].mxu0
        %3373 = vmatprep.mubr.bf16.mxu0 0
        %3374 = vmatmul.mubr.bf16.gmra.mrb[0].mxu0 %v3239
        %v3375 = vpop.f32.mrb[0].mxu0
        %v3376 = vadd.f32 0.0, %v3375
        %v3377 = vpop.f32.mrb[0].mxu0
        %v3378 = vpop.f32.mrb[0].mxu0
        %v3379 = vadd.f32 0.0, %v3378
        %v3380 = vpop.f32.mrb[0].mxu0
        %3381 = vmatprep.mubr.bf16.mxu0 0
        %3382 = vmatmul.mubr.bf16.gmra.mrb[0].mxu0 %v3240
        %v3383 = vpop.f32.mrb[0].mxu0
        %v3384 = vadd.f32 0.0, %v3383
        %v3385 = vpop.f32.mrb[0].mxu0
        %v3386 = vpop.f32.mrb[0].mxu0
        %v3387 = vadd.f32 0.0, %v3386
        %v3388 = vpop.f32.mrb[0].mxu0
        %3389 = vmatprep.mubr.bf16.mxu0 0
        %3390 = vmatmul.mubr.bf16.gmra.mrb[0].mxu0 %v3241
        %v3391 = vpop.f32.mrb[0].mxu0
        %v3392 = vadd.f32 0.0, %v3391
        %v3393 = vpop.f32.mrb[0].mxu0
        %v3394 = vpop.f32.mrb[0].mxu0
        %v3395 = vadd.f32 0.0, %v3394
        %v3396 = vpop.f32.mrb[0].mxu0
        %3397 = vmatprep.mubr.bf16.mxu0 0
        %3398 = vmatmul.mubr.bf16.gmra.mrb[0].mxu0 %v3242
        %v3399 = vpop.f32.mrb[0].mxu0
        %v3400 = vadd.f32 0.0, %v3399
        %v3401 = vpop.f32.mrb[0].mxu0
        %v3402 = vpop.f32.mrb[0].mxu0
        %v3403 = vadd.f32 0.0, %v3402
        %v3404 = vpop.f32.mrb[0].mxu0
        %3405 = vmatprep.mubr.bf16.mxu0 0
        %3406 = vmatmul.mubr.bf16.gmra.mrb[0].mxu0 %v3243
        %v3407 = vpop.f32.mrb[0].mxu0
        %v3408 = vadd.f32 0.0, %v3407
        %v3409 = vpop.f32.mrb[0].mxu0
        %v3410 = vpop.f32.mrb[0].mxu0
        %v3411 = vadd.f32 0.0, %v3410
        %v3412 = vpop.f32.mrb[0].mxu0
        %3413 = vmatprep.mubr.bf16.mxu0 0
        %3414 = vmatmul.mubr.bf16.gmra.mrb[0].mxu0 %v3244
        %v3415 = vpop.f32.mrb[0].mxu0
        %v3416 = vadd.f32 0.0, %v3415
        %v3417 = vpop.f32.mrb[0].mxu0
        %v3418 = vpop.f32.mrb[0].mxu0
        %v3419 = vadd.f32 0.0, %v3418
        %v3420 = vpop.f32.mrb[0].mxu0
        %3421 = vmatprep.mubr.bf16.mxu0 0
        %3422 = vmatmul.mubr.bf16.gmra.mrb[0].mxu0 %v3245
        %v3423 = vpop.f32.mrb[0].mxu0
        %v3424 = vadd.f32 0.0, %v3423
        %v3425 = vpop.f32.mrb[0].mxu0
        %v3426 = vpop.f32.mrb[0].mxu0
        %v3427 = vadd.f32 0.0, %v3426
        %v3428 = vpop.f32.mrb[0].mxu0
        %3429 = vmatprep.mubr.bf16.mxu0 0
        %3430 = vmatmul.mubr.bf16.gmra.mrb[0].mxu0 %v3246
        %v3431 = vpop.f32.mrb[0].mxu0
        %v3432 = vadd.f32 0.0, %v3431
        %v3433 = vpop.f32.mrb[0].mxu0
        %v3434 = vpop.f32.mrb[0].mxu0
        %v3435 = vadd.f32 0.0, %v3434
        %v3436 = vpop.f32.mrb[0].mxu0
        %3437 = vmatprep.mubr.bf16.mxu0 0
        %3438 = vmatmul.mubr.bf16.gmra.mrb[0].mxu0 %v3247
        %v3439 = vpop.f32.mrb[0].mxu0
        %v3440 = vadd.f32 0.0, %v3439
        %v3441 = vpop.f32.mrb[0].mxu0
        %v3442 = vpop.f32.mrb[0].mxu0
        %v3443 = vadd.f32 0.0, %v3442
        %v3444 = vpop.f32.mrb[0].mxu0
        %3445 = vmatprep.mubr.bf16.mxu0 0
        %3446 = vmatmul.mubr.bf16.gmra.mrb[0].mxu0 %v3248
        %v3447 = vpop.f32.mrb[0].mxu0
        %v3448 = vadd.f32 0.0, %v3447
        %v3449 = vpop.f32.mrb[0].mxu0
        %v3450 = vpop.f32.mrb[0].mxu0
        %v3451 = vadd.f32 0.0, %v3450
        %v3452 = vpop.f32.mrb[0].mxu0
        %3453 = vmatprep.mubr.bf16.mxu0 0
        %3454 = vmatmul.mubr.bf16.gmra.mrb[0].mxu0 %v3249
        %v3455 = vpop.f32.mrb[0].mxu0
        %v3456 = vadd.f32 0.0, %v3455
        %v3457 = vpop.f32.mrb[0].mxu0
        %v3458 = vpop.f32.mrb[0].mxu0
        %v3459 = vadd.f32 0.0, %v3458
        %v3460 = vpop.f32.mrb[0].mxu0
        %3461 = vmatprep.mubr.bf16.mxu0 0
        %3462 = vmatmul.mubr.bf16.gmra.mrb[0].mxu0 %v3250
        %v3463 = vpop.f32.mrb[0].mxu0
        %v3464 = vadd.f32 0.0, %v3463
        %v3465 = vpop.f32.mrb[0].mxu0
        %v3466 = vpop.f32.mrb[0].mxu0
        %v3467 = vadd.f32 0.0, %v3466
        %v3468 = vpop.f32.mrb[0].mxu0
        %3469 = vmatprep.mubr.bf16.mxu0 0
        %3470 = vmatmul.mubr.bf16.gmra.mrb[0].mxu0 %v3251
        %v3471 = vpop.f32.mrb[0].mxu0
        %v3472 = vadd.f32 0.0, %v3471
        %v3473 = vpop.f32.mrb[0].mxu0
        %v3474 = vpop.f32.mrb[0].mxu0
        %v3475 = vadd.f32 0.0, %v3474
        %v3476 = vpop.f32.mrb[0].mxu0
        %3477 = vdwg.mxu0
        %v3478 = vadd.f32 %v3172, %v3352
        %v3479 = vadd.f32 %v3173, %v3355
        %v3480 = vadd.f32 %v3174, %v3360
        %v3481 = vadd.f32 %v3175, %v3363
        %v3482 = vadd.f32 %v3176, %v3368
        %v3483 = vadd.f32 %v3177, %v3371
        %v3484 = vadd.f32 %v3178, %v3376
        %v3485 = vadd.f32 %v3179, %v3379
        %v3486 = vadd.f32 %v3180, %v3384
        %v3487 = vadd.f32 %v3181, %v3387
        %v3488 = vadd.f32 %v3182, %v3392
        %v3489 = vadd.f32 %v3183, %v3395
        %v3490 = vadd.f32 %v3184, %v3400
        %v3491 = vadd.f32 %v3185, %v3403
        %v3492 = vadd.f32 %v3186, %v3408
        %v3493 = vadd.f32 %v3187, %v3411
        %v3494 = vadd.f32 %v3188, %v3416
        %v3495 = vadd.f32 %v3189, %v3419
        %v3496 = vadd.f32 %v3190, %v3424
        %v3497 = vadd.f32 %v3191, %v3427
        %v3498 = vadd.f32 %v3192, %v3432
        %v3499 = vadd.f32 %v3193, %v3435
        %v3500 = vadd.f32 %v3194, %v3440
        %v3501 = vadd.f32 %v3195, %v3443
        %v3502 = vadd.f32 %v3196, %v3448
        %v3503 = vadd.f32 %v3197, %v3451
        %v3504 = vadd.f32 %v3198, %v3456
        %v3505 = vadd.f32 %v3199, %v3459
        %v3506 = vadd.f32 %v3200, %v3464
        %v3507 = vadd.f32 %v3201, %v3467
        %v3508 = vadd.f32 %v3202, %v3472
        %v3509 = vadd.f32 %v3203, %v3475
        %v3510 = vld [vmem:[%s4] sm:$0x1]
        %v3512 = vlaneseq
        %v3513 = vshrl.u32 %v3512, 7
        %v3514 = vsub.s32 0, %v3513
        %v3515 = vrot.slane %v3510, %v3514
        %v3517 = vadd.f32 %v3478, %v3515
        %v3518 = vadd.f32 %v3479, %v3515
        %v3519 = vadd.f32 %v3480, %v3515
        %v3520 = vadd.f32 %v3481, %v3515
        %v3521 = vadd.f32 %v3482, %v3515
        %v3522 = vadd.f32 %v3483, %v3515
        %v3523 = vadd.f32 %v3484, %v3515
        %v3524 = vadd.f32 %v3485, %v3515
        %v3525 = vadd.f32 %v3486, %v3515
        %v3526 = vadd.f32 %v3487, %v3515
        %v3527 = vadd.f32 %v3488, %v3515
        %v3528 = vadd.f32 %v3489, %v3515
        %v3529 = vadd.f32 %v3490, %v3515
        %v3530 = vadd.f32 %v3491, %v3515
        %v3531 = vadd.f32 %v3492, %v3515
        %v3532 = vadd.f32 %v3493, %v3515
        %v3533 = vadd.f32 %v3494, %v3515
        %v3534 = vadd.f32 %v3495, %v3515
        %v3535 = vadd.f32 %v3496, %v3515
        %v3536 = vadd.f32 %v3497, %v3515
        %v3537 = vadd.f32 %v3498, %v3515
        %v3538 = vadd.f32 %v3499, %v3515
        %v3539 = vadd.f32 %v3500, %v3515
        %v3540 = vadd.f32 %v3501, %v3515
        %v3541 = vadd.f32 %v3502, %v3515
        %v3542 = vadd.f32 %v3503, %v3515
        %v3543 = vadd.f32 %v3504, %v3515
        %v3544 = vadd.f32 %v3505, %v3515
        %v3545 = vadd.f32 %v3506, %v3515
        %v3546 = vadd.f32 %v3507, %v3515
        %v3547 = vadd.f32 %v3508, %v3515
        %v3548 = vadd.f32 %v3509, %v3515
        %v3549 = vmax.f32 %v3517, 0.0
        %v3550 = vmax.f32 %v3518, 0.0
        %v3551 = vmax.f32 %v3519, 0.0
        %v3552 = vmax.f32 %v3520, 0.0
        %v3553 = vmax.f32 %v3521, 0.0
        %v3554 = vmax.f32 %v3522, 0.0
        %v3555 = vmax.f32 %v3523, 0.0
        %v3556 = vmax.f32 %v3524, 0.0
        %v3557 = vmax.f32 %v3525, 0.0
        %v3558 = vmax.f32 %v3526, 0.0
        %v3559 = vmax.f32 %v3527, 0.0
        %v3560 = vmax.f32 %v3528, 0.0
        %v3561 = vmax.f32 %v3529, 0.0
        %v3562 = vmax.f32 %v3530, 0.0
        %v3563 = vmax.f32 %v3531, 0.0
        %v3564 = vmax.f32 %v3532, 0.0
        %v3565 = vmax.f32 %v3533, 0.0
        %v3566 = vmax.f32 %v3534, 0.0
        %v3567 = vmax.f32 %v3535, 0.0
        %v3568 = vmax.f32 %v3536, 0.0
        %v3569 = vmax.f32 %v3537, 0.0
        %v3570 = vmax.f32 %v3538, 0.0
        %v3571 = vmax.f32 %v3539, 0.0
        %v3572 = vmax.f32 %v3540, 0.0
        %v3573 = vmax.f32 %v3541, 0.0
        %v3574 = vmax.f32 %v3542, 0.0
        %v3575 = vmax.f32 %v3543, 0.0
        %v3576 = vmax.f32 %v3544, 0.0
        %v3577 = vmax.f32 %v3545, 0.0
        %v3578 = vmax.f32 %v3546, 0.0
        %v3579 = vmax.f32 %v3547, 0.0
        %v3580 = vmax.f32 %v3548, 0.0
        %v3581 = vpack.c.bf16 %v3550, %v3549
        %v3582 = vpack.c.bf16 %v3552, %v3551
        %v3583 = vpack.c.bf16 %v3554, %v3553
        %v3584 = vpack.c.bf16 %v3556, %v3555
        %v3585 = vpack.c.bf16 %v3558, %v3557
        %v3586 = vpack.c.bf16 %v3560, %v3559
        %v3587 = vpack.c.bf16 %v3562, %v3561
        %v3588 = vpack.c.bf16 %v3564, %v3563
        %v3589 = vpack.c.bf16 %v3566, %v3565
        %v3590 = vpack.c.bf16 %v3568, %v3567
        %v3591 = vpack.c.bf16 %v3570, %v3569
        %v3592 = vpack.c.bf16 %v3572, %v3571
        %v3593 = vpack.c.bf16 %v3574, %v3573
        %v3594 = vpack.c.bf16 %v3576, %v3575
        %v3595 = vpack.c.bf16 %v3578, %v3577
        %v3596 = vpack.c.bf16 %v3580, %v3579
        %v3597 = vld [vmem:[%s5] sm:$0xf]
        %v3598 = vld [vmem:[%s5 + $0x4] sm:$0xf]
        %v3599 = vld [vmem:[%s5 + $0x8] sm:$0xf]
        %v3600 = vld [vmem:[%s5 + $0xc] sm:$0xf]
        %v3601 = vld [vmem:[%s5 + $0x10] sm:$0xf]
        %v3602 = vld [vmem:[%s5 + $0x14] sm:$0xf]
        %v3603 = vld [vmem:[%s5 + $0x18] sm:$0xf]
        %v3604 = vld [vmem:[%s5 + $0x1c] sm:$0xf]
        %v3605 = vld [vmem:[%s5 + $0x20] sm:$0xf]
        %v3606 = vld [vmem:[%s5 + $0x24] sm:$0xf]
        %v3607 = vld [vmem:[%s5 + $0x28] sm:$0xf]
        %v3608 = vld [vmem:[%s5 + $0x2c] sm:$0xf]
        %v3609 = vld [vmem:[%s5 + $0x30] sm:$0xf]
        %v3610 = vld [vmem:[%s5 + $0x34] sm:$0xf]
        %v3611 = vld [vmem:[%s5 + $0x38] sm:$0xf]
        %v3612 = vld [vmem:[%s5 + $0x3c] sm:$0xf]
        %v3613 = vld [vmem:[%s6] sm:$0x1]
        %v3615 = vlaneseq
        %v3616 = vshrl.u32 %v3615, 7
        %v3617 = vsub.s32 0, %v3616
        %v3618 = vrot.slane %v3613, %v3617
        %v3636 = vunpack.c.l.b16 %v3597
        %v3637 = vunpack.c.l.b16 %v3598
        %v3638 = vunpack.c.l.b16 %v3599
        %v3639 = vunpack.c.l.b16 %v3600
        %v3640 = vunpack.c.l.b16 %v3601
        %v3641 = vunpack.c.l.b16 %v3602
        %v3642 = vunpack.c.l.b16 %v3603
        %v3643 = vunpack.c.l.b16 %v3604
        %v3644 = vunpack.c.l.b16 %v3605
        %v3645 = vunpack.c.l.b16 %v3606
        %v3646 = vunpack.c.l.b16 %v3607
        %v3647 = vunpack.c.l.b16 %v3608
        %v3648 = vunpack.c.l.b16 %v3609
        %v3649 = vunpack.c.l.b16 %v3610
        %v3650 = vunpack.c.l.b16 %v3611
        %v3651 = vunpack.c.l.b16 %v3612
        %v3652 = vpack.c.b16 %v3637, %v3636
        %v3653 = vpack.c.b16 %v3639, %v3638
        %v3654 = vpack.c.b16 %v3641, %v3640
        %v3655 = vpack.c.b16 %v3643, %v3642
        %v3656 = vpack.c.b16 %v3645, %v3644
        %v3657 = vpack.c.b16 %v3647, %v3646
        %v3658 = vpack.c.b16 %v3649, %v3648
        %v3659 = vpack.c.b16 %v3651, %v3650
        %3668 = vmatprep.subr.bf16.mxu0 0
        %3669 = vmatpush1.bf16.msra.mxu0 %v3652
        %3670 = vmatprep.subr.bf16.mxu0 0
        %3671 = vmatpush1.bf16.msra.mxu0 %v3653
        %3672 = vmatprep.subr.bf16.mxu0 0
        %3673 = vmatpush1.bf16.msra.mxu0 %v3654
        %3674 = vmatprep.subr.bf16.mxu0 0
        %3675 = vmatpush1.bf16.msra.mxu0 %v3655
        %3676 = vmatprep.subr.bf16.mxu0 0
        %3677 = vmatpush1.bf16.msra.mxu0 %v3656
        %3678 = vmatprep.subr.bf16.mxu0 0
        %3679 = vmatpush1.bf16.msra.mxu0 %v3657
        %3680 = vmatprep.subr.bf16.mxu0 0
        %3681 = vmatpush1.bf16.msra.mxu0 %v3658
        %3682 = vmatprep.subr.bf16.mxu0 0
        %3683 = vmatpush1.bf16.msra.mxu0 %v3659
        %3684 = vmatprep.subr.bf16.mxu0 0
        %3685 = vmatpush1.bf16.msra.mxu0 0
        %3686 = vmatprep.subr.bf16.mxu0 0
        %3687 = vmatpush1.bf16.msra.mxu0 0
        %3688 = vmatprep.subr.bf16.mxu0 0
        %3689 = vmatpush1.bf16.msra.mxu0 0
        %3690 = vmatprep.subr.bf16.mxu0 0
        %3691 = vmatpush1.bf16.msra.mxu0 0
        %3692 = vmatprep.subr.bf16.mxu0 0
        %3693 = vmatpush1.bf16.msra.mxu0 0
        %3694 = vmatprep.subr.bf16.mxu0 0
        %3695 = vmatpush1.bf16.msra.mxu0 0
        %3696 = vmatprep.subr.bf16.mxu0 0
        %3697 = vmatpush1.bf16.msra.mxu0 0
        %3698 = vmatprep.subr.bf16.mxu0 0
        %3699 = vmatpush1.bf16.msra.mxu0 0
        %3700 = vmatprep.mubr.bf16.mxu0 0
        %3701 = vmatmul.mubr.bf16.gmra.mrb[0].mxu0 %v3581
        %v3702 = vpop.f32.mrb[0].mxu0
        %v3703 = vadd.f32 %v3618, %v3702
        %v3704 = vpop.f32.mrb[0].mxu0
        %v3705 = vpop.f32.mrb[0].mxu0
        %v3706 = vadd.f32 %v3618, %v3705
        %v3707 = vpop.f32.mrb[0].mxu0
        %3708 = vmatprep.mubr.bf16.mxu0 0
        %3709 = vmatmul.mubr.bf16.gmra.mrb[0].mxu0 %v3582
        %v3710 = vpop.f32.mrb[0].mxu0
        %v3711 = vadd.f32 %v3618, %v3710
        %v3712 = vpop.f32.mrb[0].mxu0
        %v3713 = vpop.f32.mrb[0].mxu0
        %v3714 = vadd.f32 %v3618, %v3713
        %v3715 = vpop.f32.mrb[0].mxu0
        %3716 = vmatprep.mubr.bf16.mxu0 0
        %3717 = vmatmul.mubr.bf16.gmra.mrb[0].mxu0 %v3583
        %v3718 = vpop.f32.mrb[0].mxu0
        %v3719 = vadd.f32 %v3618, %v3718
        %v3720 = vpop.f32.mrb[0].mxu0
        %v3721 = vpop.f32.mrb[0].mxu0
        %v3722 = vadd.f32 %v3618, %v3721
        %v3723 = vpop.f32.mrb[0].mxu0
        %3724 = vmatprep.mubr.bf16.mxu0 0
        %3725 = vmatmul.mubr.bf16.gmra.mrb[0].mxu0 %v3584
        %v3726 = vpop.f32.mrb[0].mxu0
        %v3727 = vadd.f32 %v3618, %v3726
        %v3728 = vpop.f32.mrb[0].mxu0
        %v3729 = vpop.f32.mrb[0].mxu0
        %v3730 = vadd.f32 %v3618, %v3729
        %v3731 = vpop.f32.mrb[0].mxu0
        %3732 = vmatprep.mubr.bf16.mxu0 0
        %3733 = vmatmul.mubr.bf16.gmra.mrb[0].mxu0 %v3585
        %v3734 = vpop.f32.mrb[0].mxu0
        %v3735 = vadd.f32 %v3618, %v3734
        %v3736 = vpop.f32.mrb[0].mxu0
        %v3737 = vpop.f32.mrb[0].mxu0
        %v3738 = vadd.f32 %v3618, %v3737
        %v3739 = vpop.f32.mrb[0].mxu0
        %3740 = vmatprep.mubr.bf16.mxu0 0
        %3741 = vmatmul.mubr.bf16.gmra.mrb[0].mxu0 %v3586
        %v3742 = vpop.f32.mrb[0].mxu0
        %v3743 = vadd.f32 %v3618, %v3742
        %v3744 = vpop.f32.mrb[0].mxu0
        %v3745 = vpop.f32.mrb[0].mxu0
        %v3746 = vadd.f32 %v3618, %v3745
        %v3747 = vpop.f32.mrb[0].mxu0
        %3748 = vmatprep.mubr.bf16.mxu0 0
        %3749 = vmatmul.mubr.bf16.gmra.mrb[0].mxu0 %v3587
        %v3750 = vpop.f32.mrb[0].mxu0
        %v3751 = vadd.f32 %v3618, %v3750
        %v3752 = vpop.f32.mrb[0].mxu0
        %v3753 = vpop.f32.mrb[0].mxu0
        %v3754 = vadd.f32 %v3618, %v3753
        %v3755 = vpop.f32.mrb[0].mxu0
        %3756 = vmatprep.mubr.bf16.mxu0 0
        %3757 = vmatmul.mubr.bf16.gmra.mrb[0].mxu0 %v3588
        %v3758 = vpop.f32.mrb[0].mxu0
        %v3759 = vadd.f32 %v3618, %v3758
        %v3760 = vpop.f32.mrb[0].mxu0
        %v3761 = vpop.f32.mrb[0].mxu0
        %v3762 = vadd.f32 %v3618, %v3761
        %v3763 = vpop.f32.mrb[0].mxu0
        %3764 = vmatprep.mubr.bf16.mxu0 0
        %3765 = vmatmul.mubr.bf16.gmra.mrb[0].mxu0 %v3589
        %v3766 = vpop.f32.mrb[0].mxu0
        %v3767 = vadd.f32 %v3618, %v3766
        %v3768 = vpop.f32.mrb[0].mxu0
        %v3769 = vpop.f32.mrb[0].mxu0
        %v3770 = vadd.f32 %v3618, %v3769
        %v3771 = vpop.f32.mrb[0].mxu0
        %3772 = vmatprep.mubr.bf16.mxu0 0
        %3773 = vmatmul.mubr.bf16.gmra.mrb[0].mxu0 %v3590
        %v3774 = vpop.f32.mrb[0].mxu0
        %v3775 = vadd.f32 %v3618, %v3774
        %v3776 = vpop.f32.mrb[0].mxu0
        %v3777 = vpop.f32.mrb[0].mxu0
        %v3778 = vadd.f32 %v3618, %v3777
        %v3779 = vpop.f32.mrb[0].mxu0
        %3780 = vmatprep.mubr.bf16.mxu0 0
        %3781 = vmatmul.mubr.bf16.gmra.mrb[0].mxu0 %v3591
        %v3782 = vpop.f32.mrb[0].mxu0
        %v3783 = vadd.f32 %v3618, %v3782
        %v3784 = vpop.f32.mrb[0].mxu0
        %v3785 = vpop.f32.mrb[0].mxu0
        %v3786 = vadd.f32 %v3618, %v3785
        %v3787 = vpop.f32.mrb[0].mxu0
        %3788 = vmatprep.mubr.bf16.mxu0 0
        %3789 = vmatmul.mubr.bf16.gmra.mrb[0].mxu0 %v3592
        %v3790 = vpop.f32.mrb[0].mxu0
        %v3791 = vadd.f32 %v3618, %v3790
        %v3792 = vpop.f32.mrb[0].mxu0
        %v3793 = vpop.f32.mrb[0].mxu0
        %v3794 = vadd.f32 %v3618, %v3793
        %v3795 = vpop.f32.mrb[0].mxu0
        %3796 = vmatprep.mubr.bf16.mxu0 0
        %3797 = vmatmul.mubr.bf16.gmra.mrb[0].mxu0 %v3593
        %v3798 = vpop.f32.mrb[0].mxu0
        %v3799 = vadd.f32 %v3618, %v3798
        %v3800 = vpop.f32.mrb[0].mxu0
        %v3801 = vpop.f32.mrb[0].mxu0
        %v3802 = vadd.f32 %v3618, %v3801
        %v3803 = vpop.f32.mrb[0].mxu0
        %3804 = vmatprep.mubr.bf16.mxu0 0
        %3805 = vmatmul.mubr.bf16.gmra.mrb[0].mxu0 %v3594
        %v3806 = vpop.f32.mrb[0].mxu0
        %v3807 = vadd.f32 %v3618, %v3806
        %v3808 = vpop.f32.mrb[0].mxu0
        %v3809 = vpop.f32.mrb[0].mxu0
        %v3810 = vadd.f32 %v3618, %v3809
        %v3811 = vpop.f32.mrb[0].mxu0
        %3812 = vmatprep.mubr.bf16.mxu0 0
        %3813 = vmatmul.mubr.bf16.gmra.mrb[0].mxu0 %v3595
        %v3814 = vpop.f32.mrb[0].mxu0
        %v3815 = vadd.f32 %v3618, %v3814
        %v3816 = vpop.f32.mrb[0].mxu0
        %v3817 = vpop.f32.mrb[0].mxu0
        %v3818 = vadd.f32 %v3618, %v3817
        %v3819 = vpop.f32.mrb[0].mxu0
        %3820 = vmatprep.mubr.bf16.mxu0 0
        %3821 = vmatmul.mubr.bf16.gmra.mrb[0].mxu0 %v3596
        %v3822 = vpop.f32.mrb[0].mxu0
        %v3823 = vadd.f32 %v3618, %v3822
        %v3824 = vpop.f32.mrb[0].mxu0
        %v3825 = vpop.f32.mrb[0].mxu0
        %v3826 = vadd.f32 %v3618, %v3825
        %v3827 = vpop.f32.mrb[0].mxu0
        %3828 = vdwg.mxu0
        %v3829 = vld [vmem:[%s7] sm:$0x3]
        %v3830 = vld [vmem:[%s8] sm:$0x1]
        %v3832 = vlaneseq
        %v3833 = vshrl.u32 %v3832, 7
        %v3834 = vsub.s32 0, %v3833
        %v3835 = vrot.slane %v3830, %v3834
        %v3838 = vsel %vm518, %v3829, 0
        %3840 = vmatprep.subr.bf16.mxu0 0
        %3841 = vmatpush1.bf16.msra.mxu0 %v3838
        %3842 = vmatprep.subr.bf16.mxu0 0
        %3843 = vmatpush1.bf16.msra.mxu0 0
        %3844 = vmatprep.subr.bf16.mxu0 0
        %3845 = vmatpush1.bf16.msra.mxu0 0
        %3846 = vmatprep.subr.bf16.mxu0 0
        %3847 = vmatpush1.bf16.msra.mxu0 0
        %3848 = vmatprep.subr.bf16.mxu0 0
        %3849 = vmatpush1.bf16.msra.mxu0 0
        %3850 = vmatprep.subr.bf16.mxu0 0
        %3851 = vmatpush1.bf16.msra.mxu0 0
        %3852 = vmatprep.subr.bf16.mxu0 0
        %3853 = vmatpush1.bf16.msra.mxu0 0
        %3854 = vmatprep.subr.bf16.mxu0 0
        %3855 = vmatpush1.bf16.msra.mxu0 0
        %3856 = vmatprep.subr.bf16.mxu0 0
        %3857 = vmatpush1.bf16.msra.mxu0 0
        %3858 = vmatprep.subr.bf16.mxu0 0
        %3859 = vmatpush1.bf16.msra.mxu0 0
        %3860 = vmatprep.subr.bf16.mxu0 0
        %3861 = vmatpush1.bf16.msra.mxu0 0
        %3862 = vmatprep.subr.bf16.mxu0 0
        %3863 = vmatpush1.bf16.msra.mxu0 0
        %3864 = vmatprep.subr.bf16.mxu0 0
        %3865 = vmatpush1.bf16.msra.mxu0 0
        %3866 = vmatprep.subr.bf16.mxu0 0
        %3867 = vmatpush1.bf16.msra.mxu0 0
        %3868 = vmatprep.subr.bf16.mxu0 0
        %3869 = vmatpush1.bf16.msra.mxu0 0
        %3870 = vmatprep.subr.bf16.mxu0 0
        %3871 = vmatpush1.bf16.msra.mxu0 0
        %3872 = vmatprep.mubr.bf16.mxu0 0
        %3873 = vmatmul.mubr.bf16.gmra.mrb[0].mxu0 %v471
        %v3874 = vpop.f32.mrb[0].mxu0
        %v3875 = vadd.f32 %v3835, %v3874
        %v3876 = vpop.f32.mrb[0].mxu0
        %v3877 = vpop.f32.mrb[0].mxu0
        %v3878 = vadd.f32 %v3835, %v3877
        %v3879 = vpop.f32.mrb[0].mxu0
        %3880 = vmatprep.mubr.bf16.mxu0 0
        %3881 = vmatmul.mubr.bf16.gmra.mrb[0].mxu0 %v474
        %v3882 = vpop.f32.mrb[0].mxu0
        %v3883 = vadd.f32 %v3835, %v3882
        %v3884 = vpop.f32.mrb[0].mxu0
        %v3885 = vpop.f32.mrb[0].mxu0
        %v3886 = vadd.f32 %v3835, %v3885
        %v3887 = vpop.f32.mrb[0].mxu0
        %3888 = vmatprep.mubr.bf16.mxu0 0
        %3889 = vmatmul.mubr.bf16.gmra.mrb[0].mxu0 %v477
        %v3890 = vpop.f32.mrb[0].mxu0
        %v3891 = vadd.f32 %v3835, %v3890
        %v3892 = vpop.f32.mrb[0].mxu0
        %v3893 = vpop.f32.mrb[0].mxu0
        %v3894 = vadd.f32 %v3835, %v3893
        %v3895 = vpop.f32.mrb[0].mxu0
        %3896 = vmatprep.mubr.bf16.mxu0 0
        %3897 = vmatmul.mubr.bf16.gmra.mrb[0].mxu0 %v480
        %v3898 = vpop.f32.mrb[0].mxu0
        %v3899 = vadd.f32 %v3835, %v3898
        %v3900 = vpop.f32.mrb[0].mxu0
        %v3901 = vpop.f32.mrb[0].mxu0
        %v3902 = vadd.f32 %v3835, %v3901
        %v3903 = vpop.f32.mrb[0].mxu0
        %3904 = vmatprep.mubr.bf16.mxu0 0
        %3905 = vmatmul.mubr.bf16.gmra.mrb[0].mxu0 %v483
        %v3906 = vpop.f32.mrb[0].mxu0
        %v3907 = vadd.f32 %v3835, %v3906
        %v3908 = vpop.f32.mrb[0].mxu0
        %v3909 = vpop.f32.mrb[0].mxu0
        %v3910 = vadd.f32 %v3835, %v3909
        %v3911 = vpop.f32.mrb[0].mxu0
        %3912 = vmatprep.mubr.bf16.mxu0 0
        %3913 = vmatmul.mubr.bf16.gmra.mrb[0].mxu0 %v486
        %v3914 = vpop.f32.mrb[0].mxu0
        %v3915 = vadd.f32 %v3835, %v3914
        %v3916 = vpop.f32.mrb[0].mxu0
        %v3917 = vpop.f32.mrb[0].mxu0
        %v3918 = vadd.f32 %v3835, %v3917
        %v3919 = vpop.f32.mrb[0].mxu0
        %3920 = vmatprep.mubr.bf16.mxu0 0
        %3921 = vmatmul.mubr.bf16.gmra.mrb[0].mxu0 %v489
        %v3922 = vpop.f32.mrb[0].mxu0
        %v3923 = vadd.f32 %v3835, %v3922
        %v3924 = vpop.f32.mrb[0].mxu0
        %v3925 = vpop.f32.mrb[0].mxu0
        %v3926 = vadd.f32 %v3835, %v3925
        %v3927 = vpop.f32.mrb[0].mxu0
        %3928 = vmatprep.mubr.bf16.mxu0 0
        %3929 = vmatmul.mubr.bf16.gmra.mrb[0].mxu0 %v492
        %v3930 = vpop.f32.mrb[0].mxu0
        %v3931 = vadd.f32 %v3835, %v3930
        %v3932 = vpop.f32.mrb[0].mxu0
        %v3933 = vpop.f32.mrb[0].mxu0
        %v3934 = vadd.f32 %v3835, %v3933
        %v3935 = vpop.f32.mrb[0].mxu0
        %3936 = vmatprep.mubr.bf16.mxu0 0
        %3937 = vmatmul.mubr.bf16.gmra.mrb[0].mxu0 %v495
        %v3938 = vpop.f32.mrb[0].mxu0
        %v3939 = vadd.f32 %v3835, %v3938
        %v3940 = vpop.f32.mrb[0].mxu0
        %v3941 = vpop.f32.mrb[0].mxu0
        %v3942 = vadd.f32 %v3835, %v3941
        %v3943 = vpop.f32.mrb[0].mxu0
        %3944 = vmatprep.mubr.bf16.mxu0 0
        %3945 = vmatmul.mubr.bf16.gmra.mrb[0].mxu0 %v498
        %v3946 = vpop.f32.mrb[0].mxu0
        %v3947 = vadd.f32 %v3835, %v3946
        %v3948 = vpop.f32.mrb[0].mxu0
        %v3949 = vpop.f32.mrb[0].mxu0
        %v3950 = vadd.f32 %v3835, %v3949
        %v3951 = vpop.f32.mrb[0].mxu0
        %3952 = vmatprep.mubr.bf16.mxu0 0
        %3953 = vmatmul.mubr.bf16.gmra.mrb[0].mxu0 %v501
        %v3954 = vpop.f32.mrb[0].mxu0
        %v3955 = vadd.f32 %v3835, %v3954
        %v3956 = vpop.f32.mrb[0].mxu0
        %v3957 = vpop.f32.mrb[0].mxu0
        %v3958 = vadd.f32 %v3835, %v3957
        %v3959 = vpop.f32.mrb[0].mxu0
        %3960 = vmatprep.mubr.bf16.mxu0 0
        %3961 = vmatmul.mubr.bf16.gmra.mrb[0].mxu0 %v504
        %v3962 = vpop.f32.mrb[0].mxu0
        %v3963 = vadd.f32 %v3835, %v3962
        %v3964 = vpop.f32.mrb[0].mxu0
        %v3965 = vpop.f32.mrb[0].mxu0
        %v3966 = vadd.f32 %v3835, %v3965
        %v3967 = vpop.f32.mrb[0].mxu0
        %3968 = vmatprep.mubr.bf16.mxu0 0
        %3969 = vmatmul.mubr.bf16.gmra.mrb[0].mxu0 %v507
        %v3970 = vpop.f32.mrb[0].mxu0
        %v3971 = vadd.f32 %v3835, %v3970
        %v3972 = vpop.f32.mrb[0].mxu0
        %v3973 = vpop.f32.mrb[0].mxu0
        %v3974 = vadd.f32 %v3835, %v3973
        %v3975 = vpop.f32.mrb[0].mxu0
        %3976 = vmatprep.mubr.bf16.mxu0 0
        %3977 = vmatmul.mubr.bf16.gmra.mrb[0].mxu0 %v510
        %v3978 = vpop.f32.mrb[0].mxu0
        %v3979 = vadd.f32 %v3835, %v3978
        %v3980 = vpop.f32.mrb[0].mxu0
        %v3981 = vpop.f32.mrb[0].mxu0
        %v3982 = vadd.f32 %v3835, %v3981
        %v3983 = vpop.f32.mrb[0].mxu0
        %3984 = vmatprep.mubr.bf16.mxu0 0
        %3985 = vmatmul.mubr.bf16.gmra.mrb[0].mxu0 %v513
        %v3986 = vpop.f32.mrb[0].mxu0
        %v3987 = vadd.f32 %v3835, %v3986
        %v3988 = vpop.f32.mrb[0].mxu0
        %v3989 = vpop.f32.mrb[0].mxu0
        %v3990 = vadd.f32 %v3835, %v3989
        %v3991 = vpop.f32.mrb[0].mxu0
        %3992 = vmatprep.mubr.bf16.mxu0 0
        %3993 = vmatmul.mubr.bf16.gmra.mrb[0].mxu0 %v516
        %v3994 = vpop.f32.mrb[0].mxu0
        %v3995 = vadd.f32 %v3835, %v3994
        %v3996 = vpop.f32.mrb[0].mxu0
        %v3997 = vpop.f32.mrb[0].mxu0
        %v3998 = vadd.f32 %v3835, %v3997
        %v3999 = vpop.f32.mrb[0].mxu0
        %4000 = vdwg.mxu0
        %v4001 = vadd.f32 %v3703, %v3875
        %v4002 = vadd.f32 %v3706, %v3878
        %v4003 = vadd.f32 %v3711, %v3883
        %v4004 = vadd.f32 %v3714, %v3886
        %v4005 = vadd.f32 %v3719, %v3891
        %v4006 = vadd.f32 %v3722, %v3894
        %v4007 = vadd.f32 %v3727, %v3899
        %v4008 = vadd.f32 %v3730, %v3902
        %v4009 = vadd.f32 %v3735, %v3907
        %v4010 = vadd.f32 %v3738, %v3910
        %v4011 = vadd.f32 %v3743, %v3915
        %v4012 = vadd.f32 %v3746, %v3918
        %v4013 = vadd.f32 %v3751, %v3923
        %v4014 = vadd.f32 %v3754, %v3926
        %v4015 = vadd.f32 %v3759, %v3931
        %v4016 = vadd.f32 %v3762, %v3934
        %v4017 = vadd.f32 %v3767, %v3939
        %v4018 = vadd.f32 %v3770, %v3942
        %v4019 = vadd.f32 %v3775, %v3947
        %v4020 = vadd.f32 %v3778, %v3950
        %v4021 = vadd.f32 %v3783, %v3955
        %v4022 = vadd.f32 %v3786, %v3958
        %v4023 = vadd.f32 %v3791, %v3963
        %v4024 = vadd.f32 %v3794, %v3966
        %v4025 = vadd.f32 %v3799, %v3971
        %v4026 = vadd.f32 %v3802, %v3974
        %v4027 = vadd.f32 %v3807, %v3979
        %v4028 = vadd.f32 %v3810, %v3982
        %v4029 = vadd.f32 %v3815, %v3987
        %v4030 = vadd.f32 %v3818, %v3990
        %v4031 = vadd.f32 %v3823, %v3995
        %v4032 = vadd.f32 %v3826, %v3998
        %v4033 = vmax.f32 %v4001, 0.0
        %v4034 = vmax.f32 %v4002, 0.0
        %v4035 = vmax.f32 %v4003, 0.0
        %v4036 = vmax.f32 %v4004, 0.0
        %v4037 = vmax.f32 %v4005, 0.0
        %v4038 = vmax.f32 %v4006, 0.0
        %v4039 = vmax.f32 %v4007, 0.0
        %v4040 = vmax.f32 %v4008, 0.0
        %v4041 = vmax.f32 %v4009, 0.0
        %v4042 = vmax.f32 %v4010, 0.0
        %v4043 = vmax.f32 %v4011, 0.0
        %v4044 = vmax.f32 %v4012, 0.0
        %v4045 = vmax.f32 %v4013, 0.0
        %v4046 = vmax.f32 %v4014, 0.0
        %v4047 = vmax.f32 %v4015, 0.0
        %v4048 = vmax.f32 %v4016, 0.0
        %v4049 = vmax.f32 %v4017, 0.0
        %v4050 = vmax.f32 %v4018, 0.0
        %v4051 = vmax.f32 %v4019, 0.0
        %v4052 = vmax.f32 %v4020, 0.0
        %v4053 = vmax.f32 %v4021, 0.0
        %v4054 = vmax.f32 %v4022, 0.0
        %v4055 = vmax.f32 %v4023, 0.0
        %v4056 = vmax.f32 %v4024, 0.0
        %v4057 = vmax.f32 %v4025, 0.0
        %v4058 = vmax.f32 %v4026, 0.0
        %v4059 = vmax.f32 %v4027, 0.0
        %v4060 = vmax.f32 %v4028, 0.0
        %v4061 = vmax.f32 %v4029, 0.0
        %v4062 = vmax.f32 %v4030, 0.0
        %v4063 = vmax.f32 %v4031, 0.0
        %v4064 = vmax.f32 %v4032, 0.0
        %4065 = vst [vmem:[%s347] sm:$0xff] %v4033
        %4066 = vst [vmem:[%s347 + $0x8] sm:$0xff] %v4034
        %4067 = vst [vmem:[%s347 + $0x10] sm:$0xff] %v4035
        %4068 = vst [vmem:[%s347 + $0x18] sm:$0xff] %v4036
        %4069 = vst [vmem:[%s347 + $0x20] sm:$0xff] %v4037
        %4070 = vst [vmem:[%s347 + $0x28] sm:$0xff] %v4038
        %4071 = vst [vmem:[%s347 + $0x30] sm:$0xff] %v4039
        %4072 = vst [vmem:[%s347 + $0x38] sm:$0xff] %v4040
        %4073 = vst [vmem:[%s347 + $0x40] sm:$0xff] %v4041
        %4074 = vst [vmem:[%s347 + $0x48] sm:$0xff] %v4042
        %4075 = vst [vmem:[%s347 + $0x50] sm:$0xff] %v4043
        %4076 = vst [vmem:[%s347 + $0x58] sm:$0xff] %v4044
        %4077 = vst [vmem:[%s347 + $0x60] sm:$0xff] %v4045
        %4078 = vst [vmem:[%s347 + $0x68] sm:$0xff] %v4046
        %4079 = vst [vmem:[%s347 + $0x70] sm:$0xff] %v4047
        %4080 = vst [vmem:[%s347 + $0x78] sm:$0xff] %v4048
        %4081 = vst [vmem:[%s347 + $0x80] sm:$0xff] %v4049
        %4082 = vst [vmem:[%s347 + $0x88] sm:$0xff] %v4050
        %4083 = vst [vmem:[%s347 + $0x90] sm:$0xff] %v4051
        %4084 = vst [vmem:[%s347 + $0x98] sm:$0xff] %v4052
        %4085 = vst [vmem:[%s347 + $0xa0] sm:$0xff] %v4053
        %4086 = vst [vmem:[%s347 + $0xa8] sm:$0xff] %v4054
        %4087 = vst [vmem:[%s347 + $0xb0] sm:$0xff] %v4055
        %4088 = vst [vmem:[%s347 + $0xb8] sm:$0xff] %v4056
        %4089 = vst [vmem:[%s347 + $0xc0] sm:$0xff] %v4057
        %4090 = vst [vmem:[%s347 + $0xc8] sm:$0xff] %v4058
        %4091 = vst [vmem:[%s347 + $0xd0] sm:$0xff] %v4059
        %4092 = vst [vmem:[%s347 + $0xd8] sm:$0xff] %v4060
        %4093 = vst [vmem:[%s347 + $0xe0] sm:$0xff] %v4061
        %4094 = vst [vmem:[%s347 + $0xe8] sm:$0xff] %v4062
        %4095 = vst [vmem:[%s347 + $0xf0] sm:$0xff] %v4063
        %4096 = vst [vmem:[%s347 + $0xf8] sm:$0xff] %v4064
        %p4097 = scmp.lt.s32.totalorder %s21, 1
        %s4098 = scalar_select %p4097, %s21, 1
        %s4099 = smul.addr %s4098, 32
        %s4100 = smul.addr %s4099, 8
        %s4101 = scalar_lea.vmem %s9, %s4100
        // Predicated region
        $region61: #{resblock_forward.1} parent=55 // pred_check
          %p4102 = pneg %p233
        $region62: #{resblock_forward.1} parent=55 // pred_check_branch
          %4104 = sbr.rel (%p4102) target = $region64
        $region63: #{resblock_forward.1} parent=55 // pred_region
          _
        $region64: #{resblock_forward.1} parent=55 // pred_fallthru
          _
      $region56: #{resblock_forward.1} parent=5 // pred_fallthru
        _
      %p4105 = scmp.le.s32.totalorder 2, %s16
      // Predicated region
      $region65: #{resblock_forward.1} parent=5 // pred_check
        %p4106 = pneg %p4105
      $region66: #{resblock_forward.1} parent=5 // pred_check_branch
        %4108 = sbr.rel (%p4106) target = $region68
      $region67: #{resblock_forward.1} parent=5 // pred_region
        %s4109 = ssub.s32 %s16, 2
        // Predicated region
        $region69: #{resblock_forward.1} parent=67 // pred_check
          %p4110 = pneg %p239
        $region70: #{resblock_forward.1} parent=67 // pred_check_branch
          %4112 = sbr.rel (%p4110) target = $region72
        $region71: #{resblock_forward.1} parent=67 // pred_region
          %p4113 = scmp.lt.s32.totalorder %s22, 1
          %s4114 = scalar_select %p4113, %s22, 1
          %s4115 = smul.addr %s4114, 32
          %s4116 = smul.addr %s4115, 8
          %s4117 = scalar_lea.vmem %s9, %s4116
        $region72: #{resblock_forward.1} parent=67 // pred_fallthru
          _
      $region68: #{resblock_forward.1} parent=5 // pred_fallthru
        _
    $region6: #{resblock_forward.1} parent=1 // loop_footer
      %s20 = sadd.s32 1, %s16
    $region7: #{resblock_forward.1} parent=1 // loop_footer_branch
      %15 = sbr.rel target = $region3
    $region8: #{resblock_forward.1} parent=1 // loop_exit
      _
    %4118 = vsyncpa [#allocation4], 1
    %s4119 = scalar_lea.sflag [#allocation4], 1
    %4120 = vsyncpa %s4119, 1

</llo_original>
